<compile_context>
chip_gen: v7x
topology: tpu7x:2x2x1
jax: 0.10.0
libtpu: 0.0.40
codegen_flags: <defaults>
</compile_context>

<pallas_src>
from functools import partial

import jax
import jax.numpy as jnp
from jax.experimental import pallas as pl
from jax.experimental.pallas import tpu as pltpu


VMEM_LIMIT = 48 * 1024 * 1024   # > default scoped limit (16/32 MiB) and < v7x physical (64 MiB)
LANE = 128


# ----------------------------------------------------------------------------- helpers
def _make_divisible(v, divisor, min_value=None):
    if min_value is None:
        min_value = divisor
    new_v = max(min_value, int(v + divisor / 2) // divisor * divisor)
    if new_v < 0.9 * v:
        new_v += divisor
    return new_v


def _round_up(x, m):
    return ((x + m - 1) // m) * m


def _act(y, use_hs):
    # h_swish(x) = x * relu6(x + 3) / 6 ; else plain ReLU
    if use_hs:
        return y * (jnp.clip(y + 3.0, 0.0, 6.0) * (1.0 / 6.0))
    return jnp.maximum(y, 0.0)


def _fold_bn(gamma, beta, mean, var, eps=1e-5):
    s = gamma / jnp.sqrt(var + eps)
    b = beta - mean * s
    return s.reshape(1, -1).astype(jnp.float32), b.reshape(1, -1).astype(jnp.float32)


def _pick_th(Ho, Wo, Wp, Ch, K, stride, budget=4 << 20, cap=32):
    """Largest output-row tile (divisor of Ho, <= cap) whose working set fits the budget."""
    best = 1
    for th in range(1, min(Ho, cap) + 1):
        if Ho % th:
            continue
        rows_in = (th - 1) * stride + K
        need = (rows_in * Wp * Ch * 4      # f32 expanded-row scratch (VMEM)
                + th * Wo * Ch * 4         # f32 depthwise accumulator
                + 2 * th * Wo * Ch * 2)    # double-buffered bf16 output block
        if need <= budget:
            best = th
    return best


# ----------------------------------------------------------------------------- kernel A
def _expand_dw_kernel(*refs, K, stride, th, Wo, use_hs, has_expand):
    if has_expand:
        (x_ref, w_exp_ref, s1_ref, b1_ref, w_dw_ref, s2_ref, b2_ref,
         dw_ref, pool_ref, h_scr) = refs
    else:
        (x_ref, w_dw_ref, s2_ref, b2_ref, dw_ref, pool_ref, h_scr) = refs

    r = pl.program_id(1)
    rows_in = h_scr.shape[0]
    Ch = h_scr.shape[2]
    row0 = pl.multiple_of(r * (th * stride), th * stride)

    if has_expand:
        w_exp = w_exp_ref[...]
        s1 = s1_ref[...]
        b1 = b1_ref[...]

    # 1) expand 1x1 conv + BN + act, per padded input row (incl. the (K-1)-row halo).
    #    The expanded map lives only in VMEM scratch -> no HBM round trip, no jnp.pad
    #    of the big hidden map (only the small pre-expansion input is padded outside).
    for i in range(rows_in):
        xrow = x_ref[0, row0 + i, :, :].astype(jnp.float32)          # (Wp, Cin)
        if has_expand:
            hrow = jnp.dot(xrow, w_exp, preferred_element_type=jnp.float32)
            hrow = _act(hrow * s1 + b1, use_hs)
        else:
            hrow = xrow
        h_scr[i] = hrow

    # 2) depthwise KxK conv + BN + act, accumulated in f32.
    w_dw = w_dw_ref[...]                                             # (K*K, Ch)
    acc = jnp.zeros((th, Wo, Ch), jnp.float32)
    for kh in range(K):
        for kw in range(K):
            if stride == 1:
                patch = h_scr[kh:kh + th, kw:kw + Wo, :]
            else:
                # TODO(synk): stride-2 uses a two-axis strided ref read; if this lowers
                # poorly on some generation, de-interleave even/odd columns instead.
                patch = h_scr[pl.ds(kh, th, stride=stride),
                              pl.ds(kw, Wo, stride=stride), :]
            acc = acc + patch * w_dw[kh * K + kw]
    y = _act(acc * s2_ref[...] + b2_ref[...], use_hs)                # (th, Wo, Ch) f32

    dw_ref[0] = y.astype(dw_ref.dtype)                               # bf16 to HBM (once)

    # 3) SE pooling epilogue: per-(batch, channel) sums accumulated across row tiles.
    tile_sum = jnp.sum(y, axis=(0, 1), keepdims=True)                # (1, 1, Ch)

    @pl.when(r == 0)
    def _():
        pool_ref[...] = tile_sum

    @pl.when(r > 0)
    def _():
        pool_ref[...] = pool_ref[...] + tile_sum


# ----------------------------------------------------------------------------- kernel B
def _se_proj_kernel(*refs, use_res):
    if use_res:
        h_ref, scale_ref, w_ref, s_ref, b_ref, res_ref, o_ref = refs
    else:
        h_ref, scale_ref, w_ref, s_ref, b_ref, o_ref = refs

    # SE gate fused into the projection: the dw map is read from HBM exactly once.
    x = h_ref[0].astype(jnp.float32) * scale_ref[0]                  # (tm, Ch)
    y = jnp.dot(x, w_ref[...], preferred_element_type=jnp.float32)
    y = y * s_ref[...] + b_ref[...]
    if use_res:
        y = y + res_ref[0]
    o_ref[0] = y.astype(o_ref.dtype)


# ----------------------------------------------------------------------------- params
def _bn_init(key, c):
    k1, k2, k3, k4 = jax.random.split(key, 4)
    gamma = 1.0 + 0.1 * jax.random.normal(k1, (c,), jnp.float32)
    beta = 0.1 * jax.random.normal(k2, (c,), jnp.float32)
    mean = 0.1 * jax.random.normal(k3, (c,), jnp.float32)
    var = jnp.abs(jax.random.normal(k4, (c,), jnp.float32)) + 0.5
    return (gamma, beta, mean, var)


def init_inverted_residual_params(key, inp, oup, kernel_size, expand_ratio, use_se):
    hidden = int(round(inp * expand_ratio))
    se_dim = _make_divisible(hidden // 4, 8)
    ks = jax.random.split(key, 10)
    p = {}
    if expand_ratio != 1:
        p['w_exp'] = 0.1 * jax.random.normal(ks[0], (inp, hidden), jnp.float32)
        p['bn1'] = _bn_init(ks[1], hidden)
    p['w_dw'] = 0.1 * jax.random.normal(ks[2], (kernel_size * kernel_size, hidden), jnp.float32)
    p['bn2'] = _bn_init(ks[3], hidden)
    if use_se:
        p['w_se1'] = 0.1 * jax.random.normal(ks[4], (hidden, se_dim), jnp.float32)
        p['b_se1'] = 0.1 * jax.random.normal(ks[5], (1, se_dim), jnp.float32)
        p['w_se2'] = 0.1 * jax.random.normal(ks[6], (se_dim, hidden), jnp.float32)
        p['b_se2'] = 0.1 * jax.random.normal(ks[7], (1, hidden), jnp.float32)
    p['w_proj'] = 0.1 * jax.random.normal(ks[8], (hidden, oup), jnp.float32)
    p['bn3'] = _bn_init(ks[9], oup)
    return p


# ----------------------------------------------------------------------------- forward
def inverted_residual_forward(params, x_nchw, *, inp, oup, kernel_size, stride,
                              expand_ratio, use_se, use_hs):
    N, C, H, W = x_nchw.shape
    K = kernel_size
    hidden = int(round(inp * expand_ratio))
    has_expand = expand_ratio != 1
    use_res = (stride == 1) and (inp == oup)

    pad = (K - 1) // 2
    Ho = (H + 2 * pad - K) // stride + 1
    Wo = (W + 2 * pad - K) // stride + 1
    Hp, Wp = H + 2 * pad, W + 2 * pad

    # Lane padding only when hidden already exceeds one vreg lane width; padding e.g.
    # 16 -> 128 would inflate HBM bytes 8x on a bandwidth-bound block.
    Ch = hidden
    Ch_p = _round_up(hidden, LANE) if (has_expand and hidden > LANE) else hidden

    def padc(a, axis):
        if Ch_p == Ch:
            return a
        widths = [(0, 0)] * a.ndim
        widths[axis] = (0, Ch_p - Ch)
        return jnp.pad(a, widths)

    x = jnp.transpose(x_nchw, (0, 2, 3, 1)).astype(jnp.float32)      # NCHW -> NHWC
    # pre-pad the small pre-expansion input once; the expanded map never hits HBM.
    x_pad = jnp.pad(x, ((0, 0), (pad, pad), (pad, pad), (0, 0)))

    s2, b2 = _fold_bn(*params['bn2'])
    s3, b3 = _fold_bn(*params['bn3'])
    w_dw = padc(params['w_dw'], 1)
    s2, b2 = padc(s2, 1), padc(b2, 1)
    w_proj = padc(params['w_proj'], 0)

    th = _pick_th(Ho, Wo, Wp, Ch_p, K, stride)
    R = Ho // th
    rows_in = (th - 1) * stride + K

    # ---------------- kernel A: fused expand + depthwise + BN/act + SE pooling
    ins = [x_pad]
    in_specs = [pl.BlockSpec((1, Hp, Wp, inp), lambda n, r: (n, 0, 0, 0))]
    if has_expand:
        s1, b1 = _fold_bn(*params['bn1'])
        w_exp = padc(params['w_exp'], 1)
        s1, b1 = padc(s1, 1), padc(b1, 1)
        ins += [w_exp, s1, b1]
        in_specs += [pl.BlockSpec((inp, Ch_p), lambda n, r: (0, 0)),
                     pl.BlockSpec((1, Ch_p), lambda n, r: (0, 0)),
                     pl.BlockSpec((1, Ch_p), lambda n, r: (0, 0))]
    ins += [w_dw, s2, b2]
    in_specs += [pl.BlockSpec((K * K, Ch_p), lambda n, r: (0, 0)),
                 pl.BlockSpec((1, Ch_p), lambda n, r: (0, 0)),
                 pl.BlockSpec((1, Ch_p), lambda n, r: (0, 0))]

    flops_a = 2 * N * Hp * Wp * inp * Ch_p + 2 * N * Ho * Wo * Ch_p * K * K
    bytes_a = (x_pad.size * 4 + K * K * Ch_p * 4 + 4 * Ch_p * 4
               + ((inp * Ch_p + 2 * Ch_p) * 4 if has_expand else 0)
               + N * Ho * Wo * Ch_p * 2 + N * Ch_p * 4)

    dw_map, pool_sum = pl.pallas_call(
        partial(_expand_dw_kernel, K=K, stride=stride, th=th, Wo=Wo,
                use_hs=use_hs, has_expand=has_expand),
        grid=(N, R),
        in_specs=in_specs,
        out_specs=[pl.BlockSpec((1, th, Wo, Ch_p), lambda n, r: (n, r, 0, 0)),
                   pl.BlockSpec((1, 1, Ch_p), lambda n, r: (n, 0, 0))],
        out_shape=[jax.ShapeDtypeStruct((N, Ho, Wo, Ch_p), jnp.bfloat16),
                   jax.ShapeDtypeStruct((N, 1, Ch_p), jnp.float32)],
        scratch_shapes=[pltpu.VMEM((rows_in, Wp, Ch_p), jnp.float32)],
        compiler_params=pltpu.CompilerParams(
            # row axis is sequential ("arbitrary") for the pooling accumulator;
            # the batch axis shards across the two TensorCores on v7x.
            dimension_semantics=("parallel", "arbitrary"),
            vmem_limit_bytes=VMEM_LIMIT),
        cost_estimate=pl.CostEstimate(flops=flops_a, transcendentals=0,
                                      bytes_accessed=bytes_a),
    )(*ins)

    # ---------------- tiny SE FCs (M = N) on the pooled vector: plain XLA per review.
    if use_se:
        pooled = pool_sum[:, 0, :] * (1.0 / float(Ho * Wo))          # (N, Ch_p)
        w_se1 = padc(params['w_se1'], 0)
        w_se2 = padc(params['w_se2'], 1)
        b_se2 = padc(params['b_se2'], 1)
        z = jnp.maximum(pooled @ w_se1 + params['b_se1'], 0.0)
        z = z @ w_se2 + b_se2
        scale = (jnp.clip(z + 3.0, 0.0, 6.0) * (1.0 / 6.0)).reshape(N, 1, Ch_p)
    else:
        scale = jnp.ones((N, 1, Ch_p), jnp.float32)

    # ---------------- kernel B: fused SE-gate * project 1x1 conv + BN (+ residual)
    M = Ho * Wo
    tm = 512 if M >= 512 else M
    h_flat = dw_map.reshape(N, M, Ch_p)
    ins_b = [h_flat, scale, w_proj, s3, b3]
    in_specs_b = [pl.BlockSpec((1, tm, Ch_p), lambda n, m: (n, m, 0)),
                  pl.BlockSpec((1, 1, Ch_p), lambda n, m: (n, 0, 0)),
                  pl.BlockSpec((Ch_p, oup), lambda n, m: (0, 0)),
                  pl.BlockSpec((1, oup), lambda n, m: (0, 0)),
                  pl.BlockSpec((1, oup), lambda n, m: (0, 0))]
    if use_res:
        ins_b.append(x.reshape(N, H * W, oup))
        in_specs_b.append(pl.BlockSpec((1, tm, oup), lambda n, m: (n, m, 0)))

    flops_b = 2 * N * M * Ch_p * oup
    bytes_b = (N * M * Ch_p * 2 + N * Ch_p * 4 + Ch_p * oup * 4
               + N * M * oup * 4 * (2 if use_res else 1))

    y_flat = pl.pallas_call(
        partial(_se_proj_kernel, use_res=use_res),
        grid=(N, pl.cdiv(M, tm)),
        in_specs=in_specs_b,
        out_specs=pl.BlockSpec((1, tm, oup), lambda n, m: (n, m, 0)),
        out_shape=jax.ShapeDtypeStruct((N, M, oup), jnp.float32),
        compiler_params=pltpu.CompilerParams(
            dimension_semantics=("parallel", "parallel"),
            vmem_limit_bytes=VMEM_LIMIT),
        cost_estimate=pl.CostEstimate(flops=flops_b, transcendentals=0,
                                      bytes_accessed=bytes_b),
    )(*ins_b)

    y = y_flat.reshape(N, Ho, Wo, oup)
    return jnp.transpose(y, (0, 3, 1, 2))                            # NHWC -> NCHW


# ----------------------------------------------------------------------------- pure-JAX reference
def reference_forward(params, x_nchw, *, inp, oup, kernel_size, stride,
                      expand_ratio, use_se, use_hs, eps=1e-5):
    K = kernel_size
    hidden = int(round(inp * expand_ratio))
    x = jnp.transpose(x_nchw, (0, 2, 3, 1)).astype(jnp.float32)
    N, H, W, _ = x.shape

    def act(y):
        return y * jnp.clip(y + 3.0, 0.0, 6.0) / 6.0 if use_hs else jnp.maximum(y, 0.0)

    def bn(y, prm):
        g, bta, m, v = prm
        return (y - m) * (g / jnp.sqrt(v + eps)) + bta

    h = x
    if expand_ratio != 1:
        h = act(bn(jnp.einsum('nhwc,cd->nhwd', h, params['w_exp']), params['bn1']))
    pad = (K - 1) // 2
    Ho = (H + 2 * pad - K) // stride + 1
    Wo = (W + 2 * pad - K) // stride + 1
    hp = jnp.pad(h, ((0, 0), (pad, pad), (pad, pad), (0, 0)))
    wdw = params['w_dw'].reshape(K, K, hidden)
    out = jnp.zeros((N, Ho, Wo, hidden), jnp.float32)
    for kh in range(K):
        for kw in range(K):
            out = out + hp[:, kh:kh + (Ho - 1) * stride + 1:stride,
                           kw:kw + (Wo - 1) * stride + 1:stride, :] * wdw[kh, kw]
    h = act(bn(out, params['bn2']))
    if use_se:
        pooled = jnp.mean(h, axis=(1, 2))
        z = jnp.maximum(pooled @ params['w_se1'] + params['b_se1'], 0.0)
        z = z @ params['w_se2'] + params['b_se2']
        gate = (jnp.clip(z + 3.0, 0.0, 6.0) / 6.0)[:, None, None, :]
    else:
        gate = 1.0
    # mimic the bf16 HBM crossing of the dw map in the Pallas pipeline
    h = h.astype(jnp.bfloat16).astype(jnp.float32) * gate
    y = bn(jnp.einsum('nhwc,cd->nhwd', h, params['w_proj']), params['bn3'])
    if stride == 1 and inp == oup:
        y = y + x
    return jnp.transpose(y, (0, 3, 1, 2))


# ----------------------------------------------------------------------------- main
if __name__ == "__main__":
    inp, oup = 4, 4
    kernel_size, stride = 3, 1
    expand_ratio = 4.0
    use_se, use_hs = True, True

    key = jax.random.PRNGKey(0)
    kx, kp = jax.random.split(key)
    x = jax.random.normal(kx, (2, inp, 16, 16), jnp.float32)
    params = init_inverted_residual_params(kp, inp, oup, kernel_size, expand_ratio, use_se)

    fwd = partial(inverted_residual_forward, inp=inp, oup=oup, kernel_size=kernel_size,
                  stride=stride, expand_ratio=expand_ratio, use_se=use_se, use_hs=use_hs)
    y = jax.jit(fwd)(params, x)
    y = jax.block_until_ready(y)

    ref = reference_forward(params, x, inp=inp, oup=oup, kernel_size=kernel_size,
                            stride=stride, expand_ratio=expand_ratio,
                            use_se=use_se, use_hs=use_hs)
    assert y.shape == (2, oup, 16, 16)
    err = float(jnp.max(jnp.abs(y - ref)))
    if err < 1e-2:
        print("KERNEL_OK")
    else:
        print(f"MISMATCH max_abs_err={err}")
</pallas_src>

<mosaic_0001>
module attributes {stable_mosaic.version = 11 : i64} {
  func.func @_expand_dw_kernel(%arg0: i32, %arg1: i32, %arg2: memref<1x18x18x4xf32, #tpu.memory_space<vmem>>, %arg3: memref<4x16xf32, #tpu.memory_space<vmem>>, %arg4: memref<1x16xf32, #tpu.memory_space<vmem>>, %arg5: memref<1x16xf32, #tpu.memory_space<vmem>>, %arg6: memref<9x16xf32, #tpu.memory_space<vmem>>, %arg7: memref<1x16xf32, #tpu.memory_space<vmem>>, %arg8: memref<1x16xf32, #tpu.memory_space<vmem>>, %arg9: memref<1x16x16x16xbf16, #tpu.memory_space<vmem>>, %arg10: memref<1x1x16xf32, #tpu.memory_space<vmem>>, %arg11: memref<18x18x16xf32, #tpu.memory_space<vmem>>) attributes {dimension_semantics = [#tpu.dimension_semantics<parallel>, #tpu.dimension_semantics<arbitrary>], iteration_bounds = array<i64: 2, 1>, scalar_prefetch = 0 : i64, scratch_operands = 1 : i64, tpu.core_type = #tpu.core_type<tc>, window_params = [{transform_indices = @transform_0, window_bounds = array<i64: 1, 18, 18, 4>}, {pipeline_mode = #tpu.pipeline_mode<synchronous>, transform_indices = @transform_1, window_bounds = array<i64: 4, 16>}, {pipeline_mode = #tpu.pipeline_mode<synchronous>, transform_indices = @transform_2, window_bounds = array<i64: 1, 16>}, {pipeline_mode = #tpu.pipeline_mode<synchronous>, transform_indices = @transform_3, window_bounds = array<i64: 1, 16>}, {pipeline_mode = #tpu.pipeline_mode<synchronous>, transform_indices = @transform_4, window_bounds = array<i64: 9, 16>}, {pipeline_mode = #tpu.pipeline_mode<synchronous>, transform_indices = @transform_5, window_bounds = array<i64: 1, 16>}, {pipeline_mode = #tpu.pipeline_mode<synchronous>, transform_indices = @transform_6, window_bounds = array<i64: 1, 16>}, {transform_indices = @transform_7, window_bounds = array<i64: 1, 16, 16, 16>}, {transform_indices = @transform_8, window_bounds = array<i64: 1, 1, 16>}]} {
    %c16_i32 = arith.constant 16 : i32
    %0 = arith.muli %arg1, %c16_i32 : i32
    %1 = tpu.assume_multiple %0, 16 : i32
    %c0 = arith.constant 0 : index
    %c0_0 = arith.constant 0 : index
    %2 = vector.load %arg3[%c0, %c0_0] : memref<4x16xf32, #tpu.memory_space<vmem>>, vector<4x16xf32>
    %c0_1 = arith.constant 0 : index
    %c0_2 = arith.constant 0 : index
    %3 = vector.load %arg4[%c0_1, %c0_2] : memref<1x16xf32, #tpu.memory_space<vmem>>, vector<1x16xf32>
    %c0_3 = arith.constant 0 : index
    %c0_4 = arith.constant 0 : index
    %4 = vector.load %arg5[%c0_3, %c0_4] : memref<1x16xf32, #tpu.memory_space<vmem>>, vector<1x16xf32>
    %c0_i32 = arith.constant 0 : i32
    %5 = arith.addi %1, %c0_i32 : i32
    %c0_5 = arith.constant 0 : index
    %6 = arith.index_cast %5 : i32 to index
    %c0_6 = arith.constant 0 : index
    %c0_7 = arith.constant 0 : index
    %7 = vector.load %arg2[%c0_5, %6, %c0_6, %c0_7] : memref<1x18x18x4xf32, #tpu.memory_space<vmem>>, vector<1x1x18x4xf32>
    %8 = vector.shape_cast %7 : vector<1x1x18x4xf32> to vector<18x4xf32>
    %cst = arith.constant dense<0.000000e+00> : vector<18x16xf32>
    %9 = tpu.matmul %8, %2, %cst {dimension_numbers = #tpu.dot_dimension_numbers<[1], [0], [0], [1], [0, 0, 1, 1], [], []>} : vector<18x4xf32>, vector<4x16xf32>, vector<18x16xf32> -> vector<18x16xf32>
    %10 = vector.broadcast %3 : vector<1x16xf32> to vector<18x16xf32>
    %11 = arith.mulf %9, %10 : vector<18x16xf32>
    %12 = vector.broadcast %4 : vector<1x16xf32> to vector<18x16xf32>
    %13 = arith.addf %11, %12 : vector<18x16xf32>
    %cst_8 = arith.constant 3.000000e+00 : f32
    %14 = vector.broadcast %cst_8 : f32 to vector<18x16xf32>
    %15 = arith.addf %13, %14 : vector<18x16xf32>
    %cst_9 = arith.constant 0.000000e+00 : f32
    %cst_10 = arith.constant 6.000000e+00 : f32
    %16 = vector.broadcast %cst_9 : f32 to vector<18x16xf32>
    %17 = arith.maximumf %16, %15 : vector<18x16xf32>
    %18 = vector.broadcast %cst_10 : f32 to vector<18x16xf32>
    %19 = arith.minimumf %18, %17 : vector<18x16xf32>
    %cst_11 = arith.constant 0.166666672 : f32
    %20 = vector.broadcast %cst_11 : f32 to vector<18x16xf32>
    %21 = arith.mulf %19, %20 : vector<18x16xf32>
    %22 = arith.mulf %13, %21 : vector<18x16xf32>
    %c0_12 = arith.constant 0 : index
    %c0_13 = arith.constant 0 : index
    %c0_14 = arith.constant 0 : index
    %23 = vector.load %arg11[%c0_12, %c0_13, %c0_14] : memref<18x18x16xf32, #tpu.memory_space<vmem>>, vector<1x18x16xf32>
    %24 = vector.shape_cast %23 : vector<1x18x16xf32> to vector<18x16xf32>
    %25 = vector.shape_cast %22 : vector<18x16xf32> to vector<1x18x16xf32>
    tpu.vector_store %arg11[%c0_12, %c0_13, %c0_14], %25 {strides = array<i32>} : memref<18x18x16xf32, #tpu.memory_space<vmem>>, vector<1x18x16xf32>,
    %c1_i32 = arith.constant 1 : i32
    %26 = arith.addi %1, %c1_i32 : i32
    %c0_15 = arith.constant 0 : index
    %27 = arith.index_cast %26 : i32 to index
    %c0_16 = arith.constant 0 : index
    %c0_17 = arith.constant 0 : index
    %28 = vector.load %arg2[%c0_15, %27, %c0_16, %c0_17] : memref<1x18x18x4xf32, #tpu.memory_space<vmem>>, vector<1x1x18x4xf32>
    %29 = vector.shape_cast %28 : vector<1x1x18x4xf32> to vector<18x4xf32>
    %cst_18 = arith.constant dense<0.000000e+00> : vector<18x16xf32>
    %30 = tpu.matmul %29, %2, %cst_18 {dimension_numbers = #tpu.dot_dimension_numbers<[1], [0], [0], [1], [0, 0, 1, 1], [], []>} : vector<18x4xf32>, vector<4x16xf32>, vector<18x16xf32> -> vector<18x16xf32>
    %31 = vector.broadcast %3 : vector<1x16xf32> to vector<18x16xf32>
    %32 = arith.mulf %30, %31 : vector<18x16xf32>
    %33 = vector.broadcast %4 : vector<1x16xf32> to vector<18x16xf32>
    %34 = arith.addf %32, %33 : vector<18x16xf32>
    %cst_19 = arith.constant 3.000000e+00 : f32
    %35 = vector.broadcast %cst_19 : f32 to vector<18x16xf32>
    %36 = arith.addf %34, %35 : vector<18x16xf32>
    %cst_20 = arith.constant 0.000000e+00 : f32
    %cst_21 = arith.constant 6.000000e+00 : f32
    %37 = vector.broadcast %cst_20 : f32 to vector<18x16xf32>
    %38 = arith.maximumf %37, %36 : vector<18x16xf32>
    %39 = vector.broadcast %cst_21 : f32 to vector<18x16xf32>
    %40 = arith.minimumf %39, %38 : vector<18x16xf32>
    %cst_22 = arith.constant 0.166666672 : f32
    %41 = vector.broadcast %cst_22 : f32 to vector<18x16xf32>
    %42 = arith.mulf %40, %41 : vector<18x16xf32>
    %43 = arith.mulf %34, %42 : vector<18x16xf32>
    %c1 = arith.constant 1 : index
    %c0_23 = arith.constant 0 : index
    %c0_24 = arith.constant 0 : index
    %44 = vector.load %arg11[%c1, %c0_23, %c0_24] : memref<18x18x16xf32, #tpu.memory_space<vmem>>, vector<1x18x16xf32>
    %45 = vector.shape_cast %44 : vector<1x18x16xf32> to vector<18x16xf32>
    %46 = vector.shape_cast %43 : vector<18x16xf32> to vector<1x18x16xf32>
    tpu.vector_store %arg11[%c1, %c0_23, %c0_24], %46 {strides = array<i32>} : memref<18x18x16xf32, #tpu.memory_space<vmem>>, vector<1x18x16xf32>,
    %c2_i32 = arith.constant 2 : i32
    %47 = arith.addi %1, %c2_i32 : i32
    %c0_25 = arith.constant 0 : index
    %48 = arith.index_cast %47 : i32 to index
    %c0_26 = arith.constant 0 : index
    %c0_27 = arith.constant 0 : index
    %49 = vector.load %arg2[%c0_25, %48, %c0_26, %c0_27] : memref<1x18x18x4xf32, #tpu.memory_space<vmem>>, vector<1x1x18x4xf32>
    %50 = vector.shape_cast %49 : vector<1x1x18x4xf32> to vector<18x4xf32>
    %cst_28 = arith.constant dense<0.000000e+00> : vector<18x16xf32>
    %51 = tpu.matmul %50, %2, %cst_28 {dimension_numbers = #tpu.dot_dimension_numbers<[1], [0], [0], [1], [0, 0, 1, 1], [], []>} : vector<18x4xf32>, vector<4x16xf32>, vector<18x16xf32> -> vector<18x16xf32>
    %52 = vector.broadcast %3 : vector<1x16xf32> to vector<18x16xf32>
    %53 = arith.mulf %51, %52 : vector<18x16xf32>
    %54 = vector.broadcast %4 : vector<1x16xf32> to vector<18x16xf32>
    %55 = arith.addf %53, %54 : vector<18x16xf32>
    %cst_29 = arith.constant 3.000000e+00 : f32
    %56 = vector.broadcast %cst_29 : f32 to vector<18x16xf32>
    %57 = arith.addf %55, %56 : vector<18x16xf32>
    %cst_30 = arith.constant 0.000000e+00 : f32
    %cst_31 = arith.constant 6.000000e+00 : f32
    %58 = vector.broadcast %cst_30 : f32 to vector<18x16xf32>
    %59 = arith.maximumf %58, %57 : vector<18x16xf32>
    %60 = vector.broadcast %cst_31 : f32 to vector<18x16xf32>
    %61 = arith.minimumf %60, %59 : vector<18x16xf32>
    %cst_32 = arith.constant 0.166666672 : f32
    %62 = vector.broadcast %cst_32 : f32 to vector<18x16xf32>
    %63 = arith.mulf %61, %62 : vector<18x16xf32>
    %64 = arith.mulf %55, %63 : vector<18x16xf32>
    %c2 = arith.constant 2 : index
    %c0_33 = arith.constant 0 : index
    %c0_34 = arith.constant 0 : index
    %65 = vector.load %arg11[%c2, %c0_33, %c0_34] : memref<18x18x16xf32, #tpu.memory_space<vmem>>, vector<1x18x16xf32>
    %66 = vector.shape_cast %65 : vector<1x18x16xf32> to vector<18x16xf32>
    %67 = vector.shape_cast %64 : vector<18x16xf32> to vector<1x18x16xf32>
    tpu.vector_store %arg11[%c2, %c0_33, %c0_34], %67 {strides = array<i32>} : memref<18x18x16xf32, #tpu.memory_space<vmem>>, vector<1x18x16xf32>,
    %c3_i32 = arith.constant 3 : i32
    %68 = arith.addi %1, %c3_i32 : i32
    %c0_35 = arith.constant 0 : index
    %69 = arith.index_cast %68 : i32 to index
    %c0_36 = arith.constant 0 : index
    %c0_37 = arith.constant 0 : index
    %70 = vector.load %arg2[%c0_35, %69, %c0_36, %c0_37] : memref<1x18x18x4xf32, #tpu.memory_space<vmem>>, vector<1x1x18x4xf32>
    %71 = vector.shape_cast %70 : vector<1x1x18x4xf32> to vector<18x4xf32>
    %cst_38 = arith.constant dense<0.000000e+00> : vector<18x16xf32>
    %72 = tpu.matmul %71, %2, %cst_38 {dimension_numbers = #tpu.dot_dimension_numbers<[1], [0], [0], [1], [0, 0, 1, 1], [], []>} : vector<18x4xf32>, vector<4x16xf32>, vector<18x16xf32> -> vector<18x16xf32>
    %73 = vector.broadcast %3 : vector<1x16xf32> to vector<18x16xf32>
    %74 = arith.mulf %72, %73 : vector<18x16xf32>
    %75 = vector.broadcast %4 : vector<1x16xf32> to vector<18x16xf32>
    %76 = arith.addf %74, %75 : vector<18x16xf32>
    %cst_39 = arith.constant 3.000000e+00 : f32
    %77 = vector.broadcast %cst_39 : f32 to vector<18x16xf32>
    %78 = arith.addf %76, %77 : vector<18x16xf32>
    %cst_40 = arith.constant 0.000000e+00 : f32
    %cst_41 = arith.constant 6.000000e+00 : f32
    %79 = vector.broadcast %cst_40 : f32 to vector<18x16xf32>
    %80 = arith.maximumf %79, %78 : vector<18x16xf32>
    %81 = vector.broadcast %cst_41 : f32 to vector<18x16xf32>
    %82 = arith.minimumf %81, %80 : vector<18x16xf32>
    %cst_42 = arith.constant 0.166666672 : f32
    %83 = vector.broadcast %cst_42 : f32 to vector<18x16xf32>
    %84 = arith.mulf %82, %83 : vector<18x16xf32>
    %85 = arith.mulf %76, %84 : vector<18x16xf32>
    %c3 = arith.constant 3 : index
    %c0_43 = arith.constant 0 : index
    %c0_44 = arith.constant 0 : index
    %86 = vector.load %arg11[%c3, %c0_43, %c0_44] : memref<18x18x16xf32, #tpu.memory_space<vmem>>, vector<1x18x16xf32>
    %87 = vector.shape_cast %86 : vector<1x18x16xf32> to vector<18x16xf32>
    %88 = vector.shape_cast %85 : vector<18x16xf32> to vector<1x18x16xf32>
    tpu.vector_store %arg11[%c3, %c0_43, %c0_44], %88 {strides = array<i32>} : memref<18x18x16xf32, #tpu.memory_space<vmem>>, vector<1x18x16xf32>,
    %c4_i32 = arith.constant 4 : i32
    %89 = arith.addi %1, %c4_i32 : i32
    %c0_45 = arith.constant 0 : index
    %90 = arith.index_cast %89 : i32 to index
    %c0_46 = arith.constant 0 : index
    %c0_47 = arith.constant 0 : index
    %91 = vector.load %arg2[%c0_45, %90, %c0_46, %c0_47] : memref<1x18x18x4xf32, #tpu.memory_space<vmem>>, vector<1x1x18x4xf32>
    %92 = vector.shape_cast %91 : vector<1x1x18x4xf32> to vector<18x4xf32>
    %cst_48 = arith.constant dense<0.000000e+00> : vector<18x16xf32>
    %93 = tpu.matmul %92, %2, %cst_48 {dimension_numbers = #tpu.dot_dimension_numbers<[1], [0], [0], [1], [0, 0, 1, 1], [], []>} : vector<18x4xf32>, vector<4x16xf32>, vector<18x16xf32> -> vector<18x16xf32>
    %94 = vector.broadcast %3 : vector<1x16xf32> to vector<18x16xf32>
    %95 = arith.mulf %93, %94 : vector<18x16xf32>
    %96 = vector.broadcast %4 : vector<1x16xf32> to vector<18x16xf32>
    %97 = arith.addf %95, %96 : vector<18x16xf32>
    %cst_49 = arith.constant 3.000000e+00 : f32
    %98 = vector.broadcast %cst_49 : f32 to vector<18x16xf32>
    %99 = arith.addf %97, %98 : vector<18x16xf32>
    %cst_50 = arith.constant 0.000000e+00 : f32
    %cst_51 = arith.constant 6.000000e+00 : f32
    %100 = vector.broadcast %cst_50 : f32 to vector<18x16xf32>
    %101 = arith.maximumf %100, %99 : vector<18x16xf32>
    %102 = vector.broadcast %cst_51 : f32 to vector<18x16xf32>
    %103 = arith.minimumf %102, %101 : vector<18x16xf32>
    %cst_52 = arith.constant 0.166666672 : f32
    %104 = vector.broadcast %cst_52 : f32 to vector<18x16xf32>
    %105 = arith.mulf %103, %104 : vector<18x16xf32>
    %106 = arith.mulf %97, %105 : vector<18x16xf32>
    %c4 = arith.constant 4 : index
    %c0_53 = arith.constant 0 : index
    %c0_54 = arith.constant 0 : index
    %107 = vector.load %arg11[%c4, %c0_53, %c0_54] : memref<18x18x16xf32, #tpu.memory_space<vmem>>, vector<1x18x16xf32>
    %108 = vector.shape_cast %107 : vector<1x18x16xf32> to vector<18x16xf32>
    %109 = vector.shape_cast %106 : vector<18x16xf32> to vector<1x18x16xf32>
    tpu.vector_store %arg11[%c4, %c0_53, %c0_54], %109 {strides = array<i32>} : memref<18x18x16xf32, #tpu.memory_space<vmem>>, vector<1x18x16xf32>,
    %c5_i32 = arith.constant 5 : i32
    %110 = arith.addi %1, %c5_i32 : i32
    %c0_55 = arith.constant 0 : index
    %111 = arith.index_cast %110 : i32 to index
    %c0_56 = arith.constant 0 : index
    %c0_57 = arith.constant 0 : index
    %112 = vector.load %arg2[%c0_55, %111, %c0_56, %c0_57] : memref<1x18x18x4xf32, #tpu.memory_space<vmem>>, vector<1x1x18x4xf32>
    %113 = vector.shape_cast %112 : vector<1x1x18x4xf32> to vector<18x4xf32>
    %cst_58 = arith.constant dense<0.000000e+00> : vector<18x16xf32>
    %114 = tpu.matmul %113, %2, %cst_58 {dimension_numbers = #tpu.dot_dimension_numbers<[1], [0], [0], [1], [0, 0, 1, 1], [], []>} : vector<18x4xf32>, vector<4x16xf32>, vector<18x16xf32> -> vector<18x16xf32>
    %115 = vector.broadcast %3 : vector<1x16xf32> to vector<18x16xf32>
    %116 = arith.mulf %114, %115 : vector<18x16xf32>
    %117 = vector.broadcast %4 : vector<1x16xf32> to vector<18x16xf32>
    %118 = arith.addf %116, %117 : vector<18x16xf32>
    %cst_59 = arith.constant 3.000000e+00 : f32
    %119 = vector.broadcast %cst_59 : f32 to vector<18x16xf32>
    %120 = arith.addf %118, %119 : vector<18x16xf32>
    %cst_60 = arith.constant 0.000000e+00 : f32
    %cst_61 = arith.constant 6.000000e+00 : f32
    %121 = vector.broadcast %cst_60 : f32 to vector<18x16xf32>
    %122 = arith.maximumf %121, %120 : vector<18x16xf32>
    %123 = vector.broadcast %cst_61 : f32 to vector<18x16xf32>
    %124 = arith.minimumf %123, %122 : vector<18x16xf32>
    %cst_62 = arith.constant 0.166666672 : f32
    %125 = vector.broadcast %cst_62 : f32 to vector<18x16xf32>
    %126 = arith.mulf %124, %125 : vector<18x16xf32>
    %127 = arith.mulf %118, %126 : vector<18x16xf32>
    %c5 = arith.constant 5 : index
    %c0_63 = arith.constant 0 : index
    %c0_64 = arith.constant 0 : index
    %128 = vector.load %arg11[%c5, %c0_63, %c0_64] : memref<18x18x16xf32, #tpu.memory_space<vmem>>, vector<1x18x16xf32>
    %129 = vector.shape_cast %128 : vector<1x18x16xf32> to vector<18x16xf32>
    %130 = vector.shape_cast %127 : vector<18x16xf32> to vector<1x18x16xf32>
    tpu.vector_store %arg11[%c5, %c0_63, %c0_64], %130 {strides = array<i32>} : memref<18x18x16xf32, #tpu.memory_space<vmem>>, vector<1x18x16xf32>,
    %c6_i32 = arith.constant 6 : i32
    %131 = arith.addi %1, %c6_i32 : i32
    %c0_65 = arith.constant 0 : index
    %132 = arith.index_cast %131 : i32 to index
    %c0_66 = arith.constant 0 : index
    %c0_67 = arith.constant 0 : index
    %133 = vector.load %arg2[%c0_65, %132, %c0_66, %c0_67] : memref<1x18x18x4xf32, #tpu.memory_space<vmem>>, vector<1x1x18x4xf32>
    %134 = vector.shape_cast %133 : vector<1x1x18x4xf32> to vector<18x4xf32>
    %cst_68 = arith.constant dense<0.000000e+00> : vector<18x16xf32>
    %135 = tpu.matmul %134, %2, %cst_68 {dimension_numbers = #tpu.dot_dimension_numbers<[1], [0], [0], [1], [0, 0, 1, 1], [], []>} : vector<18x4xf32>, vector<4x16xf32>, vector<18x16xf32> -> vector<18x16xf32>
    %136 = vector.broadcast %3 : vector<1x16xf32> to vector<18x16xf32>
    %137 = arith.mulf %135, %136 : vector<18x16xf32>
    %138 = vector.broadcast %4 : vector<1x16xf32> to vector<18x16xf32>
    %139 = arith.addf %137, %138 : vector<18x16xf32>
    %cst_69 = arith.constant 3.000000e+00 : f32
    %140 = vector.broadcast %cst_69 : f32 to vector<18x16xf32>
    %141 = arith.addf %139, %140 : vector<18x16xf32>
    %cst_70 = arith.constant 0.000000e+00 : f32
    %cst_71 = arith.constant 6.000000e+00 : f32
    %142 = vector.broadcast %cst_70 : f32 to vector<18x16xf32>
    %143 = arith.maximumf %142, %141 : vector<18x16xf32>
    %144 = vector.broadcast %cst_71 : f32 to vector<18x16xf32>
    %145 = arith.minimumf %144, %143 : vector<18x16xf32>
    %cst_72 = arith.constant 0.166666672 : f32
    %146 = vector.broadcast %cst_72 : f32 to vector<18x16xf32>
    %147 = arith.mulf %145, %146 : vector<18x16xf32>
    %148 = arith.mulf %139, %147 : vector<18x16xf32>
    %c6 = arith.constant 6 : index
    %c0_73 = arith.constant 0 : index
    %c0_74 = arith.constant 0 : index
    %149 = vector.load %arg11[%c6, %c0_73, %c0_74] : memref<18x18x16xf32, #tpu.memory_space<vmem>>, vector<1x18x16xf32>
    %150 = vector.shape_cast %149 : vector<1x18x16xf32> to vector<18x16xf32>
    %151 = vector.shape_cast %148 : vector<18x16xf32> to vector<1x18x16xf32>
    tpu.vector_store %arg11[%c6, %c0_73, %c0_74], %151 {strides = array<i32>} : memref<18x18x16xf32, #tpu.memory_space<vmem>>, vector<1x18x16xf32>,
    %c7_i32 = arith.constant 7 : i32
    %152 = arith.addi %1, %c7_i32 : i32
    %c0_75 = arith.constant 0 : index
    %153 = arith.index_cast %152 : i32 to index
    %c0_76 = arith.constant 0 : index
    %c0_77 = arith.constant 0 : index
    %154 = vector.load %arg2[%c0_75, %153, %c0_76, %c0_77] : memref<1x18x18x4xf32, #tpu.memory_space<vmem>>, vector<1x1x18x4xf32>
    %155 = vector.shape_cast %154 : vector<1x1x18x4xf32> to vector<18x4xf32>
    %cst_78 = arith.constant dense<0.000000e+00> : vector<18x16xf32>
    %156 = tpu.matmul %155, %2, %cst_78 {dimension_numbers = #tpu.dot_dimension_numbers<[1], [0], [0], [1], [0, 0, 1, 1], [], []>} : vector<18x4xf32>, vector<4x16xf32>, vector<18x16xf32> -> vector<18x16xf32>
    %157 = vector.broadcast %3 : vector<1x16xf32> to vector<18x16xf32>
    %158 = arith.mulf %156, %157 : vector<18x16xf32>
    %159 = vector.broadcast %4 : vector<1x16xf32> to vector<18x16xf32>
    %160 = arith.addf %158, %159 : vector<18x16xf32>
    %cst_79 = arith.constant 3.000000e+00 : f32
    %161 = vector.broadcast %cst_79 : f32 to vector<18x16xf32>
    %162 = arith.addf %160, %161 : vector<18x16xf32>
    %cst_80 = arith.constant 0.000000e+00 : f32
    %cst_81 = arith.constant 6.000000e+00 : f32
    %163 = vector.broadcast %cst_80 : f32 to vector<18x16xf32>
    %164 = arith.maximumf %163, %162 : vector<18x16xf32>
    %165 = vector.broadcast %cst_81 : f32 to vector<18x16xf32>
    %166 = arith.minimumf %165, %164 : vector<18x16xf32>
    %cst_82 = arith.constant 0.166666672 : f32
    %167 = vector.broadcast %cst_82 : f32 to vector<18x16xf32>
    %168 = arith.mulf %166, %167 : vector<18x16xf32>
    %169 = arith.mulf %160, %168 : vector<18x16xf32>
    %c7 = arith.constant 7 : index
    %c0_83 = arith.constant 0 : index
    %c0_84 = arith.constant 0 : index
    %170 = vector.load %arg11[%c7, %c0_83, %c0_84] : memref<18x18x16xf32, #tpu.memory_space<vmem>>, vector<1x18x16xf32>
    %171 = vector.shape_cast %170 : vector<1x18x16xf32> to vector<18x16xf32>
    %172 = vector.shape_cast %169 : vector<18x16xf32> to vector<1x18x16xf32>
    tpu.vector_store %arg11[%c7, %c0_83, %c0_84], %172 {strides = array<i32>} : memref<18x18x16xf32, #tpu.memory_space<vmem>>, vector<1x18x16xf32>,
    %c8_i32 = arith.constant 8 : i32
    %173 = arith.addi %1, %c8_i32 : i32
    %c0_85 = arith.constant 0 : index
    %174 = arith.index_cast %173 : i32 to index
    %c0_86 = arith.constant 0 : index
    %c0_87 = arith.constant 0 : index
    %175 = vector.load %arg2[%c0_85, %174, %c0_86, %c0_87] : memref<1x18x18x4xf32, #tpu.memory_space<vmem>>, vector<1x1x18x4xf32>
    %176 = vector.shape_cast %175 : vector<1x1x18x4xf32> to vector<18x4xf32>
    %cst_88 = arith.constant dense<0.000000e+00> : vector<18x16xf32>
    %177 = tpu.matmul %176, %2, %cst_88 {dimension_numbers = #tpu.dot_dimension_numbers<[1], [0], [0], [1], [0, 0, 1, 1], [], []>} : vector<18x4xf32>, vector<4x16xf32>, vector<18x16xf32> -> vector<18x16xf32>
    %178 = vector.broadcast %3 : vector<1x16xf32> to vector<18x16xf32>
    %179 = arith.mulf %177, %178 : vector<18x16xf32>
    %180 = vector.broadcast %4 : vector<1x16xf32> to vector<18x16xf32>
    %181 = arith.addf %179, %180 : vector<18x16xf32>
    %cst_89 = arith.constant 3.000000e+00 : f32
    %182 = vector.broadcast %cst_89 : f32 to vector<18x16xf32>
    %183 = arith.addf %181, %182 : vector<18x16xf32>
    %cst_90 = arith.constant 0.000000e+00 : f32
    %cst_91 = arith.constant 6.000000e+00 : f32
    %184 = vector.broadcast %cst_90 : f32 to vector<18x16xf32>
    %185 = arith.maximumf %184, %183 : vector<18x16xf32>
    %186 = vector.broadcast %cst_91 : f32 to vector<18x16xf32>
    %187 = arith.minimumf %186, %185 : vector<18x16xf32>
    %cst_92 = arith.constant 0.166666672 : f32
    %188 = vector.broadcast %cst_92 : f32 to vector<18x16xf32>
    %189 = arith.mulf %187, %188 : vector<18x16xf32>
    %190 = arith.mulf %181, %189 : vector<18x16xf32>
    %c8 = arith.constant 8 : index
    %c0_93 = arith.constant 0 : index
    %c0_94 = arith.constant 0 : index
    %191 = vector.load %arg11[%c8, %c0_93, %c0_94] : memref<18x18x16xf32, #tpu.memory_space<vmem>>, vector<1x18x16xf32>
    %192 = vector.shape_cast %191 : vector<1x18x16xf32> to vector<18x16xf32>
    %193 = vector.shape_cast %190 : vector<18x16xf32> to vector<1x18x16xf32>
    tpu.vector_store %arg11[%c8, %c0_93, %c0_94], %193 {strides = array<i32>} : memref<18x18x16xf32, #tpu.memory_space<vmem>>, vector<1x18x16xf32>,
    %c9_i32 = arith.constant 9 : i32
    %194 = arith.addi %1, %c9_i32 : i32
    %c0_95 = arith.constant 0 : index
    %195 = arith.index_cast %194 : i32 to index
    %c0_96 = arith.constant 0 : index
    %c0_97 = arith.constant 0 : index
    %196 = vector.load %arg2[%c0_95, %195, %c0_96, %c0_97] : memref<1x18x18x4xf32, #tpu.memory_space<vmem>>, vector<1x1x18x4xf32>
    %197 = vector.shape_cast %196 : vector<1x1x18x4xf32> to vector<18x4xf32>
    %cst_98 = arith.constant dense<0.000000e+00> : vector<18x16xf32>
    %198 = tpu.matmul %197, %2, %cst_98 {dimension_numbers = #tpu.dot_dimension_numbers<[1], [0], [0], [1], [0, 0, 1, 1], [], []>} : vector<18x4xf32>, vector<4x16xf32>, vector<18x16xf32> -> vector<18x16xf32>
    %199 = vector.broadcast %3 : vector<1x16xf32> to vector<18x16xf32>
    %200 = arith.mulf %198, %199 : vector<18x16xf32>
    %201 = vector.broadcast %4 : vector<1x16xf32> to vector<18x16xf32>
    %202 = arith.addf %200, %201 : vector<18x16xf32>
    %cst_99 = arith.constant 3.000000e+00 : f32
    %203 = vector.broadcast %cst_99 : f32 to vector<18x16xf32>
    %204 = arith.addf %202, %203 : vector<18x16xf32>
    %cst_100 = arith.constant 0.000000e+00 : f32
    %cst_101 = arith.constant 6.000000e+00 : f32
    %205 = vector.broadcast %cst_100 : f32 to vector<18x16xf32>
    %206 = arith.maximumf %205, %204 : vector<18x16xf32>
    %207 = vector.broadcast %cst_101 : f32 to vector<18x16xf32>
    %208 = arith.minimumf %207, %206 : vector<18x16xf32>
    %cst_102 = arith.constant 0.166666672 : f32
    %209 = vector.broadcast %cst_102 : f32 to vector<18x16xf32>
    %210 = arith.mulf %208, %209 : vector<18x16xf32>
    %211 = arith.mulf %202, %210 : vector<18x16xf32>
    %c9 = arith.constant 9 : index
    %c0_103 = arith.constant 0 : index
    %c0_104 = arith.constant 0 : index
    %212 = vector.load %arg11[%c9, %c0_103, %c0_104] : memref<18x18x16xf32, #tpu.memory_space<vmem>>, vector<1x18x16xf32>
    %213 = vector.shape_cast %212 : vector<1x18x16xf32> to vector<18x16xf32>
    %214 = vector.shape_cast %211 : vector<18x16xf32> to vector<1x18x16xf32>
    tpu.vector_store %arg11[%c9, %c0_103, %c0_104], %214 {strides = array<i32>} : memref<18x18x16xf32, #tpu.memory_space<vmem>>, vector<1x18x16xf32>,
    %c10_i32 = arith.constant 10 : i32
    %215 = arith.addi %1, %c10_i32 : i32
    %c0_105 = arith.constant 0 : index
    %216 = arith.index_cast %215 : i32 to index
    %c0_106 = arith.constant 0 : index
    %c0_107 = arith.constant 0 : index
    %217 = vector.load %arg2[%c0_105, %216, %c0_106, %c0_107] : memref<1x18x18x4xf32, #tpu.memory_space<vmem>>, vector<1x1x18x4xf32>
    %218 = vector.shape_cast %217 : vector<1x1x18x4xf32> to vector<18x4xf32>
    %cst_108 = arith.constant dense<0.000000e+00> : vector<18x16xf32>
    %219 = tpu.matmul %218, %2, %cst_108 {dimension_numbers = #tpu.dot_dimension_numbers<[1], [0], [0], [1], [0, 0, 1, 1], [], []>} : vector<18x4xf32>, vector<4x16xf32>, vector<18x16xf32> -> vector<18x16xf32>
    %220 = vector.broadcast %3 : vector<1x16xf32> to vector<18x16xf32>
    %221 = arith.mulf %219, %220 : vector<18x16xf32>
    %222 = vector.broadcast %4 : vector<1x16xf32> to vector<18x16xf32>
    %223 = arith.addf %221, %222 : vector<18x16xf32>
    %cst_109 = arith.constant 3.000000e+00 : f32
    %224 = vector.broadcast %cst_109 : f32 to vector<18x16xf32>
    %225 = arith.addf %223, %224 : vector<18x16xf32>
    %cst_110 = arith.constant 0.000000e+00 : f32
    %cst_111 = arith.constant 6.000000e+00 : f32
    %226 = vector.broadcast %cst_110 : f32 to vector<18x16xf32>
    %227 = arith.maximumf %226, %225 : vector<18x16xf32>
    %228 = vector.broadcast %cst_111 : f32 to vector<18x16xf32>
    %229 = arith.minimumf %228, %227 : vector<18x16xf32>
    %cst_112 = arith.constant 0.166666672 : f32
    %230 = vector.broadcast %cst_112 : f32 to vector<18x16xf32>
    %231 = arith.mulf %229, %230 : vector<18x16xf32>
    %232 = arith.mulf %223, %231 : vector<18x16xf32>
    %c10 = arith.constant 10 : index
    %c0_113 = arith.constant 0 : index
    %c0_114 = arith.constant 0 : index
    %233 = vector.load %arg11[%c10, %c0_113, %c0_114] : memref<18x18x16xf32, #tpu.memory_space<vmem>>, vector<1x18x16xf32>
    %234 = vector.shape_cast %233 : vector<1x18x16xf32> to vector<18x16xf32>
    %235 = vector.shape_cast %232 : vector<18x16xf32> to vector<1x18x16xf32>
    tpu.vector_store %arg11[%c10, %c0_113, %c0_114], %235 {strides = array<i32>} : memref<18x18x16xf32, #tpu.memory_space<vmem>>, vector<1x18x16xf32>,
    %c11_i32 = arith.constant 11 : i32
    %236 = arith.addi %1, %c11_i32 : i32
    %c0_115 = arith.constant 0 : index
    %237 = arith.index_cast %236 : i32 to index
    %c0_116 = arith.constant 0 : index
    %c0_117 = arith.constant 0 : index
    %238 = vector.load %arg2[%c0_115, %237, %c0_116, %c0_117] : memref<1x18x18x4xf32, #tpu.memory_space<vmem>>, vector<1x1x18x4xf32>
    %239 = vector.shape_cast %238 : vector<1x1x18x4xf32> to vector<18x4xf32>
    %cst_118 = arith.constant dense<0.000000e+00> : vector<18x16xf32>
    %240 = tpu.matmul %239, %2, %cst_118 {dimension_numbers = #tpu.dot_dimension_numbers<[1], [0], [0], [1], [0, 0, 1, 1], [], []>} : vector<18x4xf32>, vector<4x16xf32>, vector<18x16xf32> -> vector<18x16xf32>
    %241 = vector.broadcast %3 : vector<1x16xf32> to vector<18x16xf32>
    %242 = arith.mulf %240, %241 : vector<18x16xf32>
    %243 = vector.broadcast %4 : vector<1x16xf32> to vector<18x16xf32>
    %244 = arith.addf %242, %243 : vector<18x16xf32>
    %cst_119 = arith.constant 3.000000e+00 : f32
    %245 = vector.broadcast %cst_119 : f32 to vector<18x16xf32>
    %246 = arith.addf %244, %245 : vector<18x16xf32>
    %cst_120 = arith.constant 0.000000e+00 : f32
    %cst_121 = arith.constant 6.000000e+00 : f32
    %247 = vector.broadcast %cst_120 : f32 to vector<18x16xf32>
    %248 = arith.maximumf %247, %246 : vector<18x16xf32>
    %249 = vector.broadcast %cst_121 : f32 to vector<18x16xf32>
    %250 = arith.minimumf %249, %248 : vector<18x16xf32>
    %cst_122 = arith.constant 0.166666672 : f32
    %251 = vector.broadcast %cst_122 : f32 to vector<18x16xf32>
    %252 = arith.mulf %250, %251 : vector<18x16xf32>
    %253 = arith.mulf %244, %252 : vector<18x16xf32>
    %c11 = arith.constant 11 : index
    %c0_123 = arith.constant 0 : index
    %c0_124 = arith.constant 0 : index
    %254 = vector.load %arg11[%c11, %c0_123, %c0_124] : memref<18x18x16xf32, #tpu.memory_space<vmem>>, vector<1x18x16xf32>
    %255 = vector.shape_cast %254 : vector<1x18x16xf32> to vector<18x16xf32>
    %256 = vector.shape_cast %253 : vector<18x16xf32> to vector<1x18x16xf32>
    tpu.vector_store %arg11[%c11, %c0_123, %c0_124], %256 {strides = array<i32>} : memref<18x18x16xf32, #tpu.memory_space<vmem>>, vector<1x18x16xf32>,
    %c12_i32 = arith.constant 12 : i32
    %257 = arith.addi %1, %c12_i32 : i32
    %c0_125 = arith.constant 0 : index
    %258 = arith.index_cast %257 : i32 to index
    %c0_126 = arith.constant 0 : index
    %c0_127 = arith.constant 0 : index
    %259 = vector.load %arg2[%c0_125, %258, %c0_126, %c0_127] : memref<1x18x18x4xf32, #tpu.memory_space<vmem>>, vector<1x1x18x4xf32>
    %260 = vector.shape_cast %259 : vector<1x1x18x4xf32> to vector<18x4xf32>
    %cst_128 = arith.constant dense<0.000000e+00> : vector<18x16xf32>
    %261 = tpu.matmul %260, %2, %cst_128 {dimension_numbers = #tpu.dot_dimension_numbers<[1], [0], [0], [1], [0, 0, 1, 1], [], []>} : vector<18x4xf32>, vector<4x16xf32>, vector<18x16xf32> -> vector<18x16xf32>
    %262 = vector.broadcast %3 : vector<1x16xf32> to vector<18x16xf32>
    %263 = arith.mulf %261, %262 : vector<18x16xf32>
    %264 = vector.broadcast %4 : vector<1x16xf32> to vector<18x16xf32>
    %265 = arith.addf %263, %264 : vector<18x16xf32>
    %cst_129 = arith.constant 3.000000e+00 : f32
    %266 = vector.broadcast %cst_129 : f32 to vector<18x16xf32>
    %267 = arith.addf %265, %266 : vector<18x16xf32>
    %cst_130 = arith.constant 0.000000e+00 : f32
    %cst_131 = arith.constant 6.000000e+00 : f32
    %268 = vector.broadcast %cst_130 : f32 to vector<18x16xf32>
    %269 = arith.maximumf %268, %267 : vector<18x16xf32>
    %270 = vector.broadcast %cst_131 : f32 to vector<18x16xf32>
    %271 = arith.minimumf %270, %269 : vector<18x16xf32>
    %cst_132 = arith.constant 0.166666672 : f32
    %272 = vector.broadcast %cst_132 : f32 to vector<18x16xf32>
    %273 = arith.mulf %271, %272 : vector<18x16xf32>
    %274 = arith.mulf %265, %273 : vector<18x16xf32>
    %c12 = arith.constant 12 : index
    %c0_133 = arith.constant 0 : index
    %c0_134 = arith.constant 0 : index
    %275 = vector.load %arg11[%c12, %c0_133, %c0_134] : memref<18x18x16xf32, #tpu.memory_space<vmem>>, vector<1x18x16xf32>
    %276 = vector.shape_cast %275 : vector<1x18x16xf32> to vector<18x16xf32>
    %277 = vector.shape_cast %274 : vector<18x16xf32> to vector<1x18x16xf32>
    tpu.vector_store %arg11[%c12, %c0_133, %c0_134], %277 {strides = array<i32>} : memref<18x18x16xf32, #tpu.memory_space<vmem>>, vector<1x18x16xf32>,
    %c13_i32 = arith.constant 13 : i32
    %278 = arith.addi %1, %c13_i32 : i32
    %c0_135 = arith.constant 0 : index
    %279 = arith.index_cast %278 : i32 to index
    %c0_136 = arith.constant 0 : index
    %c0_137 = arith.constant 0 : index
    %280 = vector.load %arg2[%c0_135, %279, %c0_136, %c0_137] : memref<1x18x18x4xf32, #tpu.memory_space<vmem>>, vector<1x1x18x4xf32>
    %281 = vector.shape_cast %280 : vector<1x1x18x4xf32> to vector<18x4xf32>
    %cst_138 = arith.constant dense<0.000000e+00> : vector<18x16xf32>
    %282 = tpu.matmul %281, %2, %cst_138 {dimension_numbers = #tpu.dot_dimension_numbers<[1], [0], [0], [1], [0, 0, 1, 1], [], []>} : vector<18x4xf32>, vector<4x16xf32>, vector<18x16xf32> -> vector<18x16xf32>
    %283 = vector.broadcast %3 : vector<1x16xf32> to vector<18x16xf32>
    %284 = arith.mulf %282, %283 : vector<18x16xf32>
    %285 = vector.broadcast %4 : vector<1x16xf32> to vector<18x16xf32>
    %286 = arith.addf %284, %285 : vector<18x16xf32>
    %cst_139 = arith.constant 3.000000e+00 : f32
    %287 = vector.broadcast %cst_139 : f32 to vector<18x16xf32>
    %288 = arith.addf %286, %287 : vector<18x16xf32>
    %cst_140 = arith.constant 0.000000e+00 : f32
    %cst_141 = arith.constant 6.000000e+00 : f32
    %289 = vector.broadcast %cst_140 : f32 to vector<18x16xf32>
    %290 = arith.maximumf %289, %288 : vector<18x16xf32>
    %291 = vector.broadcast %cst_141 : f32 to vector<18x16xf32>
    %292 = arith.minimumf %291, %290 : vector<18x16xf32>
    %cst_142 = arith.constant 0.166666672 : f32
    %293 = vector.broadcast %cst_142 : f32 to vector<18x16xf32>
    %294 = arith.mulf %292, %293 : vector<18x16xf32>
    %295 = arith.mulf %286, %294 : vector<18x16xf32>
    %c13 = arith.constant 13 : index
    %c0_143 = arith.constant 0 : index
    %c0_144 = arith.constant 0 : index
    %296 = vector.load %arg11[%c13, %c0_143, %c0_144] : memref<18x18x16xf32, #tpu.memory_space<vmem>>, vector<1x18x16xf32>
    %297 = vector.shape_cast %296 : vector<1x18x16xf32> to vector<18x16xf32>
    %298 = vector.shape_cast %295 : vector<18x16xf32> to vector<1x18x16xf32>
    tpu.vector_store %arg11[%c13, %c0_143, %c0_144], %298 {strides = array<i32>} : memref<18x18x16xf32, #tpu.memory_space<vmem>>, vector<1x18x16xf32>,
    %c14_i32 = arith.constant 14 : i32
    %299 = arith.addi %1, %c14_i32 : i32
    %c0_145 = arith.constant 0 : index
    %300 = arith.index_cast %299 : i32 to index
    %c0_146 = arith.constant 0 : index
    %c0_147 = arith.constant 0 : index
    %301 = vector.load %arg2[%c0_145, %300, %c0_146, %c0_147] : memref<1x18x18x4xf32, #tpu.memory_space<vmem>>, vector<1x1x18x4xf32>
    %302 = vector.shape_cast %301 : vector<1x1x18x4xf32> to vector<18x4xf32>
    %cst_148 = arith.constant dense<0.000000e+00> : vector<18x16xf32>
    %303 = tpu.matmul %302, %2, %cst_148 {dimension_numbers = #tpu.dot_dimension_numbers<[1], [0], [0], [1], [0, 0, 1, 1], [], []>} : vector<18x4xf32>, vector<4x16xf32>, vector<18x16xf32> -> vector<18x16xf32>
    %304 = vector.broadcast %3 : vector<1x16xf32> to vector<18x16xf32>
    %305 = arith.mulf %303, %304 : vector<18x16xf32>
    %306 = vector.broadcast %4 : vector<1x16xf32> to vector<18x16xf32>
    %307 = arith.addf %305, %306 : vector<18x16xf32>
    %cst_149 = arith.constant 3.000000e+00 : f32
    %308 = vector.broadcast %cst_149 : f32 to vector<18x16xf32>
    %309 = arith.addf %307, %308 : vector<18x16xf32>
    %cst_150 = arith.constant 0.000000e+00 : f32
    %cst_151 = arith.constant 6.000000e+00 : f32
    %310 = vector.broadcast %cst_150 : f32 to vector<18x16xf32>
    %311 = arith.maximumf %310, %309 : vector<18x16xf32>
    %312 = vector.broadcast %cst_151 : f32 to vector<18x16xf32>
    %313 = arith.minimumf %312, %311 : vector<18x16xf32>
    %cst_152 = arith.constant 0.166666672 : f32
    %314 = vector.broadcast %cst_152 : f32 to vector<18x16xf32>
    %315 = arith.mulf %313, %314 : vector<18x16xf32>
    %316 = arith.mulf %307, %315 : vector<18x16xf32>
    %c14 = arith.constant 14 : index
    %c0_153 = arith.constant 0 : index
    %c0_154 = arith.constant 0 : index
    %317 = vector.load %arg11[%c14, %c0_153, %c0_154] : memref<18x18x16xf32, #tpu.memory_space<vmem>>, vector<1x18x16xf32>
    %318 = vector.shape_cast %317 : vector<1x18x16xf32> to vector<18x16xf32>
    %319 = vector.shape_cast %316 : vector<18x16xf32> to vector<1x18x16xf32>
    tpu.vector_store %arg11[%c14, %c0_153, %c0_154], %319 {strides = array<i32>} : memref<18x18x16xf32, #tpu.memory_space<vmem>>, vector<1x18x16xf32>,
    %c15_i32 = arith.constant 15 : i32
    %320 = arith.addi %1, %c15_i32 : i32
    %c0_155 = arith.constant 0 : index
    %321 = arith.index_cast %320 : i32 to index
    %c0_156 = arith.constant 0 : index
    %c0_157 = arith.constant 0 : index
    %322 = vector.load %arg2[%c0_155, %321, %c0_156, %c0_157] : memref<1x18x18x4xf32, #tpu.memory_space<vmem>>, vector<1x1x18x4xf32>
    %323 = vector.shape_cast %322 : vector<1x1x18x4xf32> to vector<18x4xf32>
    %cst_158 = arith.constant dense<0.000000e+00> : vector<18x16xf32>
    %324 = tpu.matmul %323, %2, %cst_158 {dimension_numbers = #tpu.dot_dimension_numbers<[1], [0], [0], [1], [0, 0, 1, 1], [], []>} : vector<18x4xf32>, vector<4x16xf32>, vector<18x16xf32> -> vector<18x16xf32>
    %325 = vector.broadcast %3 : vector<1x16xf32> to vector<18x16xf32>
    %326 = arith.mulf %324, %325 : vector<18x16xf32>
    %327 = vector.broadcast %4 : vector<1x16xf32> to vector<18x16xf32>
    %328 = arith.addf %326, %327 : vector<18x16xf32>
    %cst_159 = arith.constant 3.000000e+00 : f32
    %329 = vector.broadcast %cst_159 : f32 to vector<18x16xf32>
    %330 = arith.addf %328, %329 : vector<18x16xf32>
    %cst_160 = arith.constant 0.000000e+00 : f32
    %cst_161 = arith.constant 6.000000e+00 : f32
    %331 = vector.broadcast %cst_160 : f32 to vector<18x16xf32>
    %332 = arith.maximumf %331, %330 : vector<18x16xf32>
    %333 = vector.broadcast %cst_161 : f32 to vector<18x16xf32>
    %334 = arith.minimumf %333, %332 : vector<18x16xf32>
    %cst_162 = arith.constant 0.166666672 : f32
    %335 = vector.broadcast %cst_162 : f32 to vector<18x16xf32>
    %336 = arith.mulf %334, %335 : vector<18x16xf32>
    %337 = arith.mulf %328, %336 : vector<18x16xf32>
    %c15 = arith.constant 15 : index
    %c0_163 = arith.constant 0 : index
    %c0_164 = arith.constant 0 : index
    %338 = vector.load %arg11[%c15, %c0_163, %c0_164] : memref<18x18x16xf32, #tpu.memory_space<vmem>>, vector<1x18x16xf32>
    %339 = vector.shape_cast %338 : vector<1x18x16xf32> to vector<18x16xf32>
    %340 = vector.shape_cast %337 : vector<18x16xf32> to vector<1x18x16xf32>
    tpu.vector_store %arg11[%c15, %c0_163, %c0_164], %340 {strides = array<i32>} : memref<18x18x16xf32, #tpu.memory_space<vmem>>, vector<1x18x16xf32>,
    %c16_i32_165 = arith.constant 16 : i32
    %341 = arith.addi %1, %c16_i32_165 : i32
    %c0_166 = arith.constant 0 : index
    %342 = arith.index_cast %341 : i32 to index
    %c0_167 = arith.constant 0 : index
    %c0_168 = arith.constant 0 : index
    %343 = vector.load %arg2[%c0_166, %342, %c0_167, %c0_168] : memref<1x18x18x4xf32, #tpu.memory_space<vmem>>, vector<1x1x18x4xf32>
    %344 = vector.shape_cast %343 : vector<1x1x18x4xf32> to vector<18x4xf32>
    %cst_169 = arith.constant dense<0.000000e+00> : vector<18x16xf32>
    %345 = tpu.matmul %344, %2, %cst_169 {dimension_numbers = #tpu.dot_dimension_numbers<[1], [0], [0], [1], [0, 0, 1, 1], [], []>} : vector<18x4xf32>, vector<4x16xf32>, vector<18x16xf32> -> vector<18x16xf32>
    %346 = vector.broadcast %3 : vector<1x16xf32> to vector<18x16xf32>
    %347 = arith.mulf %345, %346 : vector<18x16xf32>
    %348 = vector.broadcast %4 : vector<1x16xf32> to vector<18x16xf32>
    %349 = arith.addf %347, %348 : vector<18x16xf32>
    %cst_170 = arith.constant 3.000000e+00 : f32
    %350 = vector.broadcast %cst_170 : f32 to vector<18x16xf32>
    %351 = arith.addf %349, %350 : vector<18x16xf32>
    %cst_171 = arith.constant 0.000000e+00 : f32
    %cst_172 = arith.constant 6.000000e+00 : f32
    %352 = vector.broadcast %cst_171 : f32 to vector<18x16xf32>
    %353 = arith.maximumf %352, %351 : vector<18x16xf32>
    %354 = vector.broadcast %cst_172 : f32 to vector<18x16xf32>
    %355 = arith.minimumf %354, %353 : vector<18x16xf32>
    %cst_173 = arith.constant 0.166666672 : f32
    %356 = vector.broadcast %cst_173 : f32 to vector<18x16xf32>
    %357 = arith.mulf %355, %356 : vector<18x16xf32>
    %358 = arith.mulf %349, %357 : vector<18x16xf32>
    %c16 = arith.constant 16 : index
    %c0_174 = arith.constant 0 : index
    %c0_175 = arith.constant 0 : index
    %359 = vector.load %arg11[%c16, %c0_174, %c0_175] : memref<18x18x16xf32, #tpu.memory_space<vmem>>, vector<1x18x16xf32>
    %360 = vector.shape_cast %359 : vector<1x18x16xf32> to vector<18x16xf32>
    %361 = vector.shape_cast %358 : vector<18x16xf32> to vector<1x18x16xf32>
    tpu.vector_store %arg11[%c16, %c0_174, %c0_175], %361 {strides = array<i32>} : memref<18x18x16xf32, #tpu.memory_space<vmem>>, vector<1x18x16xf32>,
    %c17_i32 = arith.constant 17 : i32
    %362 = arith.addi %1, %c17_i32 : i32
    %c0_176 = arith.constant 0 : index
    %363 = arith.index_cast %362 : i32 to index
    %c0_177 = arith.constant 0 : index
    %c0_178 = arith.constant 0 : index
    %364 = vector.load %arg2[%c0_176, %363, %c0_177, %c0_178] : memref<1x18x18x4xf32, #tpu.memory_space<vmem>>, vector<1x1x18x4xf32>
    %365 = vector.shape_cast %364 : vector<1x1x18x4xf32> to vector<18x4xf32>
    %cst_179 = arith.constant dense<0.000000e+00> : vector<18x16xf32>
    %366 = tpu.matmul %365, %2, %cst_179 {dimension_numbers = #tpu.dot_dimension_numbers<[1], [0], [0], [1], [0, 0, 1, 1], [], []>} : vector<18x4xf32>, vector<4x16xf32>, vector<18x16xf32> -> vector<18x16xf32>
    %367 = vector.broadcast %3 : vector<1x16xf32> to vector<18x16xf32>
    %368 = arith.mulf %366, %367 : vector<18x16xf32>
    %369 = vector.broadcast %4 : vector<1x16xf32> to vector<18x16xf32>
    %370 = arith.addf %368, %369 : vector<18x16xf32>
    %cst_180 = arith.constant 3.000000e+00 : f32
    %371 = vector.broadcast %cst_180 : f32 to vector<18x16xf32>
    %372 = arith.addf %370, %371 : vector<18x16xf32>
    %cst_181 = arith.constant 0.000000e+00 : f32
    %cst_182 = arith.constant 6.000000e+00 : f32
    %373 = vector.broadcast %cst_181 : f32 to vector<18x16xf32>
    %374 = arith.maximumf %373, %372 : vector<18x16xf32>
    %375 = vector.broadcast %cst_182 : f32 to vector<18x16xf32>
    %376 = arith.minimumf %375, %374 : vector<18x16xf32>
    %cst_183 = arith.constant 0.166666672 : f32
    %377 = vector.broadcast %cst_183 : f32 to vector<18x16xf32>
    %378 = arith.mulf %376, %377 : vector<18x16xf32>
    %379 = arith.mulf %370, %378 : vector<18x16xf32>
    %c17 = arith.constant 17 : index
    %c0_184 = arith.constant 0 : index
    %c0_185 = arith.constant 0 : index
    %380 = vector.load %arg11[%c17, %c0_184, %c0_185] : memref<18x18x16xf32, #tpu.memory_space<vmem>>, vector<1x18x16xf32>
    %381 = vector.shape_cast %380 : vector<1x18x16xf32> to vector<18x16xf32>
    %382 = vector.shape_cast %379 : vector<18x16xf32> to vector<1x18x16xf32>
    tpu.vector_store %arg11[%c17, %c0_184, %c0_185], %382 {strides = array<i32>} : memref<18x18x16xf32, #tpu.memory_space<vmem>>, vector<1x18x16xf32>,
    %c0_186 = arith.constant 0 : index
    %c0_187 = arith.constant 0 : index
    %383 = vector.load %arg6[%c0_186, %c0_187] : memref<9x16xf32, #tpu.memory_space<vmem>>, vector<9x16xf32>
    %cst_188 = arith.constant 0.000000e+00 : f32
    %384 = vector.broadcast %cst_188 : f32 to vector<16x16x16xf32>
    %c0_189 = arith.constant 0 : index
    %c0_190 = arith.constant 0 : index
    %c0_191 = arith.constant 0 : index
    %385 = vector.load %arg11[%c0_189, %c0_190, %c0_191] : memref<18x18x16xf32, #tpu.memory_space<vmem>>, vector<16x16x16xf32>
    %386 = vector.extract_strided_slice %383 {offsets = [0, 0], sizes = [1, 16], strides = [1, 1]} : vector<9x16xf32> to vector<1x16xf32>
    %387 = vector.shape_cast %386 : vector<1x16xf32> to vector<16xf32>
    %388 = vector.shape_cast %387 : vector<16xf32> to vector<1x1x16xf32>
    %389 = vector.broadcast %388 : vector<1x1x16xf32> to vector<16x16x16xf32>
    %390 = arith.mulf %385, %389 : vector<16x16x16xf32>
    %391 = arith.addf %384, %390 : vector<16x16x16xf32>
    %c0_192 = arith.constant 0 : index
    %c1_193 = arith.constant 1 : index
    %c0_194 = arith.constant 0 : index
    %392 = vector.load %arg11[%c0_192, %c1_193, %c0_194] : memref<18x18x16xf32, #tpu.memory_space<vmem>>, vector<16x16x16xf32>
    %393 = vector.extract_strided_slice %383 {offsets = [1, 0], sizes = [1, 16], strides = [1, 1]} : vector<9x16xf32> to vector<1x16xf32>
    %394 = vector.shape_cast %393 : vector<1x16xf32> to vector<16xf32>
    %395 = vector.shape_cast %394 : vector<16xf32> to vector<1x1x16xf32>
    %396 = vector.broadcast %395 : vector<1x1x16xf32> to vector<16x16x16xf32>
    %397 = arith.mulf %392, %396 : vector<16x16x16xf32>
    %398 = arith.addf %391, %397 : vector<16x16x16xf32>
    %c0_195 = arith.constant 0 : index
    %c2_196 = arith.constant 2 : index
    %c0_197 = arith.constant 0 : index
    %399 = vector.load %arg11[%c0_195, %c2_196, %c0_197] : memref<18x18x16xf32, #tpu.memory_space<vmem>>, vector<16x16x16xf32>
    %400 = vector.extract_strided_slice %383 {offsets = [2, 0], sizes = [1, 16], strides = [1, 1]} : vector<9x16xf32> to vector<1x16xf32>
    %401 = vector.shape_cast %400 : vector<1x16xf32> to vector<16xf32>
    %402 = vector.shape_cast %401 : vector<16xf32> to vector<1x1x16xf32>
    %403 = vector.broadcast %402 : vector<1x1x16xf32> to vector<16x16x16xf32>
    %404 = arith.mulf %399, %403 : vector<16x16x16xf32>
    %405 = arith.addf %398, %404 : vector<16x16x16xf32>
    %c1_198 = arith.constant 1 : index
    %c0_199 = arith.constant 0 : index
    %c0_200 = arith.constant 0 : index
    %406 = vector.load %arg11[%c1_198, %c0_199, %c0_200] : memref<18x18x16xf32, #tpu.memory_space<vmem>>, vector<16x16x16xf32>
    %407 = vector.extract_strided_slice %383 {offsets = [3, 0], sizes = [1, 16], strides = [1, 1]} : vector<9x16xf32> to vector<1x16xf32>
    %408 = vector.shape_cast %407 : vector<1x16xf32> to vector<16xf32>
    %409 = vector.shape_cast %408 : vector<16xf32> to vector<1x1x16xf32>
    %410 = vector.broadcast %409 : vector<1x1x16xf32> to vector<16x16x16xf32>
    %411 = arith.mulf %406, %410 : vector<16x16x16xf32>
    %412 = arith.addf %405, %411 : vector<16x16x16xf32>
    %c1_201 = arith.constant 1 : index
    %c1_202 = arith.constant 1 : index
    %c0_203 = arith.constant 0 : index
    %413 = vector.load %arg11[%c1_201, %c1_202, %c0_203] : memref<18x18x16xf32, #tpu.memory_space<vmem>>, vector<16x16x16xf32>
    %414 = vector.extract_strided_slice %383 {offsets = [4, 0], sizes = [1, 16], strides = [1, 1]} : vector<9x16xf32> to vector<1x16xf32>
    %415 = vector.shape_cast %414 : vector<1x16xf32> to vector<16xf32>
    %416 = vector.shape_cast %415 : vector<16xf32> to vector<1x1x16xf32>
    %417 = vector.broadcast %416 : vector<1x1x16xf32> to vector<16x16x16xf32>
    %418 = arith.mulf %413, %417 : vector<16x16x16xf32>
    %419 = arith.addf %412, %418 : vector<16x16x16xf32>
    %c1_204 = arith.constant 1 : index
    %c2_205 = arith.constant 2 : index
    %c0_206 = arith.constant 0 : index
    %420 = vector.load %arg11[%c1_204, %c2_205, %c0_206] : memref<18x18x16xf32, #tpu.memory_space<vmem>>, vector<16x16x16xf32>
    %421 = vector.extract_strided_slice %383 {offsets = [5, 0], sizes = [1, 16], strides = [1, 1]} : vector<9x16xf32> to vector<1x16xf32>
    %422 = vector.shape_cast %421 : vector<1x16xf32> to vector<16xf32>
    %423 = vector.shape_cast %422 : vector<16xf32> to vector<1x1x16xf32>
    %424 = vector.broadcast %423 : vector<1x1x16xf32> to vector<16x16x16xf32>
    %425 = arith.mulf %420, %424 : vector<16x16x16xf32>
    %426 = arith.addf %419, %425 : vector<16x16x16xf32>
    %c2_207 = arith.constant 2 : index
    %c0_208 = arith.constant 0 : index
    %c0_209 = arith.constant 0 : index
    %427 = vector.load %arg11[%c2_207, %c0_208, %c0_209] : memref<18x18x16xf32, #tpu.memory_space<vmem>>, vector<16x16x16xf32>
    %428 = vector.extract_strided_slice %383 {offsets = [6, 0], sizes = [1, 16], strides = [1, 1]} : vector<9x16xf32> to vector<1x16xf32>
    %429 = vector.shape_cast %428 : vector<1x16xf32> to vector<16xf32>
    %430 = vector.shape_cast %429 : vector<16xf32> to vector<1x1x16xf32>
    %431 = vector.broadcast %430 : vector<1x1x16xf32> to vector<16x16x16xf32>
    %432 = arith.mulf %427, %431 : vector<16x16x16xf32>
    %433 = arith.addf %426, %432 : vector<16x16x16xf32>
    %c2_210 = arith.constant 2 : index
    %c1_211 = arith.constant 1 : index
    %c0_212 = arith.constant 0 : index
    %434 = vector.load %arg11[%c2_210, %c1_211, %c0_212] : memref<18x18x16xf32, #tpu.memory_space<vmem>>, vector<16x16x16xf32>
    %435 = vector.extract_strided_slice %383 {offsets = [7, 0], sizes = [1, 16], strides = [1, 1]} : vector<9x16xf32> to vector<1x16xf32>
    %436 = vector.shape_cast %435 : vector<1x16xf32> to vector<16xf32>
    %437 = vector.shape_cast %436 : vector<16xf32> to vector<1x1x16xf32>
    %438 = vector.broadcast %437 : vector<1x1x16xf32> to vector<16x16x16xf32>
    %439 = arith.mulf %434, %438 : vector<16x16x16xf32>
    %440 = arith.addf %433, %439 : vector<16x16x16xf32>
    %c2_213 = arith.constant 2 : index
    %c2_214 = arith.constant 2 : index
    %c0_215 = arith.constant 0 : index
    %441 = vector.load %arg11[%c2_213, %c2_214, %c0_215] : memref<18x18x16xf32, #tpu.memory_space<vmem>>, vector<16x16x16xf32>
    %442 = vector.extract_strided_slice %383 {offsets = [8, 0], sizes = [1, 16], strides = [1, 1]} : vector<9x16xf32> to vector<1x16xf32>
    %443 = vector.shape_cast %442 : vector<1x16xf32> to vector<16xf32>
    %444 = vector.shape_cast %443 : vector<16xf32> to vector<1x1x16xf32>
    %445 = vector.broadcast %444 : vector<1x1x16xf32> to vector<16x16x16xf32>
    %446 = arith.mulf %441, %445 : vector<16x16x16xf32>
    %447 = arith.addf %440, %446 : vector<16x16x16xf32>
    %c0_216 = arith.constant 0 : index
    %c0_217 = arith.constant 0 : index
    %448 = vector.load %arg7[%c0_216, %c0_217] : memref<1x16xf32, #tpu.memory_space<vmem>>, vector<1x16xf32>
    %449 = vector.shape_cast %448 : vector<1x16xf32> to vector<1x1x16xf32>
    %450 = vector.broadcast %449 : vector<1x1x16xf32> to vector<16x16x16xf32>
    %451 = arith.mulf %447, %450 : vector<16x16x16xf32>
    %c0_218 = arith.constant 0 : index
    %c0_219 = arith.constant 0 : index
    %452 = vector.load %arg8[%c0_218, %c0_219] : memref<1x16xf32, #tpu.memory_space<vmem>>, vector<1x16xf32>
    %453 = vector.shape_cast %452 : vector<1x16xf32> to vector<1x1x16xf32>
    %454 = vector.broadcast %453 : vector<1x1x16xf32> to vector<16x16x16xf32>
    %455 = arith.addf %451, %454 : vector<16x16x16xf32>
    %cst_220 = arith.constant 3.000000e+00 : f32
    %456 = vector.broadcast %cst_220 : f32 to vector<16x16x16xf32>
    %457 = arith.addf %455, %456 : vector<16x16x16xf32>
    %cst_221 = arith.constant 0.000000e+00 : f32
    %cst_222 = arith.constant 6.000000e+00 : f32
    %458 = vector.broadcast %cst_221 : f32 to vector<16x16x16xf32>
    %459 = arith.maximumf %458, %457 : vector<16x16x16xf32>
    %460 = vector.broadcast %cst_222 : f32 to vector<16x16x16xf32>
    %461 = arith.minimumf %460, %459 : vector<16x16x16xf32>
    %cst_223 = arith.constant 0.166666672 : f32
    %462 = vector.broadcast %cst_223 : f32 to vector<16x16x16xf32>
    %463 = arith.mulf %461, %462 : vector<16x16x16xf32>
    %464 = arith.mulf %455, %463 : vector<16x16x16xf32>
    %465 = arith.truncf %464 : vector<16x16x16xf32> to vector<16x16x16xbf16>
    %c0_224 = arith.constant 0 : index
    %c0_225 = arith.constant 0 : index
    %c0_226 = arith.constant 0 : index
    %c0_227 = arith.constant 0 : index
    %466 = vector.load %arg9[%c0_224, %c0_225, %c0_226, %c0_227] : memref<1x16x16x16xbf16, #tpu.memory_space<vmem>>, vector<1x16x16x16xbf16>
    %467 = vector.shape_cast %466 : vector<1x16x16x16xbf16> to vector<16x16x16xbf16>
    %468 = vector.shape_cast %465 : vector<16x16x16xbf16> to vector<1x16x16x16xbf16>
    tpu.vector_store %arg9[%c0_224, %c0_225, %c0_226, %c0_227], %468 {strides = array<i32>} : memref<1x16x16x16xbf16, #tpu.memory_space<vmem>>, vector<1x16x16x16xbf16>,
    %cst_228 = arith.constant dense<0.000000e+00> : vector<16xf32>
    %469 = vector.multi_reduction <add>, %464, %cst_228 [0, 1] : vector<16x16x16xf32> to vector<16xf32>
    %470 = vector.shape_cast %469 : vector<16xf32> to vector<1x1x16xf32>
    %c0_i32_229 = arith.constant 0 : i32
    %471 = arith.cmpi eq, %arg1, %c0_i32_229 : i32
    %472 = arith.extui %471 : i1 to i32
    %c0_i32_230 = arith.constant 0 : i32
    %473 = arith.cmpi ne, %472, %c0_i32_230 : i32
    scf.if %473 {
      %c0_233 = arith.constant 0 : index
      %c0_234 = arith.constant 0 : index
      %c0_235 = arith.constant 0 : index
      %477 = vector.load %arg10[%c0_233, %c0_234, %c0_235] : memref<1x1x16xf32, #tpu.memory_space<vmem>>, vector<1x1x16xf32>
      tpu.vector_store %arg10[%c0_233, %c0_234, %c0_235], %470 {strides = array<i32>} : memref<1x1x16xf32, #tpu.memory_space<vmem>>, vector<1x1x16xf32>,
    } else {
    }
    %c0_i32_231 = arith.constant 0 : i32
    %474 = arith.cmpi sgt, %arg1, %c0_i32_231 : i32
    %475 = arith.extui %474 : i1 to i32
    %c0_i32_232 = arith.constant 0 : i32
    %476 = arith.cmpi ne, %475, %c0_i32_232 : i32
    scf.if %476 {
      %c0_233 = arith.constant 0 : index
      %c0_234 = arith.constant 0 : index
      %c0_235 = arith.constant 0 : index
      %477 = vector.load %arg10[%c0_233, %c0_234, %c0_235] : memref<1x1x16xf32, #tpu.memory_space<vmem>>, vector<1x1x16xf32>
      %478 = arith.addf %477, %470 : vector<1x1x16xf32>
      %c0_236 = arith.constant 0 : index
      %c0_237 = arith.constant 0 : index
      %c0_238 = arith.constant 0 : index
      %479 = vector.load %arg10[%c0_236, %c0_237, %c0_238] : memref<1x1x16xf32, #tpu.memory_space<vmem>>, vector<1x1x16xf32>
      tpu.vector_store %arg10[%c0_236, %c0_237, %c0_238], %478 {strides = array<i32>} : memref<1x1x16xf32, #tpu.memory_space<vmem>>, vector<1x1x16xf32>,
    } else {
    }
    return
  }
  func.func @transform_0(%arg0: i32, %arg1: i32) -> (i32, i32, i32, i32) {
    %c0_i32 = arith.constant 0 : i32
    %c0_i32_0 = arith.constant 0 : i32
    %c0_i32_1 = arith.constant 0 : i32
    %c0_i32_2 = arith.constant 0 : i32
    return %arg0, %c0_i32, %c0_i32_0, %c0_i32_1 : i32, i32, i32, i32
  }
  func.func @transform_1(%arg0: i32, %arg1: i32) -> (i32, i32) {
    %c0_i32 = arith.constant 0 : i32
    %c0_i32_0 = arith.constant 0 : i32
    %c0_i32_1 = arith.constant 0 : i32
    return %c0_i32, %c0_i32_0 : i32, i32
  }
  func.func @transform_2(%arg0: i32, %arg1: i32) -> (i32, i32) {
    %c0_i32 = arith.constant 0 : i32
    %c0_i32_0 = arith.constant 0 : i32
    %c0_i32_1 = arith.constant 0 : i32
    return %c0_i32, %c0_i32_0 : i32, i32
  }
  func.func @transform_3(%arg0: i32, %arg1: i32) -> (i32, i32) {
    %c0_i32 = arith.constant 0 : i32
    %c0_i32_0 = arith.constant 0 : i32
    %c0_i32_1 = arith.constant 0 : i32
    return %c0_i32, %c0_i32_0 : i32, i32
  }
  func.func @transform_4(%arg0: i32, %arg1: i32) -> (i32, i32) {
    %c0_i32 = arith.constant 0 : i32
    %c0_i32_0 = arith.constant 0 : i32
    %c0_i32_1 = arith.constant 0 : i32
    return %c0_i32, %c0_i32_0 : i32, i32
  }
  func.func @transform_5(%arg0: i32, %arg1: i32) -> (i32, i32) {
    %c0_i32 = arith.constant 0 : i32
    %c0_i32_0 = arith.constant 0 : i32
    %c0_i32_1 = arith.constant 0 : i32
    return %c0_i32, %c0_i32_0 : i32, i32
  }
  func.func @transform_6(%arg0: i32, %arg1: i32) -> (i32, i32) {
    %c0_i32 = arith.constant 0 : i32
    %c0_i32_0 = arith.constant 0 : i32
    %c0_i32_1 = arith.constant 0 : i32
    return %c0_i32, %c0_i32_0 : i32, i32
  }
  func.func @transform_7(%arg0: i32, %arg1: i32) -> (i32, i32, i32, i32) {
    %c0_i32 = arith.constant 0 : i32
    %c0_i32_0 = arith.constant 0 : i32
    %c0_i32_1 = arith.constant 0 : i32
    return %arg0, %arg1, %c0_i32, %c0_i32_0 : i32, i32, i32, i32
  }
  func.func @transform_8(%arg0: i32, %arg1: i32) -> (i32, i32, i32) {
    %c0_i32 = arith.constant 0 : i32
    %c0_i32_0 = arith.constant 0 : i32
    %c0_i32_1 = arith.constant 0 : i32
    return %arg0, %c0_i32, %c0_i32_0 : i32, i32, i32
  }
}

module attributes {stable_mosaic.version = 11 : i64} {
  func.func @_se_proj_kernel(%arg0: i32, %arg1: i32, %arg2: memref<1x256x16xbf16, #tpu.memory_space<vmem>>, %arg3: memref<1x1x16xf32, #tpu.memory_space<vmem>>, %arg4: memref<16x4xf32, #tpu.memory_space<vmem>>, %arg5: memref<1x4xf32, #tpu.memory_space<vmem>>, %arg6: memref<1x4xf32, #tpu.memory_space<vmem>>, %arg7: memref<1x256x4xf32, #tpu.memory_space<vmem>>, %arg8: memref<1x256x4xf32, #tpu.memory_space<vmem>>) attributes {dimension_semantics = [#tpu.dimension_semantics<parallel>, #tpu.dimension_semantics<parallel>], iteration_bounds = array<i64: 2, 1>, scalar_prefetch = 0 : i64, scratch_operands = 0 : i64, tpu.core_type = #tpu.core_type<tc>, window_params = [{transform_indices = @transform_0, window_bounds = array<i64: 1, 256, 16>}, {transform_indices = @transform_1, window_bounds = array<i64: 1, 1, 16>}, {pipeline_mode = #tpu.pipeline_mode<synchronous>, transform_indices = @transform_2, window_bounds = array<i64: 16, 4>}, {pipeline_mode = #tpu.pipeline_mode<synchronous>, transform_indices = @transform_3, window_bounds = array<i64: 1, 4>}, {pipeline_mode = #tpu.pipeline_mode<synchronous>, transform_indices = @transform_4, window_bounds = array<i64: 1, 4>}, {transform_indices = @transform_5, window_bounds = array<i64: 1, 256, 4>}, {transform_indices = @transform_6, window_bounds = array<i64: 1, 256, 4>}]} {
    %c0 = arith.constant 0 : index
    %c0_0 = arith.constant 0 : index
    %c0_1 = arith.constant 0 : index
    %0 = vector.load %arg2[%c0, %c0_0, %c0_1] : memref<1x256x16xbf16, #tpu.memory_space<vmem>>, vector<1x256x16xbf16>
    %1 = vector.shape_cast %0 : vector<1x256x16xbf16> to vector<256x16xbf16>
    %2 = arith.extf %1 : vector<256x16xbf16> to vector<256x16xf32>
    %c0_2 = arith.constant 0 : index
    %c0_3 = arith.constant 0 : index
    %c0_4 = arith.constant 0 : index
    %3 = vector.load %arg3[%c0_2, %c0_3, %c0_4] : memref<1x1x16xf32, #tpu.memory_space<vmem>>, vector<1x1x16xf32>
    %4 = vector.shape_cast %3 : vector<1x1x16xf32> to vector<1x16xf32>
    %5 = vector.broadcast %4 : vector<1x16xf32> to vector<256x16xf32>
    %6 = arith.mulf %2, %5 : vector<256x16xf32>
    %c0_5 = arith.constant 0 : index
    %c0_6 = arith.constant 0 : index
    %7 = vector.load %arg4[%c0_5, %c0_6] : memref<16x4xf32, #tpu.memory_space<vmem>>, vector<16x4xf32>
    %cst = arith.constant dense<0.000000e+00> : vector<256x4xf32>
    %8 = tpu.matmul %6, %7, %cst {dimension_numbers = #tpu.dot_dimension_numbers<[1], [0], [0], [1], [0, 0, 1, 1], [], []>} : vector<256x16xf32>, vector<16x4xf32>, vector<256x4xf32> -> vector<256x4xf32>
    %c0_7 = arith.constant 0 : index
    %c0_8 = arith.constant 0 : index
    %9 = vector.load %arg5[%c0_7, %c0_8] : memref<1x4xf32, #tpu.memory_space<vmem>>, vector<1x4xf32>
    %10 = vector.broadcast %9 : vector<1x4xf32> to vector<256x4xf32>
    %11 = arith.mulf %8, %10 : vector<256x4xf32>
    %c0_9 = arith.constant 0 : index
    %c0_10 = arith.constant 0 : index
    %12 = vector.load %arg6[%c0_9, %c0_10] : memref<1x4xf32, #tpu.memory_space<vmem>>, vector<1x4xf32>
    %13 = vector.broadcast %12 : vector<1x4xf32> to vector<256x4xf32>
    %14 = arith.addf %11, %13 : vector<256x4xf32>
    %c0_11 = arith.constant 0 : index
    %c0_12 = arith.constant 0 : index
    %c0_13 = arith.constant 0 : index
    %15 = vector.load %arg7[%c0_11, %c0_12, %c0_13] : memref<1x256x4xf32, #tpu.memory_space<vmem>>, vector<1x256x4xf32>
    %16 = vector.shape_cast %15 : vector<1x256x4xf32> to vector<256x4xf32>
    %17 = arith.addf %14, %16 : vector<256x4xf32>
    %c0_14 = arith.constant 0 : index
    %c0_15 = arith.constant 0 : index
    %c0_16 = arith.constant 0 : index
    %18 = vector.load %arg8[%c0_14, %c0_15, %c0_16] : memref<1x256x4xf32, #tpu.memory_space<vmem>>, vector<1x256x4xf32>
    %19 = vector.shape_cast %18 : vector<1x256x4xf32> to vector<256x4xf32>
    %20 = vector.shape_cast %17 : vector<256x4xf32> to vector<1x256x4xf32>
    tpu.vector_store %arg8[%c0_14, %c0_15, %c0_16], %20 {strides = array<i32>} : memref<1x256x4xf32, #tpu.memory_space<vmem>>, vector<1x256x4xf32>,
    return
  }
  func.func @transform_0(%arg0: i32, %arg1: i32) -> (i32, i32, i32) {
    %c0_i32 = arith.constant 0 : i32
    %c0_i32_0 = arith.constant 0 : i32
    return %arg0, %arg1, %c0_i32 : i32, i32, i32
  }
  func.func @transform_1(%arg0: i32, %arg1: i32) -> (i32, i32, i32) {
    %c0_i32 = arith.constant 0 : i32
    %c0_i32_0 = arith.constant 0 : i32
    %c0_i32_1 = arith.constant 0 : i32
    return %arg0, %c0_i32, %c0_i32_0 : i32, i32, i32
  }
  func.func @transform_2(%arg0: i32, %arg1: i32) -> (i32, i32) {
    %c0_i32 = arith.constant 0 : i32
    %c0_i32_0 = arith.constant 0 : i32
    %c0_i32_1 = arith.constant 0 : i32
    return %c0_i32, %c0_i32_0 : i32, i32
  }
  func.func @transform_3(%arg0: i32, %arg1: i32) -> (i32, i32) {
    %c0_i32 = arith.constant 0 : i32
    %c0_i32_0 = arith.constant 0 : i32
    %c0_i32_1 = arith.constant 0 : i32
    return %c0_i32, %c0_i32_0 : i32, i32
  }
  func.func @transform_4(%arg0: i32, %arg1: i32) -> (i32, i32) {
    %c0_i32 = arith.constant 0 : i32
    %c0_i32_0 = arith.constant 0 : i32
    %c0_i32_1 = arith.constant 0 : i32
    return %c0_i32, %c0_i32_0 : i32, i32
  }
  func.func @transform_5(%arg0: i32, %arg1: i32) -> (i32, i32, i32) {
    %c0_i32 = arith.constant 0 : i32
    %c0_i32_0 = arith.constant 0 : i32
    return %arg0, %arg1, %c0_i32 : i32, i32, i32
  }
  func.func @transform_6(%arg0: i32, %arg1: i32) -> (i32, i32, i32) {
    %c0_i32 = arith.constant 0 : i32
    %c0_i32_0 = arith.constant 0 : i32
    return %arg0, %arg1, %c0_i32 : i32, i32, i32
  }
}

</mosaic_0001>

<llo_original>
// kernel: inverted_residual_forward.3
$region0: #{inverted_residual_forward.3}
  #allocation0 [shape = 'u32[]', space=smem, size = 0x4, offset = 0x4, fixed_abs, tag = 'smem constant byte address 0x4 - core index']
  #allocation1 [shape = 'u32[144,128]{1,0:T(1,128)}', space=vmem, size = 0x12000, scoped, tag = 'internal scratch']
  %s0 = inlined_call_operand.vmem [shape: bf16[2,256,16], index: 0, kind: input, shape index: {}]
  %s1 = inlined_call_operand.vmem [shape: f32[2,1,16], index: 1, kind: input, shape index: {}]
  %s2 = inlined_call_operand.vmem [shape: f32[16,4], index: 2, kind: input, shape index: {}]
  %s3 = inlined_call_operand.vmem [shape: f32[1,4], index: 3, kind: input, shape index: {}]
  %s4 = inlined_call_operand.vmem [shape: f32[1,4], index: 4, kind: input, shape index: {}]
  %s5 = inlined_call_operand.vmem [shape: f32[2,256,4], index: 5, kind: input, shape index: {}]
  %s6 = inlined_call_operand.vmem [shape: f32[2,256,4], index: 6, kind: output, shape index: {}]
  %s7 = sld [smem:[#allocation0]]
  $region57: #{inverted_residual_forward.3} parent=0
    _
  %s9 = ssub.s32 1, %s7
  %s10 = scalar_select 0, %s9, %s7
  loop: start=0, step=1, limit=4
  $region2: #{inverted_residual_forward.3} parent=0 // loop_pre_header
    _
  $region3: #{inverted_residual_forward.3} parent=0 // loop_header
    %s12 = sphi 0, %s16
    %p13 = scmp.ge.s32.totalorder %s12, 4
    %s19 = sphi 0, %s31
    %s20 = sphi 0, %s27
    %s21 = sphi 0, %s19
    %s22 = sphi 0, %s20
    %s23 = sphi 0, %s21
    %s24 = sphi 0, %s22
    %s36 = sphi 0, %s38
    %s39 = sphi 0, %s36
    %s40 = sphi 0, %s39
    %s56 = sphi 0, %s40
    %s62 = sphi 0, %s64
    %s65 = sphi 0, %s62
    %s66 = sphi 0, %s65
    %s82 = sphi 0, %s66
    %s86 = sphi 0, %s86
    %s88 = sphi 0, %s86
    %s89 = sphi 0, %s88
    %s103 = sphi 0, %s89
    %s107 = sphi 0, %s107
    %s109 = sphi 0, %s107
    %s110 = sphi 0, %s109
    %s124 = sphi 0, %s110
    %s128 = sphi 0, %s128
    %s130 = sphi 0, %s128
    %s131 = sphi 0, %s130
    %s145 = sphi 0, %s131
    %s153 = sphi 0, %s155
    %s156 = sphi 0, %s153
    %s157 = sphi 0, %s156
    %s173 = sphi 0, %s157
    %s181 = sphi 0, %s183
    %s184 = sphi 0, %s181
    %s185 = sphi 0, %s184
    %s201 = sphi 0, %s185
  $region4: #{inverted_residual_forward.3} parent=0 // loop_header_branch
    %15 = sbr.rel (%p13) target = $region8
  $region5: #{inverted_residual_forward.3} parent=0 // loop_body
    %s17 = ssub.s32 %s12, 1
    %s18 = ssub.s32 %s12, 2
    %s25 = sadd.s32 1, %s20
    %p26 = scmp.ge.s32.totalorder %s25, 1
    %s27 = scalar_select %p26, 0, %s25
    %s28 = sadd.s32 1, %s19
    %s29 = scalar_select %p26, %s28, %s19
    %p30 = scmp.ge.s32.totalorder %s29, 2
    %s31 = scalar_select %p30, 0, %s29
    %s32 = ssub.s32 %s19, %s31
    %s33 = ssub.s32 %s20, %s27
    %s34 = sor.u32 %s32, %s33
    %p35 = scmp.eq.s32.totalorder %s34, 0
    %s37 = sadd.s32 %s36, 1
    %s38 = scalar_select %p35, %s36, %s37
    %p41 = pneg %p35
    %p42 = scmp.eq.s32.totalorder %s12, 1
    %p43 = por %p41, %p42
    %p44 = scmp.ne.s32.totalorder %s36, %s39
    %p45 = scmp.eq.s32.totalorder %s12, 0
    %p46 = por %p44, %p45
    %p47 = scmp.ne.s32.totalorder %s36, %s39
    %p48 = scmp.eq.s32.totalorder %s17, 1
    %p49 = por %p47, %p48
    %p50 = scmp.ne.s32.totalorder %s39, %s40
    %p51 = scmp.eq.s32.totalorder %s17, 0
    %p52 = por %p50, %p51
    %p53 = scmp.ne.s32.totalorder %s39, %s40
    %p54 = scmp.eq.s32.totalorder %s18, 1
    %p55 = por %p53, %p54
    %p57 = scmp.ne.s32.totalorder %s40, %s56
    %p58 = scmp.eq.s32.totalorder %s18, 0
    %p59 = por %p57, %p58
    %s60 = ssub.s32 %s19, %s31
    %p61 = scmp.eq.s32.totalorder %s60, 0
    %s63 = sadd.s32 %s62, 1
    %s64 = scalar_select %p61, %s62, %s63
    %p67 = pneg %p61
    %p68 = scmp.eq.s32.totalorder %s12, 1
    %p69 = por %p67, %p68
    %p70 = scmp.ne.s32.totalorder %s62, %s65
    %p71 = scmp.eq.s32.totalorder %s12, 0
    %p72 = por %p70, %p71
    %p73 = scmp.ne.s32.totalorder %s62, %s65
    %p74 = scmp.eq.s32.totalorder %s17, 1
    %p75 = por %p73, %p74
    %p76 = scmp.ne.s32.totalorder %s65, %s66
    %p77 = scmp.eq.s32.totalorder %s17, 0
    %p78 = por %p76, %p77
    %p79 = scmp.ne.s32.totalorder %s65, %s66
    %p80 = scmp.eq.s32.totalorder %s18, 1
    %p81 = por %p79, %p80
    %p83 = scmp.ne.s32.totalorder %s66, %s82
    %p84 = scmp.eq.s32.totalorder %s18, 0
    %p85 = por %p83, %p84
    %s87 = sadd.s32 %s86, 1
    %p90 = scmp.eq.s32.totalorder %s12, 1
    %p91 = scmp.ne.s32.totalorder %s86, %s88
    %p92 = scmp.eq.s32.totalorder %s12, 0
    %p93 = por %p91, %p92
    %p94 = scmp.ne.s32.totalorder %s86, %s88
    %p95 = scmp.eq.s32.totalorder %s17, 1
    %p96 = por %p94, %p95
    %p97 = scmp.ne.s32.totalorder %s88, %s89
    %p98 = scmp.eq.s32.totalorder %s17, 0
    %p99 = por %p97, %p98
    %p100 = scmp.ne.s32.totalorder %s88, %s89
    %p101 = scmp.eq.s32.totalorder %s18, 1
    %p102 = por %p100, %p101
    %p104 = scmp.ne.s32.totalorder %s89, %s103
    %p105 = scmp.eq.s32.totalorder %s18, 0
    %p106 = por %p104, %p105
    %s108 = sadd.s32 %s107, 1
    %p111 = scmp.eq.s32.totalorder %s12, 1
    %p112 = scmp.ne.s32.totalorder %s107, %s109
    %p113 = scmp.eq.s32.totalorder %s12, 0
    %p114 = por %p112, %p113
    %p115 = scmp.ne.s32.totalorder %s107, %s109
    %p116 = scmp.eq.s32.totalorder %s17, 1
    %p117 = por %p115, %p116
    %p118 = scmp.ne.s32.totalorder %s109, %s110
    %p119 = scmp.eq.s32.totalorder %s17, 0
    %p120 = por %p118, %p119
    %p121 = scmp.ne.s32.totalorder %s109, %s110
    %p122 = scmp.eq.s32.totalorder %s18, 1
    %p123 = por %p121, %p122
    %p125 = scmp.ne.s32.totalorder %s110, %s124
    %p126 = scmp.eq.s32.totalorder %s18, 0
    %p127 = por %p125, %p126
    %s129 = sadd.s32 %s128, 1
    %p132 = scmp.eq.s32.totalorder %s12, 1
    %p133 = scmp.ne.s32.totalorder %s128, %s130
    %p134 = scmp.eq.s32.totalorder %s12, 0
    %p135 = por %p133, %p134
    %p136 = scmp.ne.s32.totalorder %s128, %s130
    %p137 = scmp.eq.s32.totalorder %s17, 1
    %p138 = por %p136, %p137
    %p139 = scmp.ne.s32.totalorder %s130, %s131
    %p140 = scmp.eq.s32.totalorder %s17, 0
    %p141 = por %p139, %p140
    %p142 = scmp.ne.s32.totalorder %s130, %s131
    %p143 = scmp.eq.s32.totalorder %s18, 1
    %p144 = por %p142, %p143
    %p146 = scmp.ne.s32.totalorder %s131, %s145
    %p147 = scmp.eq.s32.totalorder %s18, 0
    %p148 = por %p146, %p147
    %s149 = ssub.s32 %s19, %s31
    %s150 = ssub.s32 %s20, %s27
    %s151 = sor.u32 %s149, %s150
    %p152 = scmp.eq.s32.totalorder %s151, 0
    %s154 = sadd.s32 %s153, 1
    %s155 = scalar_select %p152, %s153, %s154
    %p158 = pneg %p152
    %p159 = scmp.eq.s32.totalorder %s12, 1
    %p160 = por %p158, %p159
    %p161 = scmp.ne.s32.totalorder %s153, %s156
    %p162 = scmp.eq.s32.totalorder %s12, 0
    %p163 = por %p161, %p162
    %p164 = scmp.ne.s32.totalorder %s153, %s156
    %p165 = scmp.eq.s32.totalorder %s17, 1
    %p166 = por %p164, %p165
    %p167 = scmp.ne.s32.totalorder %s156, %s157
    %p168 = scmp.eq.s32.totalorder %s17, 0
    %p169 = por %p167, %p168
    %p170 = scmp.ne.s32.totalorder %s156, %s157
    %p171 = scmp.eq.s32.totalorder %s18, 1
    %p172 = por %p170, %p171
    %p174 = scmp.ne.s32.totalorder %s157, %s173
    %p175 = scmp.eq.s32.totalorder %s18, 0
    %p176 = por %p174, %p175
    %s177 = ssub.s32 %s19, %s31
    %s178 = ssub.s32 %s20, %s27
    %s179 = sor.u32 %s177, %s178
    %p180 = scmp.eq.s32.totalorder %s179, 0
    %s182 = sadd.s32 %s181, 1
    %s183 = scalar_select %p180, %s181, %s182
    %p186 = pneg %p180
    %p187 = scmp.eq.s32.totalorder %s12, 1
    %p188 = por %p186, %p187
    %p189 = scmp.ne.s32.totalorder %s181, %s184
    %p190 = scmp.eq.s32.totalorder %s12, 0
    %p191 = por %p189, %p190
    %p192 = scmp.ne.s32.totalorder %s181, %s184
    %p193 = scmp.eq.s32.totalorder %s17, 1
    %p194 = por %p192, %p193
    %p195 = scmp.ne.s32.totalorder %s184, %s185
    %p196 = scmp.eq.s32.totalorder %s17, 0
    %p197 = por %p195, %p196
    %p198 = scmp.ne.s32.totalorder %s184, %s185
    %p199 = scmp.eq.s32.totalorder %s18, 1
    %p200 = por %p198, %p199
    %p202 = scmp.ne.s32.totalorder %s185, %s201
    %p203 = scmp.eq.s32.totalorder %s18, 0
    %p204 = por %p202, %p203
    %p205 = scmp.le.s32.totalorder 1, %s12
    %p206 = scmp.lt.s32.totalorder %s12, 3
    %p207 = pnand %p205, %p206
    %p208 = pneg %p207
    // Predicated region
    $region9: #{inverted_residual_forward.3} parent=5 // pred_check
      _
    $region10: #{inverted_residual_forward.3} parent=5 // pred_check_branch
      %210 = sbr.rel (%p207) target = $region12
    $region11: #{inverted_residual_forward.3} parent=5 // pred_region
      %s211 = ssub.s32 %s12, 1
      // Predicated region
      $region13: #{inverted_residual_forward.3} parent=11 // pred_check
        %p212 = pneg %p99
      $region14: #{inverted_residual_forward.3} parent=11 // pred_check_branch
        %214 = sbr.rel (%p212) target = $region16
      $region15: #{inverted_residual_forward.3} parent=11 // pred_region
        _
      $region16: #{inverted_residual_forward.3} parent=11 // pred_fallthru
        _
      // Predicated region
      $region17: #{inverted_residual_forward.3} parent=11 // pred_check
        %p215 = pneg %p120
      $region18: #{inverted_residual_forward.3} parent=11 // pred_check_branch
        %217 = sbr.rel (%p215) target = $region20
      $region19: #{inverted_residual_forward.3} parent=11 // pred_region
        _
      $region20: #{inverted_residual_forward.3} parent=11 // pred_fallthru
        _
      // Predicated region
      $region21: #{inverted_residual_forward.3} parent=11 // pred_check
        %p218 = pneg %p141
      $region22: #{inverted_residual_forward.3} parent=11 // pred_check_branch
        %220 = sbr.rel (%p218) target = $region24
      $region23: #{inverted_residual_forward.3} parent=11 // pred_region
        _
      $region24: #{inverted_residual_forward.3} parent=11 // pred_fallthru
        _
    $region12: #{inverted_residual_forward.3} parent=5 // pred_fallthru
      _
    %p221 = scmp.lt.s32.totalorder %s12, 2
    // Predicated region
    $region25: #{inverted_residual_forward.3} parent=5 // pred_check
      %p222 = pneg %p221
    $region26: #{inverted_residual_forward.3} parent=5 // pred_check_branch
      %224 = sbr.rel (%p222) target = $region28
    $region27: #{inverted_residual_forward.3} parent=5 // pred_region
      // Predicated region
      $region29: #{inverted_residual_forward.3} parent=27 // pred_check
        %p225 = pneg %p46
      $region30: #{inverted_residual_forward.3} parent=27 // pred_check_branch
        %227 = sbr.rel (%p225) target = $region32
      $region31: #{inverted_residual_forward.3} parent=27 // pred_region
        %s228 = smul.u32 32, %s20
        %p229 = scmp.lt.s32.totalorder %s19, 1
        %s230 = scalar_select %p229, %s19, 1
        %p231 = scmp.lt.s32.totalorder %s228, 31
        %s232 = scalar_select %p231, %s228, 31
        %s233 = smul.addr %s230, 32
        %s234 = sadd.s32 %s232, %s233
        %s235 = smul.addr %s234, 4
        %s236 = scalar_lea.vmem %s0, %s235
        %s237 = smul.u32 32, %s20
      $region32: #{inverted_residual_forward.3} parent=27 // pred_fallthru
        _
      // Predicated region
      $region33: #{inverted_residual_forward.3} parent=27 // pred_check
        %p238 = pneg %p72
      $region34: #{inverted_residual_forward.3} parent=27 // pred_check_branch
        %240 = sbr.rel (%p238) target = $region36
      $region35: #{inverted_residual_forward.3} parent=27 // pred_region
        %p241 = scmp.lt.s32.totalorder %s19, 1
        %s242 = scalar_select %p241, %s19, 1
        %s243 = scalar_lea.vmem %s1, %s242
      $region36: #{inverted_residual_forward.3} parent=27 // pred_fallthru
        _
      // Predicated region
      $region37: #{inverted_residual_forward.3} parent=27 // pred_check
        %p244 = pneg %p163
      $region38: #{inverted_residual_forward.3} parent=27 // pred_check_branch
        %246 = sbr.rel (%p244) target = $region40
      $region39: #{inverted_residual_forward.3} parent=27 // pred_region
        %s247 = smul.u32 32, %s20
        %p248 = scmp.lt.s32.totalorder %s19, 1
        %s249 = scalar_select %p248, %s19, 1
        %p250 = scmp.lt.s32.totalorder %s247, 31
        %s251 = scalar_select %p250, %s247, 31
        %s252 = smul.addr %s249, 32
        %s253 = sadd.s32 %s251, %s252
        %s254 = smul.addr %s253, 8
        %s255 = scalar_lea.vmem %s5, %s254
        %s256 = smul.u32 32, %s20
      $region40: #{inverted_residual_forward.3} parent=27 // pred_fallthru
        _
    $region28: #{inverted_residual_forward.3} parent=5 // pred_fallthru
      _
    %p257 = scmp.le.s32.totalorder 1, %s12
    %p258 = scmp.lt.s32.totalorder %s12, 3
    %p259 = pnand %p257, %p258
    %p260 = pneg %p259
    // Predicated region
    $region41: #{inverted_residual_forward.3} parent=5 // pred_check
      _
    $region42: #{inverted_residual_forward.3} parent=5 // pred_check_branch
      %262 = sbr.rel (%p259) target = $region44
    $region43: #{inverted_residual_forward.3} parent=5 // pred_region
      %s263 = ssub.s32 %s12, 1
      %s264 = smul.u32 32, %s22
      %p265 = scmp.lt.s32.totalorder %s21, 1
      %s266 = scalar_select %p265, %s21, 1
      %p267 = scmp.lt.s32.totalorder %s264, 31
      %s268 = scalar_select %p267, %s264, 31
      %s269 = smul.addr %s266, 32
      %s270 = sadd.s32 %s268, %s269
      %s271 = smul.addr %s270, 4
      %s272 = scalar_lea.vmem %s0, %s271
      %p273 = pneg %p52
      %p274 = pneg %p49
      %p275 = scmp.lt.s32.totalorder %s21, 1
      %s276 = scalar_select %p275, %s21, 1
      %s277 = scalar_lea.vmem %s1, %s276
      %p278 = pneg %p78
      %p279 = pneg %p75
      %p280 = pneg %p99
      %p281 = pneg %p96
      %p282 = pneg %p120
      %p283 = pneg %p117
      %p284 = pneg %p141
      %p285 = pneg %p138
      %s286 = smul.u32 32, %s22
      %p287 = scmp.lt.s32.totalorder %s21, 1
      %s288 = scalar_select %p287, %s21, 1
      %p289 = scmp.lt.s32.totalorder %s286, 31
      %s290 = scalar_select %p289, %s286, 31
      %s291 = smul.addr %s288, 32
      %s292 = sadd.s32 %s290, %s291
      %s293 = smul.addr %s292, 8
      %s294 = scalar_lea.vmem %s5, %s293
      %p295 = pneg %p169
      %p296 = pneg %p166
      %p297 = pneg %p197
      %p298 = pneg %p194
      %s299 = smul.u32 32, %s22
      %p300 = scmp.lt.s32.totalorder %s21, 1
      %s301 = scalar_select %p300, %s21, 1
      %p302 = scmp.lt.s32.totalorder %s299, 31
      %s303 = scalar_select %p302, %s299, 31
      %s304 = smul.addr %s301, 32
      %s305 = sadd.s32 %s303, %s304
      %s306 = smul.addr %s305, 8
      %s307 = scalar_lea.vmem %s6, %s306
      %s308 = smul.u32 32, %s22
      %p309 = scmp.lt.s32.totalorder %s21, 1
      %s310 = scalar_select %p309, %s21, 1
      %p311 = scmp.lt.s32.totalorder %s308, 31
      %s312 = scalar_select %p311, %s308, 31
      %s313 = smul.addr %s310, 32
      %s314 = sadd.s32 %s312, %s313
      %s315 = smul.addr %s314, 4
      %s316 = scalar_lea.vmem %s0, %s315
      %s317 = smul.u32 32, %s22
      %p318 = scmp.lt.s32.totalorder %s21, 1
      %s319 = scalar_select %p318, %s21, 1
      %s320 = scalar_lea.vmem %s1, %s319
      %s321 = smul.u32 32, %s22
      %p322 = scmp.lt.s32.totalorder %s21, 1
      %s323 = scalar_select %p322, %s21, 1
      %p324 = scmp.lt.s32.totalorder %s321, 31
      %s325 = scalar_select %p324, %s321, 31
      %s326 = smul.addr %s323, 32
      %s327 = sadd.s32 %s325, %s326
      %s328 = smul.addr %s327, 8
      %s329 = scalar_lea.vmem %s5, %s328
      %s330 = smul.u32 32, %s22
      %s331 = smul.u32 32, %s22
      %p332 = scmp.lt.s32.totalorder %s21, 1
      %s333 = scalar_select %p332, %s21, 1
      %p334 = scmp.lt.s32.totalorder %s331, 31
      %s335 = scalar_select %p334, %s331, 31
      %s336 = smul.addr %s333, 32
      %s337 = sadd.s32 %s335, %s336
      %s338 = smul.addr %s337, 8
      %s339 = scalar_lea.vmem %s6, %s338
      %s340 = smul.u32 32, %s22
      %v341 = vld [vmem:[%s316] sm:$0xf]
      %v342 = vld [vmem:[%s316 + $0x4] sm:$0xf]
      %v343 = vld [vmem:[%s316 + $0x8] sm:$0xf]
      %v344 = vld [vmem:[%s316 + $0xc] sm:$0xf]
      %v345 = vld [vmem:[%s316 + $0x10] sm:$0xf]
      %v346 = vld [vmem:[%s316 + $0x14] sm:$0xf]
      %v347 = vld [vmem:[%s316 + $0x18] sm:$0xf]
      %v348 = vld [vmem:[%s316 + $0x1c] sm:$0xf]
      %v349 = vld [vmem:[%s316 + $0x20] sm:$0xf]
      %v350 = vld [vmem:[%s316 + $0x24] sm:$0xf]
      %v351 = vld [vmem:[%s316 + $0x28] sm:$0xf]
      %v352 = vld [vmem:[%s316 + $0x2c] sm:$0xf]
      %v353 = vld [vmem:[%s316 + $0x30] sm:$0xf]
      %v354 = vld [vmem:[%s316 + $0x34] sm:$0xf]
      %v355 = vld [vmem:[%s316 + $0x38] sm:$0xf]
      %v356 = vld [vmem:[%s316 + $0x3c] sm:$0xf]
      %v357 = vld [vmem:[%s316 + $0x40] sm:$0xf]
      %v358 = vld [vmem:[%s316 + $0x44] sm:$0xf]
      %v359 = vld [vmem:[%s316 + $0x48] sm:$0xf]
      %v360 = vld [vmem:[%s316 + $0x4c] sm:$0xf]
      %v361 = vld [vmem:[%s316 + $0x50] sm:$0xf]
      %v362 = vld [vmem:[%s316 + $0x54] sm:$0xf]
      %v363 = vld [vmem:[%s316 + $0x58] sm:$0xf]
      %v364 = vld [vmem:[%s316 + $0x5c] sm:$0xf]
      %v365 = vld [vmem:[%s316 + $0x60] sm:$0xf]
      %v366 = vld [vmem:[%s316 + $0x64] sm:$0xf]
      %v367 = vld [vmem:[%s316 + $0x68] sm:$0xf]
      %v368 = vld [vmem:[%s316 + $0x6c] sm:$0xf]
      %v369 = vld [vmem:[%s316 + $0x70] sm:$0xf]
      %v370 = vld [vmem:[%s316 + $0x74] sm:$0xf]
      %v371 = vld [vmem:[%s316 + $0x78] sm:$0xf]
      %v372 = vld [vmem:[%s316 + $0x7c] sm:$0xf]
      %v373 = vunpack.c.l.bf16 %v341
      %v374 = vunpack.c.l.bf16 %v342
      %v375 = vunpack.c.l.bf16 %v343
      %v376 = vunpack.c.l.bf16 %v344
      %v377 = vunpack.c.l.bf16 %v345
      %v378 = vunpack.c.l.bf16 %v346
      %v379 = vunpack.c.l.bf16 %v347
      %v380 = vunpack.c.l.bf16 %v348
      %v381 = vunpack.c.l.bf16 %v349
      %v382 = vunpack.c.l.bf16 %v350
      %v383 = vunpack.c.l.bf16 %v351
      %v384 = vunpack.c.l.bf16 %v352
      %v385 = vunpack.c.l.bf16 %v353
      %v386 = vunpack.c.l.bf16 %v354
      %v387 = vunpack.c.l.bf16 %v355
      %v388 = vunpack.c.l.bf16 %v356
      %v389 = vunpack.c.l.bf16 %v357
      %v390 = vunpack.c.l.bf16 %v358
      %v391 = vunpack.c.l.bf16 %v359
      %v392 = vunpack.c.l.bf16 %v360
      %v393 = vunpack.c.l.bf16 %v361
      %v394 = vunpack.c.l.bf16 %v362
      %v395 = vunpack.c.l.bf16 %v363
      %v396 = vunpack.c.l.bf16 %v364
      %v397 = vunpack.c.l.bf16 %v365
      %v398 = vunpack.c.l.bf16 %v366
      %v399 = vunpack.c.l.bf16 %v367
      %v400 = vunpack.c.l.bf16 %v368
      %v401 = vunpack.c.l.bf16 %v369
      %v402 = vunpack.c.l.bf16 %v370
      %v403 = vunpack.c.l.bf16 %v371
      %v404 = vunpack.c.l.bf16 %v372
      %v405 = vld [vmem:[%s320] sm:$0x1]
      %v407 = vlaneseq
      %v408 = vshrl.u32 %v407, 7
      %v409 = vsub.s32 0, %v408
      %v410 = vrot.slane %v405, %v409
      %v412 = vmul.f32 %v373, %v410
      %v413 = vmul.f32 %v374, %v410
      %v414 = vmul.f32 %v375, %v410
      %v415 = vmul.f32 %v376, %v410
      %v416 = vmul.f32 %v377, %v410
      %v417 = vmul.f32 %v378, %v410
      %v418 = vmul.f32 %v379, %v410
      %v419 = vmul.f32 %v380, %v410
      %v420 = vmul.f32 %v381, %v410
      %v421 = vmul.f32 %v382, %v410
      %v422 = vmul.f32 %v383, %v410
      %v423 = vmul.f32 %v384, %v410
      %v424 = vmul.f32 %v385, %v410
      %v425 = vmul.f32 %v386, %v410
      %v426 = vmul.f32 %v387, %v410
      %v427 = vmul.f32 %v388, %v410
      %v428 = vmul.f32 %v389, %v410
      %v429 = vmul.f32 %v390, %v410
      %v430 = vmul.f32 %v391, %v410
      %v431 = vmul.f32 %v392, %v410
      %v432 = vmul.f32 %v393, %v410
      %v433 = vmul.f32 %v394, %v410
      %v434 = vmul.f32 %v395, %v410
      %v435 = vmul.f32 %v396, %v410
      %v436 = vmul.f32 %v397, %v410
      %v437 = vmul.f32 %v398, %v410
      %v438 = vmul.f32 %v399, %v410
      %v439 = vmul.f32 %v400, %v410
      %v440 = vmul.f32 %v401, %v410
      %v441 = vmul.f32 %v402, %v410
      %v442 = vmul.f32 %v403, %v410
      %v443 = vmul.f32 %v404, %v410
      %v444 = vld [vmem:[%s2] sm:$0xff]
      %v445 = vld [vmem:[%s2 + $0x8] sm:$0xff]
      %vm446 = vcmask 130048
      %v448 = vsel %vm446, %v412, 0
      %v451 = vsel %vm446, %v413, 0
      %v454 = vsel %vm446, %v414, 0
      %v457 = vsel %vm446, %v415, 0
      %v460 = vsel %vm446, %v416, 0
      %v463 = vsel %vm446, %v417, 0
      %v466 = vsel %vm446, %v418, 0
      %v469 = vsel %vm446, %v419, 0
      %v472 = vsel %vm446, %v420, 0
      %v475 = vsel %vm446, %v421, 0
      %v478 = vsel %vm446, %v422, 0
      %v481 = vsel %vm446, %v423, 0
      %v484 = vsel %vm446, %v424, 0
      %v487 = vsel %vm446, %v425, 0
      %v490 = vsel %vm446, %v426, 0
      %v493 = vsel %vm446, %v427, 0
      %v496 = vsel %vm446, %v428, 0
      %v499 = vsel %vm446, %v429, 0
      %v502 = vsel %vm446, %v430, 0
      %v505 = vsel %vm446, %v431, 0
      %v508 = vsel %vm446, %v432, 0
      %v511 = vsel %vm446, %v433, 0
      %v514 = vsel %vm446, %v434, 0
      %v517 = vsel %vm446, %v435, 0
      %v520 = vsel %vm446, %v436, 0
      %v523 = vsel %vm446, %v437, 0
      %v526 = vsel %vm446, %v438, 0
      %v529 = vsel %vm446, %v439, 0
      %v532 = vsel %vm446, %v440, 0
      %v535 = vsel %vm446, %v441, 0
      %v538 = vsel %vm446, %v442, 0
      %v541 = vsel %vm446, %v443, 0
      %543 = vmatprep.subr.mxu0 0.0
      %544 = vmatpush1.msra.mxu0 %v444
      %545 = vmatprep.subr.mxu0 0.0
      %546 = vmatpush1.msra.mxu0 %v445
      %547 = vmatprep.subr.mxu0 0.0
      %548 = vmatpush1.msra.mxu0 0.0
      %549 = vmatprep.subr.mxu0 0.0
      %550 = vmatpush1.msra.mxu0 0.0
      %551 = vmatprep.subr.mxu0 0.0
      %552 = vmatpush1.msra.mxu0 0.0
      %553 = vmatprep.subr.mxu0 0.0
      %554 = vmatpush1.msra.mxu0 0.0
      %555 = vmatprep.subr.mxu0 0.0
      %556 = vmatpush1.msra.mxu0 0.0
      %557 = vmatprep.subr.mxu0 0.0
      %558 = vmatpush1.msra.mxu0 0.0
      %559 = vmatprep.subr.mxu0 0.0
      %560 = vmatpush1.msra.mxu0 0.0
      %561 = vmatprep.subr.mxu0 0.0
      %562 = vmatpush1.msra.mxu0 0.0
      %563 = vmatprep.subr.mxu0 0.0
      %564 = vmatpush1.msra.mxu0 0.0
      %565 = vmatprep.subr.mxu0 0.0
      %566 = vmatpush1.msra.mxu0 0.0
      %567 = vmatprep.subr.mxu0 0.0
      %568 = vmatpush1.msra.mxu0 0.0
      %569 = vmatprep.subr.mxu0 0.0
      %570 = vmatpush1.msra.mxu0 0.0
      %571 = vmatprep.subr.mxu0 0.0
      %572 = vmatpush1.msra.mxu0 0.0
      %573 = vmatprep.subr.mxu0 0.0
      %574 = vmatpush1.msra.mxu0 0.0
      %575 = vmatprep.subr.mxu0 0.0
      %576 = vmatpush1.msra.mxu0 0.0
      %577 = vmatprep.subr.mxu0 0.0
      %578 = vmatpush1.msra.mxu0 0.0
      %579 = vmatprep.subr.mxu0 0.0
      %580 = vmatpush1.msra.mxu0 0.0
      %581 = vmatprep.subr.mxu0 0.0
      %582 = vmatpush1.msra.mxu0 0.0
      %583 = vmatprep.subr.mxu0 0.0
      %584 = vmatpush1.msra.mxu0 0.0
      %585 = vmatprep.subr.mxu0 0.0
      %586 = vmatpush1.msra.mxu0 0.0
      %587 = vmatprep.subr.mxu0 0.0
      %588 = vmatpush1.msra.mxu0 0.0
      %589 = vmatprep.subr.mxu0 0.0
      %590 = vmatpush1.msra.mxu0 0.0
      %591 = vmatprep.subr.mxu0 0.0
      %592 = vmatpush1.msra.mxu0 0.0
      %593 = vmatprep.subr.mxu0 0.0
      %594 = vmatpush1.msra.mxu0 0.0
      %595 = vmatprep.subr.mxu0 0.0
      %596 = vmatpush1.msra.mxu0 0.0
      %597 = vmatprep.subr.mxu0 0.0
      %598 = vmatpush1.msra.mxu0 0.0
      %599 = vmatprep.subr.mxu0 0.0
      %600 = vmatpush1.msra.mxu0 0.0
      %601 = vmatprep.subr.mxu0 0.0
      %602 = vmatpush1.msra.mxu0 0.0
      %603 = vmatprep.subr.mxu0 0.0
      %604 = vmatpush1.msra.mxu0 0.0
      %605 = vmatprep.subr.mxu0 0.0
      %606 = vmatpush1.msra.mxu0 0.0
      %607 = vmatprep.mubr.f32.mxu0 0.0
      %608 = vmatmul.mubr.f32.gmra.mrb[0].mxu0 %v448
      %v609 = vpop.f32.mrb[0].mxu0
      %v610 = vadd.f32 0.0, %v609
      %v611 = vpop.f32.mrb[0].mxu0
      %612 = vmatprep.mubr.f32.mxu0 0.0
      %613 = vmatmul.mubr.f32.gmra.mrb[0].mxu0 %v451
      %v614 = vpop.f32.mrb[0].mxu0
      %v615 = vadd.f32 0.0, %v614
      %v616 = vpop.f32.mrb[0].mxu0
      %617 = vmatprep.mubr.f32.mxu0 0.0
      %618 = vmatmul.mubr.f32.gmra.mrb[0].mxu0 %v454
      %v619 = vpop.f32.mrb[0].mxu0
      %v620 = vadd.f32 0.0, %v619
      %v621 = vpop.f32.mrb[0].mxu0
      %622 = vmatprep.mubr.f32.mxu0 0.0
      %623 = vmatmul.mubr.f32.gmra.mrb[0].mxu0 %v457
      %v624 = vpop.f32.mrb[0].mxu0
      %v625 = vadd.f32 0.0, %v624
      %v626 = vpop.f32.mrb[0].mxu0
      %627 = vmatprep.mubr.f32.mxu0 0.0
      %628 = vmatmul.mubr.f32.gmra.mrb[0].mxu0 %v460
      %v629 = vpop.f32.mrb[0].mxu0
      %v630 = vadd.f32 0.0, %v629
      %v631 = vpop.f32.mrb[0].mxu0
      %632 = vmatprep.mubr.f32.mxu0 0.0
      %633 = vmatmul.mubr.f32.gmra.mrb[0].mxu0 %v463
      %v634 = vpop.f32.mrb[0].mxu0
      %v635 = vadd.f32 0.0, %v634
      %v636 = vpop.f32.mrb[0].mxu0
      %637 = vmatprep.mubr.f32.mxu0 0.0
      %638 = vmatmul.mubr.f32.gmra.mrb[0].mxu0 %v466
      %v639 = vpop.f32.mrb[0].mxu0
      %v640 = vadd.f32 0.0, %v639
      %v641 = vpop.f32.mrb[0].mxu0
      %642 = vmatprep.mubr.f32.mxu0 0.0
      %643 = vmatmul.mubr.f32.gmra.mrb[0].mxu0 %v469
      %v644 = vpop.f32.mrb[0].mxu0
      %v645 = vadd.f32 0.0, %v644
      %v646 = vpop.f32.mrb[0].mxu0
      %647 = vmatprep.mubr.f32.mxu0 0.0
      %648 = vmatmul.mubr.f32.gmra.mrb[0].mxu0 %v472
      %v649 = vpop.f32.mrb[0].mxu0
      %v650 = vadd.f32 0.0, %v649
      %v651 = vpop.f32.mrb[0].mxu0
      %652 = vmatprep.mubr.f32.mxu0 0.0
      %653 = vmatmul.mubr.f32.gmra.mrb[0].mxu0 %v475
      %v654 = vpop.f32.mrb[0].mxu0
      %v655 = vadd.f32 0.0, %v654
      %v656 = vpop.f32.mrb[0].mxu0
      %657 = vmatprep.mubr.f32.mxu0 0.0
      %658 = vmatmul.mubr.f32.gmra.mrb[0].mxu0 %v478
      %v659 = vpop.f32.mrb[0].mxu0
      %v660 = vadd.f32 0.0, %v659
      %v661 = vpop.f32.mrb[0].mxu0
      %662 = vmatprep.mubr.f32.mxu0 0.0
      %663 = vmatmul.mubr.f32.gmra.mrb[0].mxu0 %v481
      %v664 = vpop.f32.mrb[0].mxu0
      %v665 = vadd.f32 0.0, %v664
      %v666 = vpop.f32.mrb[0].mxu0
      %667 = vmatprep.mubr.f32.mxu0 0.0
      %668 = vmatmul.mubr.f32.gmra.mrb[0].mxu0 %v484
      %v669 = vpop.f32.mrb[0].mxu0
      %v670 = vadd.f32 0.0, %v669
      %v671 = vpop.f32.mrb[0].mxu0
      %672 = vmatprep.mubr.f32.mxu0 0.0
      %673 = vmatmul.mubr.f32.gmra.mrb[0].mxu0 %v487
      %v674 = vpop.f32.mrb[0].mxu0
      %v675 = vadd.f32 0.0, %v674
      %v676 = vpop.f32.mrb[0].mxu0
      %677 = vmatprep.mubr.f32.mxu0 0.0
      %678 = vmatmul.mubr.f32.gmra.mrb[0].mxu0 %v490
      %v679 = vpop.f32.mrb[0].mxu0
      %v680 = vadd.f32 0.0, %v679
      %v681 = vpop.f32.mrb[0].mxu0
      %682 = vmatprep.mubr.f32.mxu0 0.0
      %683 = vmatmul.mubr.f32.gmra.mrb[0].mxu0 %v493
      %v684 = vpop.f32.mrb[0].mxu0
      %v685 = vadd.f32 0.0, %v684
      %v686 = vpop.f32.mrb[0].mxu0
      %687 = vmatprep.mubr.f32.mxu0 0.0
      %688 = vmatmul.mubr.f32.gmra.mrb[0].mxu0 %v496
      %v689 = vpop.f32.mrb[0].mxu0
      %v690 = vadd.f32 0.0, %v689
      %v691 = vpop.f32.mrb[0].mxu0
      %692 = vmatprep.mubr.f32.mxu0 0.0
      %693 = vmatmul.mubr.f32.gmra.mrb[0].mxu0 %v499
      %v694 = vpop.f32.mrb[0].mxu0
      %v695 = vadd.f32 0.0, %v694
      %v696 = vpop.f32.mrb[0].mxu0
      %697 = vmatprep.mubr.f32.mxu0 0.0
      %698 = vmatmul.mubr.f32.gmra.mrb[0].mxu0 %v502
      %v699 = vpop.f32.mrb[0].mxu0
      %v700 = vadd.f32 0.0, %v699
      %v701 = vpop.f32.mrb[0].mxu0
      %702 = vmatprep.mubr.f32.mxu0 0.0
      %703 = vmatmul.mubr.f32.gmra.mrb[0].mxu0 %v505
      %v704 = vpop.f32.mrb[0].mxu0
      %v705 = vadd.f32 0.0, %v704
      %v706 = vpop.f32.mrb[0].mxu0
      %707 = vmatprep.mubr.f32.mxu0 0.0
      %708 = vmatmul.mubr.f32.gmra.mrb[0].mxu0 %v508
      %v709 = vpop.f32.mrb[0].mxu0
      %v710 = vadd.f32 0.0, %v709
      %v711 = vpop.f32.mrb[0].mxu0
      %712 = vmatprep.mubr.f32.mxu0 0.0
      %713 = vmatmul.mubr.f32.gmra.mrb[0].mxu0 %v511
      %v714 = vpop.f32.mrb[0].mxu0
      %v715 = vadd.f32 0.0, %v714
      %v716 = vpop.f32.mrb[0].mxu0
      %717 = vmatprep.mubr.f32.mxu0 0.0
      %718 = vmatmul.mubr.f32.gmra.mrb[0].mxu0 %v514
      %v719 = vpop.f32.mrb[0].mxu0
      %v720 = vadd.f32 0.0, %v719
      %v721 = vpop.f32.mrb[0].mxu0
      %722 = vmatprep.mubr.f32.mxu0 0.0
      %723 = vmatmul.mubr.f32.gmra.mrb[0].mxu0 %v517
      %v724 = vpop.f32.mrb[0].mxu0
      %v725 = vadd.f32 0.0, %v724
      %v726 = vpop.f32.mrb[0].mxu0
      %727 = vmatprep.mubr.f32.mxu0 0.0
      %728 = vmatmul.mubr.f32.gmra.mrb[0].mxu0 %v520
      %v729 = vpop.f32.mrb[0].mxu0
      %v730 = vadd.f32 0.0, %v729
      %v731 = vpop.f32.mrb[0].mxu0
      %732 = vmatprep.mubr.f32.mxu0 0.0
      %733 = vmatmul.mubr.f32.gmra.mrb[0].mxu0 %v523
      %v734 = vpop.f32.mrb[0].mxu0
      %v735 = vadd.f32 0.0, %v734
      %v736 = vpop.f32.mrb[0].mxu0
      %737 = vmatprep.mubr.f32.mxu0 0.0
      %738 = vmatmul.mubr.f32.gmra.mrb[0].mxu0 %v526
      %v739 = vpop.f32.mrb[0].mxu0
      %v740 = vadd.f32 0.0, %v739
      %v741 = vpop.f32.mrb[0].mxu0
      %742 = vmatprep.mubr.f32.mxu0 0.0
      %743 = vmatmul.mubr.f32.gmra.mrb[0].mxu0 %v529
      %v744 = vpop.f32.mrb[0].mxu0
      %v745 = vadd.f32 0.0, %v744
      %v746 = vpop.f32.mrb[0].mxu0
      %747 = vmatprep.mubr.f32.mxu0 0.0
      %748 = vmatmul.mubr.f32.gmra.mrb[0].mxu0 %v532
      %v749 = vpop.f32.mrb[0].mxu0
      %v750 = vadd.f32 0.0, %v749
      %v751 = vpop.f32.mrb[0].mxu0
      %752 = vmatprep.mubr.f32.mxu0 0.0
      %753 = vmatmul.mubr.f32.gmra.mrb[0].mxu0 %v535
      %v754 = vpop.f32.mrb[0].mxu0
      %v755 = vadd.f32 0.0, %v754
      %v756 = vpop.f32.mrb[0].mxu0
      %757 = vmatprep.mubr.f32.mxu0 0.0
      %758 = vmatmul.mubr.f32.gmra.mrb[0].mxu0 %v538
      %v759 = vpop.f32.mrb[0].mxu0
      %v760 = vadd.f32 0.0, %v759
      %v761 = vpop.f32.mrb[0].mxu0
      %762 = vmatprep.mubr.f32.mxu0 0.0
      %763 = vmatmul.mubr.f32.gmra.mrb[0].mxu0 %v541
      %v764 = vpop.f32.mrb[0].mxu0
      %v765 = vadd.f32 0.0, %v764
      %v766 = vpop.f32.mrb[0].mxu0
      %767 = vdwg.mxu0
      %v768 = vld [vmem:[%s3] sm:$0x1]
      %v770 = vlaneseq
      %v771 = vshrl.u32 %v770, 7
      %v772 = vsub.s32 0, %v771
      %v773 = vrot.slane %v768, %v772
      %v775 = vmul.f32 %v610, %v773
      %v776 = vmul.f32 %v615, %v773
      %v777 = vmul.f32 %v620, %v773
      %v778 = vmul.f32 %v625, %v773
      %v779 = vmul.f32 %v630, %v773
      %v780 = vmul.f32 %v635, %v773
      %v781 = vmul.f32 %v640, %v773
      %v782 = vmul.f32 %v645, %v773
      %v783 = vmul.f32 %v650, %v773
      %v784 = vmul.f32 %v655, %v773
      %v785 = vmul.f32 %v660, %v773
      %v786 = vmul.f32 %v665, %v773
      %v787 = vmul.f32 %v670, %v773
      %v788 = vmul.f32 %v675, %v773
      %v789 = vmul.f32 %v680, %v773
      %v790 = vmul.f32 %v685, %v773
      %v791 = vmul.f32 %v690, %v773
      %v792 = vmul.f32 %v695, %v773
      %v793 = vmul.f32 %v700, %v773
      %v794 = vmul.f32 %v705, %v773
      %v795 = vmul.f32 %v710, %v773
      %v796 = vmul.f32 %v715, %v773
      %v797 = vmul.f32 %v720, %v773
      %v798 = vmul.f32 %v725, %v773
      %v799 = vmul.f32 %v730, %v773
      %v800 = vmul.f32 %v735, %v773
      %v801 = vmul.f32 %v740, %v773
      %v802 = vmul.f32 %v745, %v773
      %v803 = vmul.f32 %v750, %v773
      %v804 = vmul.f32 %v755, %v773
      %v805 = vmul.f32 %v760, %v773
      %v806 = vmul.f32 %v765, %v773
      %v807 = vld [vmem:[%s4] sm:$0x1]
      %v809 = vlaneseq
      %v810 = vshrl.u32 %v809, 7
      %v811 = vsub.s32 0, %v810
      %v812 = vrot.slane %v807, %v811
      %v814 = vadd.f32 %v775, %v812
      %v815 = vadd.f32 %v776, %v812
      %v816 = vadd.f32 %v777, %v812
      %v817 = vadd.f32 %v778, %v812
      %v818 = vadd.f32 %v779, %v812
      %v819 = vadd.f32 %v780, %v812
      %v820 = vadd.f32 %v781, %v812
      %v821 = vadd.f32 %v782, %v812
      %v822 = vadd.f32 %v783, %v812
      %v823 = vadd.f32 %v784, %v812
      %v824 = vadd.f32 %v785, %v812
      %v825 = vadd.f32 %v786, %v812
      %v826 = vadd.f32 %v787, %v812
      %v827 = vadd.f32 %v788, %v812
      %v828 = vadd.f32 %v789, %v812
      %v829 = vadd.f32 %v790, %v812
      %v830 = vadd.f32 %v791, %v812
      %v831 = vadd.f32 %v792, %v812
      %v832 = vadd.f32 %v793, %v812
      %v833 = vadd.f32 %v794, %v812
      %v834 = vadd.f32 %v795, %v812
      %v835 = vadd.f32 %v796, %v812
      %v836 = vadd.f32 %v797, %v812
      %v837 = vadd.f32 %v798, %v812
      %v838 = vadd.f32 %v799, %v812
      %v839 = vadd.f32 %v800, %v812
      %v840 = vadd.f32 %v801, %v812
      %v841 = vadd.f32 %v802, %v812
      %v842 = vadd.f32 %v803, %v812
      %v843 = vadd.f32 %v804, %v812
      %v844 = vadd.f32 %v805, %v812
      %v845 = vadd.f32 %v806, %v812
      %v846 = vld [vmem:[%s329] sm:$0xff]
      %v847 = vld [vmem:[%s329 + $0x8] sm:$0xff]
      %v848 = vld [vmem:[%s329 + $0x10] sm:$0xff]
      %v849 = vld [vmem:[%s329 + $0x18] sm:$0xff]
      %v850 = vld [vmem:[%s329 + $0x20] sm:$0xff]
      %v851 = vld [vmem:[%s329 + $0x28] sm:$0xff]
      %v852 = vld [vmem:[%s329 + $0x30] sm:$0xff]
      %v853 = vld [vmem:[%s329 + $0x38] sm:$0xff]
      %v854 = vld [vmem:[%s329 + $0x40] sm:$0xff]
      %v855 = vld [vmem:[%s329 + $0x48] sm:$0xff]
      %v856 = vld [vmem:[%s329 + $0x50] sm:$0xff]
      %v857 = vld [vmem:[%s329 + $0x58] sm:$0xff]
      %v858 = vld [vmem:[%s329 + $0x60] sm:$0xff]
      %v859 = vld [vmem:[%s329 + $0x68] sm:$0xff]
      %v860 = vld [vmem:[%s329 + $0x70] sm:$0xff]
      %v861 = vld [vmem:[%s329 + $0x78] sm:$0xff]
      %v862 = vld [vmem:[%s329 + $0x80] sm:$0xff]
      %v863 = vld [vmem:[%s329 + $0x88] sm:$0xff]
      %v864 = vld [vmem:[%s329 + $0x90] sm:$0xff]
      %v865 = vld [vmem:[%s329 + $0x98] sm:$0xff]
      %v866 = vld [vmem:[%s329 + $0xa0] sm:$0xff]
      %v867 = vld [vmem:[%s329 + $0xa8] sm:$0xff]
      %v868 = vld [vmem:[%s329 + $0xb0] sm:$0xff]
      %v869 = vld [vmem:[%s329 + $0xb8] sm:$0xff]
      %v870 = vld [vmem:[%s329 + $0xc0] sm:$0xff]
      %v871 = vld [vmem:[%s329 + $0xc8] sm:$0xff]
      %v872 = vld [vmem:[%s329 + $0xd0] sm:$0xff]
      %v873 = vld [vmem:[%s329 + $0xd8] sm:$0xff]
      %v874 = vld [vmem:[%s329 + $0xe0] sm:$0xff]
      %v875 = vld [vmem:[%s329 + $0xe8] sm:$0xff]
      %v876 = vld [vmem:[%s329 + $0xf0] sm:$0xff]
      %v877 = vld [vmem:[%s329 + $0xf8] sm:$0xff]
      %v878 = vadd.f32 %v814, %v846
      %v879 = vadd.f32 %v815, %v847
      %v880 = vadd.f32 %v816, %v848
      %v881 = vadd.f32 %v817, %v849
      %v882 = vadd.f32 %v818, %v850
      %v883 = vadd.f32 %v819, %v851
      %v884 = vadd.f32 %v820, %v852
      %v885 = vadd.f32 %v821, %v853
      %v886 = vadd.f32 %v822, %v854
      %v887 = vadd.f32 %v823, %v855
      %v888 = vadd.f32 %v824, %v856
      %v889 = vadd.f32 %v825, %v857
      %v890 = vadd.f32 %v826, %v858
      %v891 = vadd.f32 %v827, %v859
      %v892 = vadd.f32 %v828, %v860
      %v893 = vadd.f32 %v829, %v861
      %v894 = vadd.f32 %v830, %v862
      %v895 = vadd.f32 %v831, %v863
      %v896 = vadd.f32 %v832, %v864
      %v897 = vadd.f32 %v833, %v865
      %v898 = vadd.f32 %v834, %v866
      %v899 = vadd.f32 %v835, %v867
      %v900 = vadd.f32 %v836, %v868
      %v901 = vadd.f32 %v837, %v869
      %v902 = vadd.f32 %v838, %v870
      %v903 = vadd.f32 %v839, %v871
      %v904 = vadd.f32 %v840, %v872
      %v905 = vadd.f32 %v841, %v873
      %v906 = vadd.f32 %v842, %v874
      %v907 = vadd.f32 %v843, %v875
      %v908 = vadd.f32 %v844, %v876
      %v909 = vadd.f32 %v845, %v877
      %vm910 = vcmask 31744
      %911 = vst.msk [vmem:[%s339] sm:$0xff] %vm910, %v878
      %912 = vst.msk [vmem:[%s339 + $0x8] sm:$0xff] %vm910, %v879
      %913 = vst.msk [vmem:[%s339 + $0x10] sm:$0xff] %vm910, %v880
      %914 = vst.msk [vmem:[%s339 + $0x18] sm:$0xff] %vm910, %v881
      %915 = vst.msk [vmem:[%s339 + $0x20] sm:$0xff] %vm910, %v882
      %916 = vst.msk [vmem:[%s339 + $0x28] sm:$0xff] %vm910, %v883
      %917 = vst.msk [vmem:[%s339 + $0x30] sm:$0xff] %vm910, %v884
      %918 = vst.msk [vmem:[%s339 + $0x38] sm:$0xff] %vm910, %v885
      %919 = vst.msk [vmem:[%s339 + $0x40] sm:$0xff] %vm910, %v886
      %920 = vst.msk [vmem:[%s339 + $0x48] sm:$0xff] %vm910, %v887
      %921 = vst.msk [vmem:[%s339 + $0x50] sm:$0xff] %vm910, %v888
      %922 = vst.msk [vmem:[%s339 + $0x58] sm:$0xff] %vm910, %v889
      %923 = vst.msk [vmem:[%s339 + $0x60] sm:$0xff] %vm910, %v890
      %924 = vst.msk [vmem:[%s339 + $0x68] sm:$0xff] %vm910, %v891
      %925 = vst.msk [vmem:[%s339 + $0x70] sm:$0xff] %vm910, %v892
      %926 = vst.msk [vmem:[%s339 + $0x78] sm:$0xff] %vm910, %v893
      %927 = vst.msk [vmem:[%s339 + $0x80] sm:$0xff] %vm910, %v894
      %928 = vst.msk [vmem:[%s339 + $0x88] sm:$0xff] %vm910, %v895
      %929 = vst.msk [vmem:[%s339 + $0x90] sm:$0xff] %vm910, %v896
      %930 = vst.msk [vmem:[%s339 + $0x98] sm:$0xff] %vm910, %v897
      %931 = vst.msk [vmem:[%s339 + $0xa0] sm:$0xff] %vm910, %v898
      %932 = vst.msk [vmem:[%s339 + $0xa8] sm:$0xff] %vm910, %v899
      %933 = vst.msk [vmem:[%s339 + $0xb0] sm:$0xff] %vm910, %v900
      %934 = vst.msk [vmem:[%s339 + $0xb8] sm:$0xff] %vm910, %v901
      %935 = vst.msk [vmem:[%s339 + $0xc0] sm:$0xff] %vm910, %v902
      %936 = vst.msk [vmem:[%s339 + $0xc8] sm:$0xff] %vm910, %v903
      %937 = vst.msk [vmem:[%s339 + $0xd0] sm:$0xff] %vm910, %v904
      %938 = vst.msk [vmem:[%s339 + $0xd8] sm:$0xff] %vm910, %v905
      %939 = vst.msk [vmem:[%s339 + $0xe0] sm:$0xff] %vm910, %v906
      %940 = vst.msk [vmem:[%s339 + $0xe8] sm:$0xff] %vm910, %v907
      %941 = vst.msk [vmem:[%s339 + $0xf0] sm:$0xff] %vm910, %v908
      %942 = vst.msk [vmem:[%s339 + $0xf8] sm:$0xff] %vm910, %v909
      %s943 = smul.u32 32, %s22
      %p944 = scmp.lt.s32.totalorder %s21, 1
      %s945 = scalar_select %p944, %s21, 1
      %p946 = scmp.lt.s32.totalorder %s943, 31
      %s947 = scalar_select %p946, %s943, 31
      %s948 = smul.addr %s945, 32
      %s949 = sadd.s32 %s947, %s948
      %s950 = smul.addr %s949, 8
      %s951 = scalar_lea.vmem %s6, %s950
      // Predicated region
      $region45: #{inverted_residual_forward.3} parent=43 // pred_check
        %p952 = pneg %p194
      $region46: #{inverted_residual_forward.3} parent=43 // pred_check_branch
        %954 = sbr.rel (%p952) target = $region48
      $region47: #{inverted_residual_forward.3} parent=43 // pred_region
        %s955 = smul.u32 32, %s22
      $region48: #{inverted_residual_forward.3} parent=43 // pred_fallthru
        _
    $region44: #{inverted_residual_forward.3} parent=5 // pred_fallthru
      _
    %p956 = scmp.le.s32.totalorder 2, %s12
    // Predicated region
    $region49: #{inverted_residual_forward.3} parent=5 // pred_check
      %p957 = pneg %p956
    $region50: #{inverted_residual_forward.3} parent=5 // pred_check_branch
      %959 = sbr.rel (%p957) target = $region52
    $region51: #{inverted_residual_forward.3} parent=5 // pred_region
      %s960 = ssub.s32 %s12, 2
      // Predicated region
      $region53: #{inverted_residual_forward.3} parent=51 // pred_check
        %p961 = pneg %p200
      $region54: #{inverted_residual_forward.3} parent=51 // pred_check_branch
        %963 = sbr.rel (%p961) target = $region56
      $region55: #{inverted_residual_forward.3} parent=51 // pred_region
        %s964 = smul.u32 32, %s24
        %p965 = scmp.lt.s32.totalorder %s23, 1
        %s966 = scalar_select %p965, %s23, 1
        %p967 = scmp.lt.s32.totalorder %s964, 31
        %s968 = scalar_select %p967, %s964, 31
        %s969 = smul.addr %s966, 32
        %s970 = sadd.s32 %s968, %s969
        %s971 = smul.addr %s970, 8
        %s972 = scalar_lea.vmem %s6, %s971
      $region56: #{inverted_residual_forward.3} parent=51 // pred_fallthru
        _
    $region52: #{inverted_residual_forward.3} parent=5 // pred_fallthru
      _
  $region6: #{inverted_residual_forward.3} parent=0 // loop_footer
    %s16 = sadd.s32 1, %s12
  $region7: #{inverted_residual_forward.3} parent=0 // loop_footer_branch
    %11 = sbr.rel target = $region3
  $region8: #{inverted_residual_forward.3} parent=0 // loop_exit
    _

// kernel: inverted_residual_forward.2
$region0: #{inverted_residual_forward.2}
  #allocation0 [shape = 'u32[]', space=smem, size = 0x4, offset = 0x4, fixed_abs, tag = 'smem constant byte address 0x4 - core index']
  #allocation1 [shape = 'u32[144,128]{1,0:T(1,128)}', space=vmem, size = 0x12000, scoped, tag = 'internal scratch']
  #allocation2 [shape = 'f32[18,18,16]{2,1,0:T(8,128)}', space=vmem, size = 0x36000, scoped, tag = 'scratch operand']
  %s0 = inlined_call_operand.vmem [shape: f32[2,18,18,4], index: 0, kind: input, shape index: {}]
  %s1 = inlined_call_operand.vmem [shape: f32[4,16], index: 1, kind: input, shape index: {}]
  %s2 = inlined_call_operand.vmem [shape: f32[1,16], index: 2, kind: input, shape index: {}]
  %s3 = inlined_call_operand.vmem [shape: f32[1,16], index: 3, kind: input, shape index: {}]
  %s4 = inlined_call_operand.vmem [shape: f32[9,16], index: 4, kind: input, shape index: {}]
  %s5 = inlined_call_operand.vmem [shape: f32[1,16], index: 5, kind: input, shape index: {}]
  %s6 = inlined_call_operand.vmem [shape: f32[1,16], index: 6, kind: input, shape index: {}]
  %s7 = inlined_call_operand.vmem [shape: bf16[2,16,16,16], index: 7, kind: output, shape index: {0}]
  %s8 = inlined_call_operand.vmem [shape: f32[2,1,16], index: 8, kind: output, shape index: {1}]
  %9 = xla_tuple %s7, %s8
  %s10 = sld [smem:[#allocation0]]
  $region77: #{inverted_residual_forward.2} parent=0
    _
  %s12 = ssub.s32 1, %s10
  %s13 = scalar_select 0, %s12, %s10
  loop: start=0, step=1, limit=4
  $region2: #{inverted_residual_forward.2} parent=0 // loop_pre_header
    _
  $region3: #{inverted_residual_forward.2} parent=0 // loop_header
    %s15 = sphi 0, %s19
    %p16 = scmp.ge.s32.totalorder %s15, 4
    %s22 = sphi 0, %s34
    %s23 = sphi 0, %s30
    %s24 = sphi 0, %s22
    %s25 = sphi 0, %s23
    %s26 = sphi 0, %s24
    %s27 = sphi 0, %s25
    %s37 = sphi 0, %s39
    %s40 = sphi 0, %s37
    %s41 = sphi 0, %s40
    %s57 = sphi 0, %s41
    %s61 = sphi 0, %s61
    %s63 = sphi 0, %s61
    %s64 = sphi 0, %s63
    %s78 = sphi 0, %s64
    %s82 = sphi 0, %s82
    %s84 = sphi 0, %s82
    %s85 = sphi 0, %s84
    %s99 = sphi 0, %s85
    %s103 = sphi 0, %s103
    %s105 = sphi 0, %s103
    %s106 = sphi 0, %s105
    %s120 = sphi 0, %s106
    %s124 = sphi 0, %s124
    %s126 = sphi 0, %s124
    %s127 = sphi 0, %s126
    %s141 = sphi 0, %s127
    %s145 = sphi 0, %s145
    %s147 = sphi 0, %s145
    %s148 = sphi 0, %s147
    %s162 = sphi 0, %s148
    %s166 = sphi 0, %s166
    %s168 = sphi 0, %s166
    %s169 = sphi 0, %s168
    %s183 = sphi 0, %s169
    %s191 = sphi 0, %s193
    %s194 = sphi 0, %s191
    %s195 = sphi 0, %s194
    %s211 = sphi 0, %s195
    %s217 = sphi 0, %s219
    %s220 = sphi 0, %s217
    %s221 = sphi 0, %s220
    %s237 = sphi 0, %s221
  $region4: #{inverted_residual_forward.2} parent=0 // loop_header_branch
    %18 = sbr.rel (%p16) target = $region8
  $region5: #{inverted_residual_forward.2} parent=0 // loop_body
    %s20 = ssub.s32 %s15, 1
    %s21 = ssub.s32 %s15, 2
    %s28 = sadd.s32 1, %s23
    %p29 = scmp.ge.s32.totalorder %s28, 1
    %s30 = scalar_select %p29, 0, %s28
    %s31 = sadd.s32 1, %s22
    %s32 = scalar_select %p29, %s31, %s22
    %p33 = scmp.ge.s32.totalorder %s32, 2
    %s34 = scalar_select %p33, 0, %s32
    %s35 = ssub.s32 %s22, %s34
    %p36 = scmp.eq.s32.totalorder %s35, 0
    %s38 = sadd.s32 %s37, 1
    %s39 = scalar_select %p36, %s37, %s38
    %p42 = pneg %p36
    %p43 = scmp.eq.s32.totalorder %s15, 1
    %p44 = por %p42, %p43
    %p45 = scmp.ne.s32.totalorder %s37, %s40
    %p46 = scmp.eq.s32.totalorder %s15, 0
    %p47 = por %p45, %p46
    %p48 = scmp.ne.s32.totalorder %s37, %s40
    %p49 = scmp.eq.s32.totalorder %s20, 1
    %p50 = por %p48, %p49
    %p51 = scmp.ne.s32.totalorder %s40, %s41
    %p52 = scmp.eq.s32.totalorder %s20, 0
    %p53 = por %p51, %p52
    %p54 = scmp.ne.s32.totalorder %s40, %s41
    %p55 = scmp.eq.s32.totalorder %s21, 1
    %p56 = por %p54, %p55
    %p58 = scmp.ne.s32.totalorder %s41, %s57
    %p59 = scmp.eq.s32.totalorder %s21, 0
    %p60 = por %p58, %p59
    %s62 = sadd.s32 %s61, 1
    %p65 = scmp.eq.s32.totalorder %s15, 1
    %p66 = scmp.ne.s32.totalorder %s61, %s63
    %p67 = scmp.eq.s32.totalorder %s15, 0
    %p68 = por %p66, %p67
    %p69 = scmp.ne.s32.totalorder %s61, %s63
    %p70 = scmp.eq.s32.totalorder %s20, 1
    %p71 = por %p69, %p70
    %p72 = scmp.ne.s32.totalorder %s63, %s64
    %p73 = scmp.eq.s32.totalorder %s20, 0
    %p74 = por %p72, %p73
    %p75 = scmp.ne.s32.totalorder %s63, %s64
    %p76 = scmp.eq.s32.totalorder %s21, 1
    %p77 = por %p75, %p76
    %p79 = scmp.ne.s32.totalorder %s64, %s78
    %p80 = scmp.eq.s32.totalorder %s21, 0
    %p81 = por %p79, %p80
    %s83 = sadd.s32 %s82, 1
    %p86 = scmp.eq.s32.totalorder %s15, 1
    %p87 = scmp.ne.s32.totalorder %s82, %s84
    %p88 = scmp.eq.s32.totalorder %s15, 0
    %p89 = por %p87, %p88
    %p90 = scmp.ne.s32.totalorder %s82, %s84
    %p91 = scmp.eq.s32.totalorder %s20, 1
    %p92 = por %p90, %p91
    %p93 = scmp.ne.s32.totalorder %s84, %s85
    %p94 = scmp.eq.s32.totalorder %s20, 0
    %p95 = por %p93, %p94
    %p96 = scmp.ne.s32.totalorder %s84, %s85
    %p97 = scmp.eq.s32.totalorder %s21, 1
    %p98 = por %p96, %p97
    %p100 = scmp.ne.s32.totalorder %s85, %s99
    %p101 = scmp.eq.s32.totalorder %s21, 0
    %p102 = por %p100, %p101
    %s104 = sadd.s32 %s103, 1
    %p107 = scmp.eq.s32.totalorder %s15, 1
    %p108 = scmp.ne.s32.totalorder %s103, %s105
    %p109 = scmp.eq.s32.totalorder %s15, 0
    %p110 = por %p108, %p109
    %p111 = scmp.ne.s32.totalorder %s103, %s105
    %p112 = scmp.eq.s32.totalorder %s20, 1
    %p113 = por %p111, %p112
    %p114 = scmp.ne.s32.totalorder %s105, %s106
    %p115 = scmp.eq.s32.totalorder %s20, 0
    %p116 = por %p114, %p115
    %p117 = scmp.ne.s32.totalorder %s105, %s106
    %p118 = scmp.eq.s32.totalorder %s21, 1
    %p119 = por %p117, %p118
    %p121 = scmp.ne.s32.totalorder %s106, %s120
    %p122 = scmp.eq.s32.totalorder %s21, 0
    %p123 = por %p121, %p122
    %s125 = sadd.s32 %s124, 1
    %p128 = scmp.eq.s32.totalorder %s15, 1
    %p129 = scmp.ne.s32.totalorder %s124, %s126
    %p130 = scmp.eq.s32.totalorder %s15, 0
    %p131 = por %p129, %p130
    %p132 = scmp.ne.s32.totalorder %s124, %s126
    %p133 = scmp.eq.s32.totalorder %s20, 1
    %p134 = por %p132, %p133
    %p135 = scmp.ne.s32.totalorder %s126, %s127
    %p136 = scmp.eq.s32.totalorder %s20, 0
    %p137 = por %p135, %p136
    %p138 = scmp.ne.s32.totalorder %s126, %s127
    %p139 = scmp.eq.s32.totalorder %s21, 1
    %p140 = por %p138, %p139
    %p142 = scmp.ne.s32.totalorder %s127, %s141
    %p143 = scmp.eq.s32.totalorder %s21, 0
    %p144 = por %p142, %p143
    %s146 = sadd.s32 %s145, 1
    %p149 = scmp.eq.s32.totalorder %s15, 1
    %p150 = scmp.ne.s32.totalorder %s145, %s147
    %p151 = scmp.eq.s32.totalorder %s15, 0
    %p152 = por %p150, %p151
    %p153 = scmp.ne.s32.totalorder %s145, %s147
    %p154 = scmp.eq.s32.totalorder %s20, 1
    %p155 = por %p153, %p154
    %p156 = scmp.ne.s32.totalorder %s147, %s148
    %p157 = scmp.eq.s32.totalorder %s20, 0
    %p158 = por %p156, %p157
    %p159 = scmp.ne.s32.totalorder %s147, %s148
    %p160 = scmp.eq.s32.totalorder %s21, 1
    %p161 = por %p159, %p160
    %p163 = scmp.ne.s32.totalorder %s148, %s162
    %p164 = scmp.eq.s32.totalorder %s21, 0
    %p165 = por %p163, %p164
    %s167 = sadd.s32 %s166, 1
    %p170 = scmp.eq.s32.totalorder %s15, 1
    %p171 = scmp.ne.s32.totalorder %s166, %s168
    %p172 = scmp.eq.s32.totalorder %s15, 0
    %p173 = por %p171, %p172
    %p174 = scmp.ne.s32.totalorder %s166, %s168
    %p175 = scmp.eq.s32.totalorder %s20, 1
    %p176 = por %p174, %p175
    %p177 = scmp.ne.s32.totalorder %s168, %s169
    %p178 = scmp.eq.s32.totalorder %s20, 0
    %p179 = por %p177, %p178
    %p180 = scmp.ne.s32.totalorder %s168, %s169
    %p181 = scmp.eq.s32.totalorder %s21, 1
    %p182 = por %p180, %p181
    %p184 = scmp.ne.s32.totalorder %s169, %s183
    %p185 = scmp.eq.s32.totalorder %s21, 0
    %p186 = por %p184, %p185
    %s187 = ssub.s32 %s22, %s34
    %s188 = ssub.s32 %s23, %s30
    %s189 = sor.u32 %s187, %s188
    %p190 = scmp.eq.s32.totalorder %s189, 0
    %s192 = sadd.s32 %s191, 1
    %s193 = scalar_select %p190, %s191, %s192
    %p196 = pneg %p190
    %p197 = scmp.eq.s32.totalorder %s15, 1
    %p198 = por %p196, %p197
    %p199 = scmp.ne.s32.totalorder %s191, %s194
    %p200 = scmp.eq.s32.totalorder %s15, 0
    %p201 = por %p199, %p200
    %p202 = scmp.ne.s32.totalorder %s191, %s194
    %p203 = scmp.eq.s32.totalorder %s20, 1
    %p204 = por %p202, %p203
    %p205 = scmp.ne.s32.totalorder %s194, %s195
    %p206 = scmp.eq.s32.totalorder %s20, 0
    %p207 = por %p205, %p206
    %p208 = scmp.ne.s32.totalorder %s194, %s195
    %p209 = scmp.eq.s32.totalorder %s21, 1
    %p210 = por %p208, %p209
    %p212 = scmp.ne.s32.totalorder %s195, %s211
    %p213 = scmp.eq.s32.totalorder %s21, 0
    %p214 = por %p212, %p213
    %s215 = ssub.s32 %s22, %s34
    %p216 = scmp.eq.s32.totalorder %s215, 0
    %s218 = sadd.s32 %s217, 1
    %s219 = scalar_select %p216, %s217, %s218
    %p222 = pneg %p216
    %p223 = scmp.eq.s32.totalorder %s15, 1
    %p224 = por %p222, %p223
    %p225 = scmp.ne.s32.totalorder %s217, %s220
    %p226 = scmp.eq.s32.totalorder %s15, 0
    %p227 = por %p225, %p226
    %p228 = scmp.ne.s32.totalorder %s217, %s220
    %p229 = scmp.eq.s32.totalorder %s20, 1
    %p230 = por %p228, %p229
    %p231 = scmp.ne.s32.totalorder %s220, %s221
    %p232 = scmp.eq.s32.totalorder %s20, 0
    %p233 = por %p231, %p232
    %p234 = scmp.ne.s32.totalorder %s220, %s221
    %p235 = scmp.eq.s32.totalorder %s21, 1
    %p236 = por %p234, %p235
    %p238 = scmp.ne.s32.totalorder %s221, %s237
    %p239 = scmp.eq.s32.totalorder %s21, 0
    %p240 = por %p238, %p239
    %p241 = scmp.le.s32.totalorder 1, %s15
    %p242 = scmp.lt.s32.totalorder %s15, 3
    %p243 = pnand %p241, %p242
    %p244 = pneg %p243
    // Predicated region
    $region9: #{inverted_residual_forward.2} parent=5 // pred_check
      _
    $region10: #{inverted_residual_forward.2} parent=5 // pred_check_branch
      %246 = sbr.rel (%p243) target = $region12
    $region11: #{inverted_residual_forward.2} parent=5 // pred_region
      %s247 = ssub.s32 %s15, 1
      // Predicated region
      $region13: #{inverted_residual_forward.2} parent=11 // pred_check
        %p248 = pneg %p74
      $region14: #{inverted_residual_forward.2} parent=11 // pred_check_branch
        %250 = sbr.rel (%p248) target = $region16
      $region15: #{inverted_residual_forward.2} parent=11 // pred_region
        _
      $region16: #{inverted_residual_forward.2} parent=11 // pred_fallthru
        _
      // Predicated region
      $region17: #{inverted_residual_forward.2} parent=11 // pred_check
        %p251 = pneg %p95
      $region18: #{inverted_residual_forward.2} parent=11 // pred_check_branch
        %253 = sbr.rel (%p251) target = $region20
      $region19: #{inverted_residual_forward.2} parent=11 // pred_region
        _
      $region20: #{inverted_residual_forward.2} parent=11 // pred_fallthru
        _
      // Predicated region
      $region21: #{inverted_residual_forward.2} parent=11 // pred_check
        %p254 = pneg %p116
      $region22: #{inverted_residual_forward.2} parent=11 // pred_check_branch
        %256 = sbr.rel (%p254) target = $region24
      $region23: #{inverted_residual_forward.2} parent=11 // pred_region
        _
      $region24: #{inverted_residual_forward.2} parent=11 // pred_fallthru
        _
      // Predicated region
      $region25: #{inverted_residual_forward.2} parent=11 // pred_check
        %p257 = pneg %p137
      $region26: #{inverted_residual_forward.2} parent=11 // pred_check_branch
        %259 = sbr.rel (%p257) target = $region28
      $region27: #{inverted_residual_forward.2} parent=11 // pred_region
        _
      $region28: #{inverted_residual_forward.2} parent=11 // pred_fallthru
        _
      // Predicated region
      $region29: #{inverted_residual_forward.2} parent=11 // pred_check
        %p260 = pneg %p158
      $region30: #{inverted_residual_forward.2} parent=11 // pred_check_branch
        %262 = sbr.rel (%p260) target = $region32
      $region31: #{inverted_residual_forward.2} parent=11 // pred_region
        _
      $region32: #{inverted_residual_forward.2} parent=11 // pred_fallthru
        _
      // Predicated region
      $region33: #{inverted_residual_forward.2} parent=11 // pred_check
        %p263 = pneg %p179
      $region34: #{inverted_residual_forward.2} parent=11 // pred_check_branch
        %265 = sbr.rel (%p263) target = $region36
      $region35: #{inverted_residual_forward.2} parent=11 // pred_region
        _
      $region36: #{inverted_residual_forward.2} parent=11 // pred_fallthru
        _
    $region12: #{inverted_residual_forward.2} parent=5 // pred_fallthru
      _
    %p266 = scmp.lt.s32.totalorder %s15, 2
    // Predicated region
    $region37: #{inverted_residual_forward.2} parent=5 // pred_check
      %p267 = pneg %p266
    $region38: #{inverted_residual_forward.2} parent=5 // pred_check_branch
      %269 = sbr.rel (%p267) target = $region40
    $region39: #{inverted_residual_forward.2} parent=5 // pred_region
      // Predicated region
      $region41: #{inverted_residual_forward.2} parent=39 // pred_check
        %p270 = pneg %p47
      $region42: #{inverted_residual_forward.2} parent=39 // pred_check_branch
        %272 = sbr.rel (%p270) target = $region44
      $region43: #{inverted_residual_forward.2} parent=39 // pred_region
        %p273 = scmp.lt.s32.totalorder %s22, 1
        %s274 = scalar_select %p273, %s22, 1
        %s275 = smul.addr %s274, 54
        %s276 = smul.addr %s275, 8
        %s277 = scalar_lea.vmem %s0, %s276
      $region44: #{inverted_residual_forward.2} parent=39 // pred_fallthru
        _
    $region40: #{inverted_residual_forward.2} parent=5 // pred_fallthru
      _
    %p278 = scmp.le.s32.totalorder 1, %s15
    %p279 = scmp.lt.s32.totalorder %s15, 3
    %p280 = pnand %p278, %p279
    %p281 = pneg %p280
    // Predicated region
    $region45: #{inverted_residual_forward.2} parent=5 // pred_check
      _
    $region46: #{inverted_residual_forward.2} parent=5 // pred_check_branch
      %283 = sbr.rel (%p280) target = $region48
    $region47: #{inverted_residual_forward.2} parent=5 // pred_region
      %s284 = ssub.s32 %s15, 1
      %p285 = scmp.lt.s32.totalorder %s24, 1
      %s286 = scalar_select %p285, %s24, 1
      %s287 = smul.addr %s286, 54
      %s288 = smul.addr %s287, 8
      %s289 = scalar_lea.vmem %s0, %s288
      %p290 = pneg %p53
      %p291 = pneg %p50
      %p292 = pneg %p74
      %p293 = pneg %p71
      %p294 = pneg %p95
      %p295 = pneg %p92
      %p296 = pneg %p116
      %p297 = pneg %p113
      %p298 = pneg %p137
      %p299 = pneg %p134
      %p300 = pneg %p158
      %p301 = pneg %p155
      %p302 = pneg %p179
      %p303 = pneg %p176
      %p304 = pneg %p207
      %p305 = pneg %p204
      %s306 = smul.u32 16, %s25
      %p307 = scmp.lt.s32.totalorder %s24, 1
      %s308 = scalar_select %p307, %s24, 1
      %p309 = scmp.lt.s32.totalorder %s306, 15
      %s310 = scalar_select %p309, %s306, 15
      %s311 = smul.addr %s310, 2
      %s312 = smul.addr %s308, 32
      %s313 = sadd.s32 %s311, %s312
      %s314 = smul.addr %s313, 4
      %s315 = scalar_lea.vmem %s7, %s314
      %p316 = pneg %p233
      %p317 = pneg %p230
      %p318 = scmp.lt.s32.totalorder %s24, 1
      %s319 = scalar_select %p318, %s24, 1
      %s320 = scalar_lea.vmem %s8, %s319
      %p321 = scmp.lt.s32.totalorder %s24, 1
      %s322 = scalar_select %p321, %s24, 1
      %s323 = smul.addr %s322, 54
      %s324 = smul.addr %s323, 8
      %s325 = scalar_lea.vmem %s0, %s324
      %s326 = smul.u32 16, %s25
      %p327 = scmp.lt.s32.totalorder %s24, 1
      %s328 = scalar_select %p327, %s24, 1
      %p329 = scmp.lt.s32.totalorder %s326, 15
      %s330 = scalar_select %p329, %s326, 15
      %s331 = smul.addr %s330, 2
      %s332 = smul.addr %s328, 32
      %s333 = sadd.s32 %s331, %s332
      %s334 = smul.addr %s333, 4
      %s335 = scalar_lea.vmem %s7, %s334
      %s336 = smul.u32 16, %s25
      %p337 = scmp.lt.s32.totalorder %s24, 1
      %s338 = scalar_select %p337, %s24, 1
      %s339 = scalar_lea.vmem %s8, %s338
      %s340 = smul.u32 %s25, 16
      %v341 = vld [vmem:[%s1] sm:$0xf]
      %v342 = vld [vmem:[%s2] sm:$0x1]
      %v343 = vld [vmem:[%s3] sm:$0x1]
      %s344 = smul.u32 %s340, 24
      %s345 = scalar_lea.vmem %s325, %s344
      %v346 = vld [vmem:[%s345] sm:$0xff]
      %v347 = vld [vmem:[%s345 + $0x8] sm:$0xff]
      %v348 = vld [vmem:[%s345 + $0x10] sm:$0x3]
      %vm349 = vcmask 31744
      %v351 = vsel %vm349, %v346, 0
      %v354 = vsel %vm349, %v347, 0
      %v357 = vsel %vm349, %v348, 0
      %vm359 = vcmask 1043456
      %v361 = vsel %vm359, %v341, 0
      %363 = vmatprep.subr.mxu0 0.0
      %364 = vmatpush1.msra.mxu0 %v361
      %365 = vmatprep.subr.mxu0 0.0
      %366 = vmatpush1.msra.mxu0 0.0
      %367 = vmatprep.subr.mxu0 0.0
      %368 = vmatpush1.msra.mxu0 0.0
      %369 = vmatprep.subr.mxu0 0.0
      %370 = vmatpush1.msra.mxu0 0.0
      %371 = vmatprep.subr.mxu0 0.0
      %372 = vmatpush1.msra.mxu0 0.0
      %373 = vmatprep.subr.mxu0 0.0
      %374 = vmatpush1.msra.mxu0 0.0
      %375 = vmatprep.subr.mxu0 0.0
      %376 = vmatpush1.msra.mxu0 0.0
      %377 = vmatprep.subr.mxu0 0.0
      %378 = vmatpush1.msra.mxu0 0.0
      %379 = vmatprep.subr.mxu0 0.0
      %380 = vmatpush1.msra.mxu0 0.0
      %381 = vmatprep.subr.mxu0 0.0
      %382 = vmatpush1.msra.mxu0 0.0
      %383 = vmatprep.subr.mxu0 0.0
      %384 = vmatpush1.msra.mxu0 0.0
      %385 = vmatprep.subr.mxu0 0.0
      %386 = vmatpush1.msra.mxu0 0.0
      %387 = vmatprep.subr.mxu0 0.0
      %388 = vmatpush1.msra.mxu0 0.0
      %389 = vmatprep.subr.mxu0 0.0
      %390 = vmatpush1.msra.mxu0 0.0
      %391 = vmatprep.subr.mxu0 0.0
      %392 = vmatpush1.msra.mxu0 0.0
      %393 = vmatprep.subr.mxu0 0.0
      %394 = vmatpush1.msra.mxu0 0.0
      %395 = vmatprep.subr.mxu0 0.0
      %396 = vmatpush1.msra.mxu0 0.0
      %397 = vmatprep.subr.mxu0 0.0
      %398 = vmatpush1.msra.mxu0 0.0
      %399 = vmatprep.subr.mxu0 0.0
      %400 = vmatpush1.msra.mxu0 0.0
      %401 = vmatprep.subr.mxu0 0.0
      %402 = vmatpush1.msra.mxu0 0.0
      %403 = vmatprep.subr.mxu0 0.0
      %404 = vmatpush1.msra.mxu0 0.0
      %405 = vmatprep.subr.mxu0 0.0
      %406 = vmatpush1.msra.mxu0 0.0
      %407 = vmatprep.subr.mxu0 0.0
      %408 = vmatpush1.msra.mxu0 0.0
      %409 = vmatprep.subr.mxu0 0.0
      %410 = vmatpush1.msra.mxu0 0.0
      %411 = vmatprep.subr.mxu0 0.0
      %412 = vmatpush1.msra.mxu0 0.0
      %413 = vmatprep.subr.mxu0 0.0
      %414 = vmatpush1.msra.mxu0 0.0
      %415 = vmatprep.subr.mxu0 0.0
      %416 = vmatpush1.msra.mxu0 0.0
      %417 = vmatprep.subr.mxu0 0.0
      %418 = vmatpush1.msra.mxu0 0.0
      %419 = vmatprep.subr.mxu0 0.0
      %420 = vmatpush1.msra.mxu0 0.0
      %421 = vmatprep.subr.mxu0 0.0
      %422 = vmatpush1.msra.mxu0 0.0
      %423 = vmatprep.subr.mxu0 0.0
      %424 = vmatpush1.msra.mxu0 0.0
      %425 = vmatprep.subr.mxu0 0.0
      %426 = vmatpush1.msra.mxu0 0.0
      %427 = vmatprep.mubr.f32.mxu0 0.0
      %428 = vmatmul.mubr.f32.gmra.mrb[0].mxu0 %v351
      %v429 = vpop.f32.mrb[0].mxu0
      %v430 = vadd.f32 0.0, %v429
      %v431 = vpop.f32.mrb[0].mxu0
      %432 = vmatprep.mubr.f32.mxu0 0.0
      %433 = vmatmul.mubr.f32.gmra.mrb[0].mxu0 %v354
      %v434 = vpop.f32.mrb[0].mxu0
      %v435 = vadd.f32 0.0, %v434
      %v436 = vpop.f32.mrb[0].mxu0
      %437 = vmatprep.mubr.f32.mxu0 0.0
      %438 = vmatmul.mubr.f32.gmra.mrb[0].mxu0 %v357
      %v439 = vpop.f32.mrb[0].mxu0
      %v440 = vadd.f32 0.0, %v439
      %v441 = vpop.f32.mrb[0].mxu0
      %442 = vdwg.mxu0
      %v444 = vlaneseq
      %v445 = vshrl.u32 %v444, 7
      %v446 = vsub.s32 0, %v445
      %v447 = vrot.slane %v342, %v446
      %v449 = vmul.f32 %v430, %v447
      %v450 = vmul.f32 %v435, %v447
      %v451 = vmul.f32 %v440, %v447
      %v453 = vlaneseq
      %v454 = vshrl.u32 %v453, 7
      %v455 = vsub.s32 0, %v454
      %v456 = vrot.slane %v343, %v455
      %v458 = vadd.f32 %v449, %v456
      %v459 = vadd.f32 %v450, %v456
      %v460 = vadd.f32 %v451, %v456
      %v461 = vadd.f32 %v458, 3.0
      %v462 = vadd.f32 %v459, 3.0
      %v463 = vadd.f32 %v460, 3.0
      %v464 = vmax.f32 %v461, 0.0
      %v465 = vmax.f32 %v462, 0.0
      %v466 = vmax.f32 %v463, 0.0
      %v467 = vmin.f32 %v464, 6.0
      %v468 = vmin.f32 %v465, 6.0
      %v469 = vmin.f32 %v466, 6.0
      %v470 = vmul.f32 %v467, 0.16666667
      %v471 = vmul.f32 %v468, 0.16666667
      %v472 = vmul.f32 %v469, 0.16666667
      %v473 = vmul.f32 %v458, %v470
      %v474 = vmul.f32 %v459, %v471
      %v475 = vmul.f32 %v460, %v472
      %vm476 = vcmask 130048
      %477 = vst.msk [vmem:[#allocation2] sm:$0xff] %vm476, %v473
      %478 = vst.msk [vmem:[#allocation2 + $0x8] sm:$0xff] %vm476, %v474
      %vm479 = vcmask 123904
      %480 = vst.msk [vmem:[#allocation2 + $0x10] sm:$0x3] %vm479, %v475
      %s481 = sadd.s32 %s340, 1
      %s482 = smul.u32 %s481, 24
      %s483 = scalar_lea.vmem %s325, %s482
      %v484 = vld [vmem:[%s483] sm:$0xff]
      %v485 = vld [vmem:[%s483 + $0x8] sm:$0xff]
      %v486 = vld [vmem:[%s483 + $0x10] sm:$0x3]
      %v488 = vsel %vm349, %v484, 0
      %v491 = vsel %vm349, %v485, 0
      %v494 = vsel %vm349, %v486, 0
      %496 = vmatprep.subr.mxu0 0.0
      %497 = vmatpush1.msra.mxu0 %v361
      %498 = vmatprep.subr.mxu0 0.0
      %499 = vmatpush1.msra.mxu0 0.0
      %500 = vmatprep.subr.mxu0 0.0
      %501 = vmatpush1.msra.mxu0 0.0
      %502 = vmatprep.subr.mxu0 0.0
      %503 = vmatpush1.msra.mxu0 0.0
      %504 = vmatprep.subr.mxu0 0.0
      %505 = vmatpush1.msra.mxu0 0.0
      %506 = vmatprep.subr.mxu0 0.0
      %507 = vmatpush1.msra.mxu0 0.0
      %508 = vmatprep.subr.mxu0 0.0
      %509 = vmatpush1.msra.mxu0 0.0
      %510 = vmatprep.subr.mxu0 0.0
      %511 = vmatpush1.msra.mxu0 0.0
      %512 = vmatprep.subr.mxu0 0.0
      %513 = vmatpush1.msra.mxu0 0.0
      %514 = vmatprep.subr.mxu0 0.0
      %515 = vmatpush1.msra.mxu0 0.0
      %516 = vmatprep.subr.mxu0 0.0
      %517 = vmatpush1.msra.mxu0 0.0
      %518 = vmatprep.subr.mxu0 0.0
      %519 = vmatpush1.msra.mxu0 0.0
      %520 = vmatprep.subr.mxu0 0.0
      %521 = vmatpush1.msra.mxu0 0.0
      %522 = vmatprep.subr.mxu0 0.0
      %523 = vmatpush1.msra.mxu0 0.0
      %524 = vmatprep.subr.mxu0 0.0
      %525 = vmatpush1.msra.mxu0 0.0
      %526 = vmatprep.subr.mxu0 0.0
      %527 = vmatpush1.msra.mxu0 0.0
      %528 = vmatprep.subr.mxu0 0.0
      %529 = vmatpush1.msra.mxu0 0.0
      %530 = vmatprep.subr.mxu0 0.0
      %531 = vmatpush1.msra.mxu0 0.0
      %532 = vmatprep.subr.mxu0 0.0
      %533 = vmatpush1.msra.mxu0 0.0
      %534 = vmatprep.subr.mxu0 0.0
      %535 = vmatpush1.msra.mxu0 0.0
      %536 = vmatprep.subr.mxu0 0.0
      %537 = vmatpush1.msra.mxu0 0.0
      %538 = vmatprep.subr.mxu0 0.0
      %539 = vmatpush1.msra.mxu0 0.0
      %540 = vmatprep.subr.mxu0 0.0
      %541 = vmatpush1.msra.mxu0 0.0
      %542 = vmatprep.subr.mxu0 0.0
      %543 = vmatpush1.msra.mxu0 0.0
      %544 = vmatprep.subr.mxu0 0.0
      %545 = vmatpush1.msra.mxu0 0.0
      %546 = vmatprep.subr.mxu0 0.0
      %547 = vmatpush1.msra.mxu0 0.0
      %548 = vmatprep.subr.mxu0 0.0
      %549 = vmatpush1.msra.mxu0 0.0
      %550 = vmatprep.subr.mxu0 0.0
      %551 = vmatpush1.msra.mxu0 0.0
      %552 = vmatprep.subr.mxu0 0.0
      %553 = vmatpush1.msra.mxu0 0.0
      %554 = vmatprep.subr.mxu0 0.0
      %555 = vmatpush1.msra.mxu0 0.0
      %556 = vmatprep.subr.mxu0 0.0
      %557 = vmatpush1.msra.mxu0 0.0
      %558 = vmatprep.subr.mxu0 0.0
      %559 = vmatpush1.msra.mxu0 0.0
      %560 = vmatprep.mubr.f32.mxu0 0.0
      %561 = vmatmul.mubr.f32.gmra.mrb[0].mxu0 %v488
      %v562 = vpop.f32.mrb[0].mxu0
      %v563 = vadd.f32 0.0, %v562
      %v564 = vpop.f32.mrb[0].mxu0
      %565 = vmatprep.mubr.f32.mxu0 0.0
      %566 = vmatmul.mubr.f32.gmra.mrb[0].mxu0 %v491
      %v567 = vpop.f32.mrb[0].mxu0
      %v568 = vadd.f32 0.0, %v567
      %v569 = vpop.f32.mrb[0].mxu0
      %570 = vmatprep.mubr.f32.mxu0 0.0
      %571 = vmatmul.mubr.f32.gmra.mrb[0].mxu0 %v494
      %v572 = vpop.f32.mrb[0].mxu0
      %v573 = vadd.f32 0.0, %v572
      %v574 = vpop.f32.mrb[0].mxu0
      %575 = vdwg.mxu0
      %v576 = vmul.f32 %v563, %v447
      %v577 = vmul.f32 %v568, %v447
      %v578 = vmul.f32 %v573, %v447
      %v579 = vadd.f32 %v576, %v456
      %v580 = vadd.f32 %v577, %v456
      %v581 = vadd.f32 %v578, %v456
      %v582 = vadd.f32 %v579, 3.0
      %v583 = vadd.f32 %v580, 3.0
      %v584 = vadd.f32 %v581, 3.0
      %v585 = vmax.f32 %v582, 0.0
      %v586 = vmax.f32 %v583, 0.0
      %v587 = vmax.f32 %v584, 0.0
      %v588 = vmin.f32 %v585, 6.0
      %v589 = vmin.f32 %v586, 6.0
      %v590 = vmin.f32 %v587, 6.0
      %v591 = vmul.f32 %v588, 0.16666667
      %v592 = vmul.f32 %v589, 0.16666667
      %v593 = vmul.f32 %v590, 0.16666667
      %v594 = vmul.f32 %v579, %v591
      %v595 = vmul.f32 %v580, %v592
      %v596 = vmul.f32 %v581, %v593
      %s597 = scalar_lea.vmem [#allocation2], 24
      %598 = vst.msk [vmem:[%s597] sm:$0xff] %vm476, %v594
      %599 = vst.msk [vmem:[%s597 + $0x8] sm:$0xff] %vm476, %v595
      %600 = vst.msk [vmem:[%s597 + $0x10] sm:$0x3] %vm479, %v596
      %s601 = sadd.s32 %s340, 2
      %s602 = smul.u32 %s601, 24
      %s603 = scalar_lea.vmem %s325, %s602
      %v604 = vld [vmem:[%s603] sm:$0xff]
      %v605 = vld [vmem:[%s603 + $0x8] sm:$0xff]
      %v606 = vld [vmem:[%s603 + $0x10] sm:$0x3]
      %v608 = vsel %vm349, %v604, 0
      %v611 = vsel %vm349, %v605, 0
      %v614 = vsel %vm349, %v606, 0
      %616 = vmatprep.subr.mxu0 0.0
      %617 = vmatpush1.msra.mxu0 %v361
      %618 = vmatprep.subr.mxu0 0.0
      %619 = vmatpush1.msra.mxu0 0.0
      %620 = vmatprep.subr.mxu0 0.0
      %621 = vmatpush1.msra.mxu0 0.0
      %622 = vmatprep.subr.mxu0 0.0
      %623 = vmatpush1.msra.mxu0 0.0
      %624 = vmatprep.subr.mxu0 0.0
      %625 = vmatpush1.msra.mxu0 0.0
      %626 = vmatprep.subr.mxu0 0.0
      %627 = vmatpush1.msra.mxu0 0.0
      %628 = vmatprep.subr.mxu0 0.0
      %629 = vmatpush1.msra.mxu0 0.0
      %630 = vmatprep.subr.mxu0 0.0
      %631 = vmatpush1.msra.mxu0 0.0
      %632 = vmatprep.subr.mxu0 0.0
      %633 = vmatpush1.msra.mxu0 0.0
      %634 = vmatprep.subr.mxu0 0.0
      %635 = vmatpush1.msra.mxu0 0.0
      %636 = vmatprep.subr.mxu0 0.0
      %637 = vmatpush1.msra.mxu0 0.0
      %638 = vmatprep.subr.mxu0 0.0
      %639 = vmatpush1.msra.mxu0 0.0
      %640 = vmatprep.subr.mxu0 0.0
      %641 = vmatpush1.msra.mxu0 0.0
      %642 = vmatprep.subr.mxu0 0.0
      %643 = vmatpush1.msra.mxu0 0.0
      %644 = vmatprep.subr.mxu0 0.0
      %645 = vmatpush1.msra.mxu0 0.0
      %646 = vmatprep.subr.mxu0 0.0
      %647 = vmatpush1.msra.mxu0 0.0
      %648 = vmatprep.subr.mxu0 0.0
      %649 = vmatpush1.msra.mxu0 0.0
      %650 = vmatprep.subr.mxu0 0.0
      %651 = vmatpush1.msra.mxu0 0.0
      %652 = vmatprep.subr.mxu0 0.0
      %653 = vmatpush1.msra.mxu0 0.0
      %654 = vmatprep.subr.mxu0 0.0
      %655 = vmatpush1.msra.mxu0 0.0
      %656 = vmatprep.subr.mxu0 0.0
      %657 = vmatpush1.msra.mxu0 0.0
      %658 = vmatprep.subr.mxu0 0.0
      %659 = vmatpush1.msra.mxu0 0.0
      %660 = vmatprep.subr.mxu0 0.0
      %661 = vmatpush1.msra.mxu0 0.0
      %662 = vmatprep.subr.mxu0 0.0
      %663 = vmatpush1.msra.mxu0 0.0
      %664 = vmatprep.subr.mxu0 0.0
      %665 = vmatpush1.msra.mxu0 0.0
      %666 = vmatprep.subr.mxu0 0.0
      %667 = vmatpush1.msra.mxu0 0.0
      %668 = vmatprep.subr.mxu0 0.0
      %669 = vmatpush1.msra.mxu0 0.0
      %670 = vmatprep.subr.mxu0 0.0
      %671 = vmatpush1.msra.mxu0 0.0
      %672 = vmatprep.subr.mxu0 0.0
      %673 = vmatpush1.msra.mxu0 0.0
      %674 = vmatprep.subr.mxu0 0.0
      %675 = vmatpush1.msra.mxu0 0.0
      %676 = vmatprep.subr.mxu0 0.0
      %677 = vmatpush1.msra.mxu0 0.0
      %678 = vmatprep.subr.mxu0 0.0
      %679 = vmatpush1.msra.mxu0 0.0
      %680 = vmatprep.mubr.f32.mxu0 0.0
      %681 = vmatmul.mubr.f32.gmra.mrb[0].mxu0 %v608
      %v682 = vpop.f32.mrb[0].mxu0
      %v683 = vadd.f32 0.0, %v682
      %v684 = vpop.f32.mrb[0].mxu0
      %685 = vmatprep.mubr.f32.mxu0 0.0
      %686 = vmatmul.mubr.f32.gmra.mrb[0].mxu0 %v611
      %v687 = vpop.f32.mrb[0].mxu0
      %v688 = vadd.f32 0.0, %v687
      %v689 = vpop.f32.mrb[0].mxu0
      %690 = vmatprep.mubr.f32.mxu0 0.0
      %691 = vmatmul.mubr.f32.gmra.mrb[0].mxu0 %v614
      %v692 = vpop.f32.mrb[0].mxu0
      %v693 = vadd.f32 0.0, %v692
      %v694 = vpop.f32.mrb[0].mxu0
      %695 = vdwg.mxu0
      %v696 = vmul.f32 %v683, %v447
      %v697 = vmul.f32 %v688, %v447
      %v698 = vmul.f32 %v693, %v447
      %v699 = vadd.f32 %v696, %v456
      %v700 = vadd.f32 %v697, %v456
      %v701 = vadd.f32 %v698, %v456
      %v702 = vadd.f32 %v699, 3.0
      %v703 = vadd.f32 %v700, 3.0
      %v704 = vadd.f32 %v701, 3.0
      %v705 = vmax.f32 %v702, 0.0
      %v706 = vmax.f32 %v703, 0.0
      %v707 = vmax.f32 %v704, 0.0
      %v708 = vmin.f32 %v705, 6.0
      %v709 = vmin.f32 %v706, 6.0
      %v710 = vmin.f32 %v707, 6.0
      %v711 = vmul.f32 %v708, 0.16666667
      %v712 = vmul.f32 %v709, 0.16666667
      %v713 = vmul.f32 %v710, 0.16666667
      %v714 = vmul.f32 %v699, %v711
      %v715 = vmul.f32 %v700, %v712
      %v716 = vmul.f32 %v701, %v713
      %s717 = scalar_lea.vmem [#allocation2], 48
      %718 = vst.msk [vmem:[%s717] sm:$0xff] %vm476, %v714
      %719 = vst.msk [vmem:[%s717 + $0x8] sm:$0xff] %vm476, %v715
      %720 = vst.msk [vmem:[%s717 + $0x10] sm:$0x3] %vm479, %v716
      %s721 = sadd.s32 %s340, 3
      %s722 = smul.u32 %s721, 24
      %s723 = scalar_lea.vmem %s325, %s722
      %v724 = vld [vmem:[%s723] sm:$0xff]
      %v725 = vld [vmem:[%s723 + $0x8] sm:$0xff]
      %v726 = vld [vmem:[%s723 + $0x10] sm:$0x3]
      %v728 = vsel %vm349, %v724, 0
      %v731 = vsel %vm349, %v725, 0
      %v734 = vsel %vm349, %v726, 0
      %736 = vmatprep.subr.mxu0 0.0
      %737 = vmatpush1.msra.mxu0 %v361
      %738 = vmatprep.subr.mxu0 0.0
      %739 = vmatpush1.msra.mxu0 0.0
      %740 = vmatprep.subr.mxu0 0.0
      %741 = vmatpush1.msra.mxu0 0.0
      %742 = vmatprep.subr.mxu0 0.0
      %743 = vmatpush1.msra.mxu0 0.0
      %744 = vmatprep.subr.mxu0 0.0
      %745 = vmatpush1.msra.mxu0 0.0
      %746 = vmatprep.subr.mxu0 0.0
      %747 = vmatpush1.msra.mxu0 0.0
      %748 = vmatprep.subr.mxu0 0.0
      %749 = vmatpush1.msra.mxu0 0.0
      %750 = vmatprep.subr.mxu0 0.0
      %751 = vmatpush1.msra.mxu0 0.0
      %752 = vmatprep.subr.mxu0 0.0
      %753 = vmatpush1.msra.mxu0 0.0
      %754 = vmatprep.subr.mxu0 0.0
      %755 = vmatpush1.msra.mxu0 0.0
      %756 = vmatprep.subr.mxu0 0.0
      %757 = vmatpush1.msra.mxu0 0.0
      %758 = vmatprep.subr.mxu0 0.0
      %759 = vmatpush1.msra.mxu0 0.0
      %760 = vmatprep.subr.mxu0 0.0
      %761 = vmatpush1.msra.mxu0 0.0
      %762 = vmatprep.subr.mxu0 0.0
      %763 = vmatpush1.msra.mxu0 0.0
      %764 = vmatprep.subr.mxu0 0.0
      %765 = vmatpush1.msra.mxu0 0.0
      %766 = vmatprep.subr.mxu0 0.0
      %767 = vmatpush1.msra.mxu0 0.0
      %768 = vmatprep.subr.mxu0 0.0
      %769 = vmatpush1.msra.mxu0 0.0
      %770 = vmatprep.subr.mxu0 0.0
      %771 = vmatpush1.msra.mxu0 0.0
      %772 = vmatprep.subr.mxu0 0.0
      %773 = vmatpush1.msra.mxu0 0.0
      %774 = vmatprep.subr.mxu0 0.0
      %775 = vmatpush1.msra.mxu0 0.0
      %776 = vmatprep.subr.mxu0 0.0
      %777 = vmatpush1.msra.mxu0 0.0
      %778 = vmatprep.subr.mxu0 0.0
      %779 = vmatpush1.msra.mxu0 0.0
      %780 = vmatprep.subr.mxu0 0.0
      %781 = vmatpush1.msra.mxu0 0.0
      %782 = vmatprep.subr.mxu0 0.0
      %783 = vmatpush1.msra.mxu0 0.0
      %784 = vmatprep.subr.mxu0 0.0
      %785 = vmatpush1.msra.mxu0 0.0
      %786 = vmatprep.subr.mxu0 0.0
      %787 = vmatpush1.msra.mxu0 0.0
      %788 = vmatprep.subr.mxu0 0.0
      %789 = vmatpush1.msra.mxu0 0.0
      %790 = vmatprep.subr.mxu0 0.0
      %791 = vmatpush1.msra.mxu0 0.0
      %792 = vmatprep.subr.mxu0 0.0
      %793 = vmatpush1.msra.mxu0 0.0
      %794 = vmatprep.subr.mxu0 0.0
      %795 = vmatpush1.msra.mxu0 0.0
      %796 = vmatprep.subr.mxu0 0.0
      %797 = vmatpush1.msra.mxu0 0.0
      %798 = vmatprep.subr.mxu0 0.0
      %799 = vmatpush1.msra.mxu0 0.0
      %800 = vmatprep.mubr.f32.mxu0 0.0
      %801 = vmatmul.mubr.f32.gmra.mrb[0].mxu0 %v728
      %v802 = vpop.f32.mrb[0].mxu0
      %v803 = vadd.f32 0.0, %v802
      %v804 = vpop.f32.mrb[0].mxu0
      %805 = vmatprep.mubr.f32.mxu0 0.0
      %806 = vmatmul.mubr.f32.gmra.mrb[0].mxu0 %v731
      %v807 = vpop.f32.mrb[0].mxu0
      %v808 = vadd.f32 0.0, %v807
      %v809 = vpop.f32.mrb[0].mxu0
      %810 = vmatprep.mubr.f32.mxu0 0.0
      %811 = vmatmul.mubr.f32.gmra.mrb[0].mxu0 %v734
      %v812 = vpop.f32.mrb[0].mxu0
      %v813 = vadd.f32 0.0, %v812
      %v814 = vpop.f32.mrb[0].mxu0
      %815 = vdwg.mxu0
      %v816 = vmul.f32 %v803, %v447
      %v817 = vmul.f32 %v808, %v447
      %v818 = vmul.f32 %v813, %v447
      %v819 = vadd.f32 %v816, %v456
      %v820 = vadd.f32 %v817, %v456
      %v821 = vadd.f32 %v818, %v456
      %v822 = vadd.f32 %v819, 3.0
      %v823 = vadd.f32 %v820, 3.0
      %v824 = vadd.f32 %v821, 3.0
      %v825 = vmax.f32 %v822, 0.0
      %v826 = vmax.f32 %v823, 0.0
      %v827 = vmax.f32 %v824, 0.0
      %v828 = vmin.f32 %v825, 6.0
      %v829 = vmin.f32 %v826, 6.0
      %v830 = vmin.f32 %v827, 6.0
      %v831 = vmul.f32 %v828, 0.16666667
      %v832 = vmul.f32 %v829, 0.16666667
      %v833 = vmul.f32 %v830, 0.16666667
      %v834 = vmul.f32 %v819, %v831
      %v835 = vmul.f32 %v820, %v832
      %v836 = vmul.f32 %v821, %v833
      %s837 = scalar_lea.vmem [#allocation2], 72
      %838 = vst.msk [vmem:[%s837] sm:$0xff] %vm476, %v834
      %839 = vst.msk [vmem:[%s837 + $0x8] sm:$0xff] %vm476, %v835
      %840 = vst.msk [vmem:[%s837 + $0x10] sm:$0x3] %vm479, %v836
      %s841 = sadd.s32 %s340, 4
      %s842 = smul.u32 %s841, 24
      %s843 = scalar_lea.vmem %s325, %s842
      %v844 = vld [vmem:[%s843] sm:$0xff]
      %v845 = vld [vmem:[%s843 + $0x8] sm:$0xff]
      %v846 = vld [vmem:[%s843 + $0x10] sm:$0x3]
      %v848 = vsel %vm349, %v844, 0
      %v851 = vsel %vm349, %v845, 0
      %v854 = vsel %vm349, %v846, 0
      %856 = vmatprep.subr.mxu0 0.0
      %857 = vmatpush1.msra.mxu0 %v361
      %858 = vmatprep.subr.mxu0 0.0
      %859 = vmatpush1.msra.mxu0 0.0
      %860 = vmatprep.subr.mxu0 0.0
      %861 = vmatpush1.msra.mxu0 0.0
      %862 = vmatprep.subr.mxu0 0.0
      %863 = vmatpush1.msra.mxu0 0.0
      %864 = vmatprep.subr.mxu0 0.0
      %865 = vmatpush1.msra.mxu0 0.0
      %866 = vmatprep.subr.mxu0 0.0
      %867 = vmatpush1.msra.mxu0 0.0
      %868 = vmatprep.subr.mxu0 0.0
      %869 = vmatpush1.msra.mxu0 0.0
      %870 = vmatprep.subr.mxu0 0.0
      %871 = vmatpush1.msra.mxu0 0.0
      %872 = vmatprep.subr.mxu0 0.0
      %873 = vmatpush1.msra.mxu0 0.0
      %874 = vmatprep.subr.mxu0 0.0
      %875 = vmatpush1.msra.mxu0 0.0
      %876 = vmatprep.subr.mxu0 0.0
      %877 = vmatpush1.msra.mxu0 0.0
      %878 = vmatprep.subr.mxu0 0.0
      %879 = vmatpush1.msra.mxu0 0.0
      %880 = vmatprep.subr.mxu0 0.0
      %881 = vmatpush1.msra.mxu0 0.0
      %882 = vmatprep.subr.mxu0 0.0
      %883 = vmatpush1.msra.mxu0 0.0
      %884 = vmatprep.subr.mxu0 0.0
      %885 = vmatpush1.msra.mxu0 0.0
      %886 = vmatprep.subr.mxu0 0.0
      %887 = vmatpush1.msra.mxu0 0.0
      %888 = vmatprep.subr.mxu0 0.0
      %889 = vmatpush1.msra.mxu0 0.0
      %890 = vmatprep.subr.mxu0 0.0
      %891 = vmatpush1.msra.mxu0 0.0
      %892 = vmatprep.subr.mxu0 0.0
      %893 = vmatpush1.msra.mxu0 0.0
      %894 = vmatprep.subr.mxu0 0.0
      %895 = vmatpush1.msra.mxu0 0.0
      %896 = vmatprep.subr.mxu0 0.0
      %897 = vmatpush1.msra.mxu0 0.0
      %898 = vmatprep.subr.mxu0 0.0
      %899 = vmatpush1.msra.mxu0 0.0
      %900 = vmatprep.subr.mxu0 0.0
      %901 = vmatpush1.msra.mxu0 0.0
      %902 = vmatprep.subr.mxu0 0.0
      %903 = vmatpush1.msra.mxu0 0.0
      %904 = vmatprep.subr.mxu0 0.0
      %905 = vmatpush1.msra.mxu0 0.0
      %906 = vmatprep.subr.mxu0 0.0
      %907 = vmatpush1.msra.mxu0 0.0
      %908 = vmatprep.subr.mxu0 0.0
      %909 = vmatpush1.msra.mxu0 0.0
      %910 = vmatprep.subr.mxu0 0.0
      %911 = vmatpush1.msra.mxu0 0.0
      %912 = vmatprep.subr.mxu0 0.0
      %913 = vmatpush1.msra.mxu0 0.0
      %914 = vmatprep.subr.mxu0 0.0
      %915 = vmatpush1.msra.mxu0 0.0
      %916 = vmatprep.subr.mxu0 0.0
      %917 = vmatpush1.msra.mxu0 0.0
      %918 = vmatprep.subr.mxu0 0.0
      %919 = vmatpush1.msra.mxu0 0.0
      %920 = vmatprep.mubr.f32.mxu0 0.0
      %921 = vmatmul.mubr.f32.gmra.mrb[0].mxu0 %v848
      %v922 = vpop.f32.mrb[0].mxu0
      %v923 = vadd.f32 0.0, %v922
      %v924 = vpop.f32.mrb[0].mxu0
      %925 = vmatprep.mubr.f32.mxu0 0.0
      %926 = vmatmul.mubr.f32.gmra.mrb[0].mxu0 %v851
      %v927 = vpop.f32.mrb[0].mxu0
      %v928 = vadd.f32 0.0, %v927
      %v929 = vpop.f32.mrb[0].mxu0
      %930 = vmatprep.mubr.f32.mxu0 0.0
      %931 = vmatmul.mubr.f32.gmra.mrb[0].mxu0 %v854
      %v932 = vpop.f32.mrb[0].mxu0
      %v933 = vadd.f32 0.0, %v932
      %v934 = vpop.f32.mrb[0].mxu0
      %935 = vdwg.mxu0
      %v936 = vmul.f32 %v923, %v447
      %v937 = vmul.f32 %v928, %v447
      %v938 = vmul.f32 %v933, %v447
      %v939 = vadd.f32 %v936, %v456
      %v940 = vadd.f32 %v937, %v456
      %v941 = vadd.f32 %v938, %v456
      %v942 = vadd.f32 %v939, 3.0
      %v943 = vadd.f32 %v940, 3.0
      %v944 = vadd.f32 %v941, 3.0
      %v945 = vmax.f32 %v942, 0.0
      %v946 = vmax.f32 %v943, 0.0
      %v947 = vmax.f32 %v944, 0.0
      %v948 = vmin.f32 %v945, 6.0
      %v949 = vmin.f32 %v946, 6.0
      %v950 = vmin.f32 %v947, 6.0
      %v951 = vmul.f32 %v948, 0.16666667
      %v952 = vmul.f32 %v949, 0.16666667
      %v953 = vmul.f32 %v950, 0.16666667
      %v954 = vmul.f32 %v939, %v951
      %v955 = vmul.f32 %v940, %v952
      %v956 = vmul.f32 %v941, %v953
      %s957 = scalar_lea.vmem [#allocation2], 96
      %958 = vst.msk [vmem:[%s957] sm:$0xff] %vm476, %v954
      %959 = vst.msk [vmem:[%s957 + $0x8] sm:$0xff] %vm476, %v955
      %960 = vst.msk [vmem:[%s957 + $0x10] sm:$0x3] %vm479, %v956
      %s961 = sadd.s32 %s340, 5
      %s962 = smul.u32 %s961, 24
      %s963 = scalar_lea.vmem %s325, %s962
      %v964 = vld [vmem:[%s963] sm:$0xff]
      %v965 = vld [vmem:[%s963 + $0x8] sm:$0xff]
      %v966 = vld [vmem:[%s963 + $0x10] sm:$0x3]
      %v968 = vsel %vm349, %v964, 0
      %v971 = vsel %vm349, %v965, 0
      %v974 = vsel %vm349, %v966, 0
      %976 = vmatprep.subr.mxu0 0.0
      %977 = vmatpush1.msra.mxu0 %v361
      %978 = vmatprep.subr.mxu0 0.0
      %979 = vmatpush1.msra.mxu0 0.0
      %980 = vmatprep.subr.mxu0 0.0
      %981 = vmatpush1.msra.mxu0 0.0
      %982 = vmatprep.subr.mxu0 0.0
      %983 = vmatpush1.msra.mxu0 0.0
      %984 = vmatprep.subr.mxu0 0.0
      %985 = vmatpush1.msra.mxu0 0.0
      %986 = vmatprep.subr.mxu0 0.0
      %987 = vmatpush1.msra.mxu0 0.0
      %988 = vmatprep.subr.mxu0 0.0
      %989 = vmatpush1.msra.mxu0 0.0
      %990 = vmatprep.subr.mxu0 0.0
      %991 = vmatpush1.msra.mxu0 0.0
      %992 = vmatprep.subr.mxu0 0.0
      %993 = vmatpush1.msra.mxu0 0.0
      %994 = vmatprep.subr.mxu0 0.0
      %995 = vmatpush1.msra.mxu0 0.0
      %996 = vmatprep.subr.mxu0 0.0
      %997 = vmatpush1.msra.mxu0 0.0
      %998 = vmatprep.subr.mxu0 0.0
      %999 = vmatpush1.msra.mxu0 0.0
      %1000 = vmatprep.subr.mxu0 0.0
      %1001 = vmatpush1.msra.mxu0 0.0
      %1002 = vmatprep.subr.mxu0 0.0
      %1003 = vmatpush1.msra.mxu0 0.0
      %1004 = vmatprep.subr.mxu0 0.0
      %1005 = vmatpush1.msra.mxu0 0.0
      %1006 = vmatprep.subr.mxu0 0.0
      %1007 = vmatpush1.msra.mxu0 0.0
      %1008 = vmatprep.subr.mxu0 0.0
      %1009 = vmatpush1.msra.mxu0 0.0
      %1010 = vmatprep.subr.mxu0 0.0
      %1011 = vmatpush1.msra.mxu0 0.0
      %1012 = vmatprep.subr.mxu0 0.0
      %1013 = vmatpush1.msra.mxu0 0.0
      %1014 = vmatprep.subr.mxu0 0.0
      %1015 = vmatpush1.msra.mxu0 0.0
      %1016 = vmatprep.subr.mxu0 0.0
      %1017 = vmatpush1.msra.mxu0 0.0
      %1018 = vmatprep.subr.mxu0 0.0
      %1019 = vmatpush1.msra.mxu0 0.0
      %1020 = vmatprep.subr.mxu0 0.0
      %1021 = vmatpush1.msra.mxu0 0.0
      %1022 = vmatprep.subr.mxu0 0.0
      %1023 = vmatpush1.msra.mxu0 0.0
      %1024 = vmatprep.subr.mxu0 0.0
      %1025 = vmatpush1.msra.mxu0 0.0
      %1026 = vmatprep.subr.mxu0 0.0
      %1027 = vmatpush1.msra.mxu0 0.0
      %1028 = vmatprep.subr.mxu0 0.0
      %1029 = vmatpush1.msra.mxu0 0.0
      %1030 = vmatprep.subr.mxu0 0.0
      %1031 = vmatpush1.msra.mxu0 0.0
      %1032 = vmatprep.subr.mxu0 0.0
      %1033 = vmatpush1.msra.mxu0 0.0
      %1034 = vmatprep.subr.mxu0 0.0
      %1035 = vmatpush1.msra.mxu0 0.0
      %1036 = vmatprep.subr.mxu0 0.0
      %1037 = vmatpush1.msra.mxu0 0.0
      %1038 = vmatprep.subr.mxu0 0.0
      %1039 = vmatpush1.msra.mxu0 0.0
      %1040 = vmatprep.mubr.f32.mxu0 0.0
      %1041 = vmatmul.mubr.f32.gmra.mrb[0].mxu0 %v968
      %v1042 = vpop.f32.mrb[0].mxu0
      %v1043 = vadd.f32 0.0, %v1042
      %v1044 = vpop.f32.mrb[0].mxu0
      %1045 = vmatprep.mubr.f32.mxu0 0.0
      %1046 = vmatmul.mubr.f32.gmra.mrb[0].mxu0 %v971
      %v1047 = vpop.f32.mrb[0].mxu0
      %v1048 = vadd.f32 0.0, %v1047
      %v1049 = vpop.f32.mrb[0].mxu0
      %1050 = vmatprep.mubr.f32.mxu0 0.0
      %1051 = vmatmul.mubr.f32.gmra.mrb[0].mxu0 %v974
      %v1052 = vpop.f32.mrb[0].mxu0
      %v1053 = vadd.f32 0.0, %v1052
      %v1054 = vpop.f32.mrb[0].mxu0
      %1055 = vdwg.mxu0
      %v1056 = vmul.f32 %v1043, %v447
      %v1057 = vmul.f32 %v1048, %v447
      %v1058 = vmul.f32 %v1053, %v447
      %v1059 = vadd.f32 %v1056, %v456
      %v1060 = vadd.f32 %v1057, %v456
      %v1061 = vadd.f32 %v1058, %v456
      %v1062 = vadd.f32 %v1059, 3.0
      %v1063 = vadd.f32 %v1060, 3.0
      %v1064 = vadd.f32 %v1061, 3.0
      %v1065 = vmax.f32 %v1062, 0.0
      %v1066 = vmax.f32 %v1063, 0.0
      %v1067 = vmax.f32 %v1064, 0.0
      %v1068 = vmin.f32 %v1065, 6.0
      %v1069 = vmin.f32 %v1066, 6.0
      %v1070 = vmin.f32 %v1067, 6.0
      %v1071 = vmul.f32 %v1068, 0.16666667
      %v1072 = vmul.f32 %v1069, 0.16666667
      %v1073 = vmul.f32 %v1070, 0.16666667
      %v1074 = vmul.f32 %v1059, %v1071
      %v1075 = vmul.f32 %v1060, %v1072
      %v1076 = vmul.f32 %v1061, %v1073
      %s1077 = scalar_lea.vmem [#allocation2], 120
      %1078 = vst.msk [vmem:[%s1077] sm:$0xff] %vm476, %v1074
      %1079 = vst.msk [vmem:[%s1077 + $0x8] sm:$0xff] %vm476, %v1075
      %1080 = vst.msk [vmem:[%s1077 + $0x10] sm:$0x3] %vm479, %v1076
      %s1081 = sadd.s32 %s340, 6
      %s1082 = smul.u32 %s1081, 24
      %s1083 = scalar_lea.vmem %s325, %s1082
      %v1084 = vld [vmem:[%s1083] sm:$0xff]
      %v1085 = vld [vmem:[%s1083 + $0x8] sm:$0xff]
      %v1086 = vld [vmem:[%s1083 + $0x10] sm:$0x3]
      %v1088 = vsel %vm349, %v1084, 0
      %v1091 = vsel %vm349, %v1085, 0
      %v1094 = vsel %vm349, %v1086, 0
      %1096 = vmatprep.subr.mxu0 0.0
      %1097 = vmatpush1.msra.mxu0 %v361
      %1098 = vmatprep.subr.mxu0 0.0
      %1099 = vmatpush1.msra.mxu0 0.0
      %1100 = vmatprep.subr.mxu0 0.0
      %1101 = vmatpush1.msra.mxu0 0.0
      %1102 = vmatprep.subr.mxu0 0.0
      %1103 = vmatpush1.msra.mxu0 0.0
      %1104 = vmatprep.subr.mxu0 0.0
      %1105 = vmatpush1.msra.mxu0 0.0
      %1106 = vmatprep.subr.mxu0 0.0
      %1107 = vmatpush1.msra.mxu0 0.0
      %1108 = vmatprep.subr.mxu0 0.0
      %1109 = vmatpush1.msra.mxu0 0.0
      %1110 = vmatprep.subr.mxu0 0.0
      %1111 = vmatpush1.msra.mxu0 0.0
      %1112 = vmatprep.subr.mxu0 0.0
      %1113 = vmatpush1.msra.mxu0 0.0
      %1114 = vmatprep.subr.mxu0 0.0
      %1115 = vmatpush1.msra.mxu0 0.0
      %1116 = vmatprep.subr.mxu0 0.0
      %1117 = vmatpush1.msra.mxu0 0.0
      %1118 = vmatprep.subr.mxu0 0.0
      %1119 = vmatpush1.msra.mxu0 0.0
      %1120 = vmatprep.subr.mxu0 0.0
      %1121 = vmatpush1.msra.mxu0 0.0
      %1122 = vmatprep.subr.mxu0 0.0
      %1123 = vmatpush1.msra.mxu0 0.0
      %1124 = vmatprep.subr.mxu0 0.0
      %1125 = vmatpush1.msra.mxu0 0.0
      %1126 = vmatprep.subr.mxu0 0.0
      %1127 = vmatpush1.msra.mxu0 0.0
      %1128 = vmatprep.subr.mxu0 0.0
      %1129 = vmatpush1.msra.mxu0 0.0
      %1130 = vmatprep.subr.mxu0 0.0
      %1131 = vmatpush1.msra.mxu0 0.0
      %1132 = vmatprep.subr.mxu0 0.0
      %1133 = vmatpush1.msra.mxu0 0.0
      %1134 = vmatprep.subr.mxu0 0.0
      %1135 = vmatpush1.msra.mxu0 0.0
      %1136 = vmatprep.subr.mxu0 0.0
      %1137 = vmatpush1.msra.mxu0 0.0
      %1138 = vmatprep.subr.mxu0 0.0
      %1139 = vmatpush1.msra.mxu0 0.0
      %1140 = vmatprep.subr.mxu0 0.0
      %1141 = vmatpush1.msra.mxu0 0.0
      %1142 = vmatprep.subr.mxu0 0.0
      %1143 = vmatpush1.msra.mxu0 0.0
      %1144 = vmatprep.subr.mxu0 0.0
      %1145 = vmatpush1.msra.mxu0 0.0
      %1146 = vmatprep.subr.mxu0 0.0
      %1147 = vmatpush1.msra.mxu0 0.0
      %1148 = vmatprep.subr.mxu0 0.0
      %1149 = vmatpush1.msra.mxu0 0.0
      %1150 = vmatprep.subr.mxu0 0.0
      %1151 = vmatpush1.msra.mxu0 0.0
      %1152 = vmatprep.subr.mxu0 0.0
      %1153 = vmatpush1.msra.mxu0 0.0
      %1154 = vmatprep.subr.mxu0 0.0
      %1155 = vmatpush1.msra.mxu0 0.0
      %1156 = vmatprep.subr.mxu0 0.0
      %1157 = vmatpush1.msra.mxu0 0.0
      %1158 = vmatprep.subr.mxu0 0.0
      %1159 = vmatpush1.msra.mxu0 0.0
      %1160 = vmatprep.mubr.f32.mxu0 0.0
      %1161 = vmatmul.mubr.f32.gmra.mrb[0].mxu0 %v1088
      %v1162 = vpop.f32.mrb[0].mxu0
      %v1163 = vadd.f32 0.0, %v1162
      %v1164 = vpop.f32.mrb[0].mxu0
      %1165 = vmatprep.mubr.f32.mxu0 0.0
      %1166 = vmatmul.mubr.f32.gmra.mrb[0].mxu0 %v1091
      %v1167 = vpop.f32.mrb[0].mxu0
      %v1168 = vadd.f32 0.0, %v1167
      %v1169 = vpop.f32.mrb[0].mxu0
      %1170 = vmatprep.mubr.f32.mxu0 0.0
      %1171 = vmatmul.mubr.f32.gmra.mrb[0].mxu0 %v1094
      %v1172 = vpop.f32.mrb[0].mxu0
      %v1173 = vadd.f32 0.0, %v1172
      %v1174 = vpop.f32.mrb[0].mxu0
      %1175 = vdwg.mxu0
      %v1176 = vmul.f32 %v1163, %v447
      %v1177 = vmul.f32 %v1168, %v447
      %v1178 = vmul.f32 %v1173, %v447
      %v1179 = vadd.f32 %v1176, %v456
      %v1180 = vadd.f32 %v1177, %v456
      %v1181 = vadd.f32 %v1178, %v456
      %v1182 = vadd.f32 %v1179, 3.0
      %v1183 = vadd.f32 %v1180, 3.0
      %v1184 = vadd.f32 %v1181, 3.0
      %v1185 = vmax.f32 %v1182, 0.0
      %v1186 = vmax.f32 %v1183, 0.0
      %v1187 = vmax.f32 %v1184, 0.0
      %v1188 = vmin.f32 %v1185, 6.0
      %v1189 = vmin.f32 %v1186, 6.0
      %v1190 = vmin.f32 %v1187, 6.0
      %v1191 = vmul.f32 %v1188, 0.16666667
      %v1192 = vmul.f32 %v1189, 0.16666667
      %v1193 = vmul.f32 %v1190, 0.16666667
      %v1194 = vmul.f32 %v1179, %v1191
      %v1195 = vmul.f32 %v1180, %v1192
      %v1196 = vmul.f32 %v1181, %v1193
      %s1197 = scalar_lea.vmem [#allocation2], 144
      %1198 = vst.msk [vmem:[%s1197] sm:$0xff] %vm476, %v1194
      %1199 = vst.msk [vmem:[%s1197 + $0x8] sm:$0xff] %vm476, %v1195
      %1200 = vst.msk [vmem:[%s1197 + $0x10] sm:$0x3] %vm479, %v1196
      %s1201 = sadd.s32 %s340, 7
      %s1202 = smul.u32 %s1201, 24
      %s1203 = scalar_lea.vmem %s325, %s1202
      %v1204 = vld [vmem:[%s1203] sm:$0xff]
      %v1205 = vld [vmem:[%s1203 + $0x8] sm:$0xff]
      %v1206 = vld [vmem:[%s1203 + $0x10] sm:$0x3]
      %v1208 = vsel %vm349, %v1204, 0
      %v1211 = vsel %vm349, %v1205, 0
      %v1214 = vsel %vm349, %v1206, 0
      %1216 = vmatprep.subr.mxu0 0.0
      %1217 = vmatpush1.msra.mxu0 %v361
      %1218 = vmatprep.subr.mxu0 0.0
      %1219 = vmatpush1.msra.mxu0 0.0
      %1220 = vmatprep.subr.mxu0 0.0
      %1221 = vmatpush1.msra.mxu0 0.0
      %1222 = vmatprep.subr.mxu0 0.0
      %1223 = vmatpush1.msra.mxu0 0.0
      %1224 = vmatprep.subr.mxu0 0.0
      %1225 = vmatpush1.msra.mxu0 0.0
      %1226 = vmatprep.subr.mxu0 0.0
      %1227 = vmatpush1.msra.mxu0 0.0
      %1228 = vmatprep.subr.mxu0 0.0
      %1229 = vmatpush1.msra.mxu0 0.0
      %1230 = vmatprep.subr.mxu0 0.0
      %1231 = vmatpush1.msra.mxu0 0.0
      %1232 = vmatprep.subr.mxu0 0.0
      %1233 = vmatpush1.msra.mxu0 0.0
      %1234 = vmatprep.subr.mxu0 0.0
      %1235 = vmatpush1.msra.mxu0 0.0
      %1236 = vmatprep.subr.mxu0 0.0
      %1237 = vmatpush1.msra.mxu0 0.0
      %1238 = vmatprep.subr.mxu0 0.0
      %1239 = vmatpush1.msra.mxu0 0.0
      %1240 = vmatprep.subr.mxu0 0.0
      %1241 = vmatpush1.msra.mxu0 0.0
      %1242 = vmatprep.subr.mxu0 0.0
      %1243 = vmatpush1.msra.mxu0 0.0
      %1244 = vmatprep.subr.mxu0 0.0
      %1245 = vmatpush1.msra.mxu0 0.0
      %1246 = vmatprep.subr.mxu0 0.0
      %1247 = vmatpush1.msra.mxu0 0.0
      %1248 = vmatprep.subr.mxu0 0.0
      %1249 = vmatpush1.msra.mxu0 0.0
      %1250 = vmatprep.subr.mxu0 0.0
      %1251 = vmatpush1.msra.mxu0 0.0
      %1252 = vmatprep.subr.mxu0 0.0
      %1253 = vmatpush1.msra.mxu0 0.0
      %1254 = vmatprep.subr.mxu0 0.0
      %1255 = vmatpush1.msra.mxu0 0.0
      %1256 = vmatprep.subr.mxu0 0.0
      %1257 = vmatpush1.msra.mxu0 0.0
      %1258 = vmatprep.subr.mxu0 0.0
      %1259 = vmatpush1.msra.mxu0 0.0
      %1260 = vmatprep.subr.mxu0 0.0
      %1261 = vmatpush1.msra.mxu0 0.0
      %1262 = vmatprep.subr.mxu0 0.0
      %1263 = vmatpush1.msra.mxu0 0.0
      %1264 = vmatprep.subr.mxu0 0.0
      %1265 = vmatpush1.msra.mxu0 0.0
      %1266 = vmatprep.subr.mxu0 0.0
      %1267 = vmatpush1.msra.mxu0 0.0
      %1268 = vmatprep.subr.mxu0 0.0
      %1269 = vmatpush1.msra.mxu0 0.0
      %1270 = vmatprep.subr.mxu0 0.0
      %1271 = vmatpush1.msra.mxu0 0.0
      %1272 = vmatprep.subr.mxu0 0.0
      %1273 = vmatpush1.msra.mxu0 0.0
      %1274 = vmatprep.subr.mxu0 0.0
      %1275 = vmatpush1.msra.mxu0 0.0
      %1276 = vmatprep.subr.mxu0 0.0
      %1277 = vmatpush1.msra.mxu0 0.0
      %1278 = vmatprep.subr.mxu0 0.0
      %1279 = vmatpush1.msra.mxu0 0.0
      %1280 = vmatprep.mubr.f32.mxu0 0.0
      %1281 = vmatmul.mubr.f32.gmra.mrb[0].mxu0 %v1208
      %v1282 = vpop.f32.mrb[0].mxu0
      %v1283 = vadd.f32 0.0, %v1282
      %v1284 = vpop.f32.mrb[0].mxu0
      %1285 = vmatprep.mubr.f32.mxu0 0.0
      %1286 = vmatmul.mubr.f32.gmra.mrb[0].mxu0 %v1211
      %v1287 = vpop.f32.mrb[0].mxu0
      %v1288 = vadd.f32 0.0, %v1287
      %v1289 = vpop.f32.mrb[0].mxu0
      %1290 = vmatprep.mubr.f32.mxu0 0.0
      %1291 = vmatmul.mubr.f32.gmra.mrb[0].mxu0 %v1214
      %v1292 = vpop.f32.mrb[0].mxu0
      %v1293 = vadd.f32 0.0, %v1292
      %v1294 = vpop.f32.mrb[0].mxu0
      %1295 = vdwg.mxu0
      %v1296 = vmul.f32 %v1283, %v447
      %v1297 = vmul.f32 %v1288, %v447
      %v1298 = vmul.f32 %v1293, %v447
      %v1299 = vadd.f32 %v1296, %v456
      %v1300 = vadd.f32 %v1297, %v456
      %v1301 = vadd.f32 %v1298, %v456
      %v1302 = vadd.f32 %v1299, 3.0
      %v1303 = vadd.f32 %v1300, 3.0
      %v1304 = vadd.f32 %v1301, 3.0
      %v1305 = vmax.f32 %v1302, 0.0
      %v1306 = vmax.f32 %v1303, 0.0
      %v1307 = vmax.f32 %v1304, 0.0
      %v1308 = vmin.f32 %v1305, 6.0
      %v1309 = vmin.f32 %v1306, 6.0
      %v1310 = vmin.f32 %v1307, 6.0
      %v1311 = vmul.f32 %v1308, 0.16666667
      %v1312 = vmul.f32 %v1309, 0.16666667
      %v1313 = vmul.f32 %v1310, 0.16666667
      %v1314 = vmul.f32 %v1299, %v1311
      %v1315 = vmul.f32 %v1300, %v1312
      %v1316 = vmul.f32 %v1301, %v1313
      %s1317 = scalar_lea.vmem [#allocation2], 168
      %1318 = vst.msk [vmem:[%s1317] sm:$0xff] %vm476, %v1314
      %1319 = vst.msk [vmem:[%s1317 + $0x8] sm:$0xff] %vm476, %v1315
      %1320 = vst.msk [vmem:[%s1317 + $0x10] sm:$0x3] %vm479, %v1316
      %s1321 = sadd.s32 %s340, 8
      %s1322 = smul.u32 %s1321, 24
      %s1323 = scalar_lea.vmem %s325, %s1322
      %v1324 = vld [vmem:[%s1323] sm:$0xff]
      %v1325 = vld [vmem:[%s1323 + $0x8] sm:$0xff]
      %v1326 = vld [vmem:[%s1323 + $0x10] sm:$0x3]
      %v1328 = vsel %vm349, %v1324, 0
      %v1331 = vsel %vm349, %v1325, 0
      %v1334 = vsel %vm349, %v1326, 0
      %1336 = vmatprep.subr.mxu0 0.0
      %1337 = vmatpush1.msra.mxu0 %v361
      %1338 = vmatprep.subr.mxu0 0.0
      %1339 = vmatpush1.msra.mxu0 0.0
      %1340 = vmatprep.subr.mxu0 0.0
      %1341 = vmatpush1.msra.mxu0 0.0
      %1342 = vmatprep.subr.mxu0 0.0
      %1343 = vmatpush1.msra.mxu0 0.0
      %1344 = vmatprep.subr.mxu0 0.0
      %1345 = vmatpush1.msra.mxu0 0.0
      %1346 = vmatprep.subr.mxu0 0.0
      %1347 = vmatpush1.msra.mxu0 0.0
      %1348 = vmatprep.subr.mxu0 0.0
      %1349 = vmatpush1.msra.mxu0 0.0
      %1350 = vmatprep.subr.mxu0 0.0
      %1351 = vmatpush1.msra.mxu0 0.0
      %1352 = vmatprep.subr.mxu0 0.0
      %1353 = vmatpush1.msra.mxu0 0.0
      %1354 = vmatprep.subr.mxu0 0.0
      %1355 = vmatpush1.msra.mxu0 0.0
      %1356 = vmatprep.subr.mxu0 0.0
      %1357 = vmatpush1.msra.mxu0 0.0
      %1358 = vmatprep.subr.mxu0 0.0
      %1359 = vmatpush1.msra.mxu0 0.0
      %1360 = vmatprep.subr.mxu0 0.0
      %1361 = vmatpush1.msra.mxu0 0.0
      %1362 = vmatprep.subr.mxu0 0.0
      %1363 = vmatpush1.msra.mxu0 0.0
      %1364 = vmatprep.subr.mxu0 0.0
      %1365 = vmatpush1.msra.mxu0 0.0
      %1366 = vmatprep.subr.mxu0 0.0
      %1367 = vmatpush1.msra.mxu0 0.0
      %1368 = vmatprep.subr.mxu0 0.0
      %1369 = vmatpush1.msra.mxu0 0.0
      %1370 = vmatprep.subr.mxu0 0.0
      %1371 = vmatpush1.msra.mxu0 0.0
      %1372 = vmatprep.subr.mxu0 0.0
      %1373 = vmatpush1.msra.mxu0 0.0
      %1374 = vmatprep.subr.mxu0 0.0
      %1375 = vmatpush1.msra.mxu0 0.0
      %1376 = vmatprep.subr.mxu0 0.0
      %1377 = vmatpush1.msra.mxu0 0.0
      %1378 = vmatprep.subr.mxu0 0.0
      %1379 = vmatpush1.msra.mxu0 0.0
      %1380 = vmatprep.subr.mxu0 0.0
      %1381 = vmatpush1.msra.mxu0 0.0
      %1382 = vmatprep.subr.mxu0 0.0
      %1383 = vmatpush1.msra.mxu0 0.0
      %1384 = vmatprep.subr.mxu0 0.0
      %1385 = vmatpush1.msra.mxu0 0.0
      %1386 = vmatprep.subr.mxu0 0.0
      %1387 = vmatpush1.msra.mxu0 0.0
      %1388 = vmatprep.subr.mxu0 0.0
      %1389 = vmatpush1.msra.mxu0 0.0
      %1390 = vmatprep.subr.mxu0 0.0
      %1391 = vmatpush1.msra.mxu0 0.0
      %1392 = vmatprep.subr.mxu0 0.0
      %1393 = vmatpush1.msra.mxu0 0.0
      %1394 = vmatprep.subr.mxu0 0.0
      %1395 = vmatpush1.msra.mxu0 0.0
      %1396 = vmatprep.subr.mxu0 0.0
      %1397 = vmatpush1.msra.mxu0 0.0
      %1398 = vmatprep.subr.mxu0 0.0
      %1399 = vmatpush1.msra.mxu0 0.0
      %1400 = vmatprep.mubr.f32.mxu0 0.0
      %1401 = vmatmul.mubr.f32.gmra.mrb[0].mxu0 %v1328
      %v1402 = vpop.f32.mrb[0].mxu0
      %v1403 = vadd.f32 0.0, %v1402
      %v1404 = vpop.f32.mrb[0].mxu0
      %1405 = vmatprep.mubr.f32.mxu0 0.0
      %1406 = vmatmul.mubr.f32.gmra.mrb[0].mxu0 %v1331
      %v1407 = vpop.f32.mrb[0].mxu0
      %v1408 = vadd.f32 0.0, %v1407
      %v1409 = vpop.f32.mrb[0].mxu0
      %1410 = vmatprep.mubr.f32.mxu0 0.0
      %1411 = vmatmul.mubr.f32.gmra.mrb[0].mxu0 %v1334
      %v1412 = vpop.f32.mrb[0].mxu0
      %v1413 = vadd.f32 0.0, %v1412
      %v1414 = vpop.f32.mrb[0].mxu0
      %1415 = vdwg.mxu0
      %v1416 = vmul.f32 %v1403, %v447
      %v1417 = vmul.f32 %v1408, %v447
      %v1418 = vmul.f32 %v1413, %v447
      %v1419 = vadd.f32 %v1416, %v456
      %v1420 = vadd.f32 %v1417, %v456
      %v1421 = vadd.f32 %v1418, %v456
      %v1422 = vadd.f32 %v1419, 3.0
      %v1423 = vadd.f32 %v1420, 3.0
      %v1424 = vadd.f32 %v1421, 3.0
      %v1425 = vmax.f32 %v1422, 0.0
      %v1426 = vmax.f32 %v1423, 0.0
      %v1427 = vmax.f32 %v1424, 0.0
      %v1428 = vmin.f32 %v1425, 6.0
      %v1429 = vmin.f32 %v1426, 6.0
      %v1430 = vmin.f32 %v1427, 6.0
      %v1431 = vmul.f32 %v1428, 0.16666667
      %v1432 = vmul.f32 %v1429, 0.16666667
      %v1433 = vmul.f32 %v1430, 0.16666667
      %v1434 = vmul.f32 %v1419, %v1431
      %v1435 = vmul.f32 %v1420, %v1432
      %v1436 = vmul.f32 %v1421, %v1433
      %s1437 = scalar_lea.vmem [#allocation2], 192
      %1438 = vst.msk [vmem:[%s1437] sm:$0xff] %vm476, %v1434
      %1439 = vst.msk [vmem:[%s1437 + $0x8] sm:$0xff] %vm476, %v1435
      %1440 = vst.msk [vmem:[%s1437 + $0x10] sm:$0x3] %vm479, %v1436
      %s1441 = sadd.s32 %s340, 9
      %s1442 = smul.u32 %s1441, 24
      %s1443 = scalar_lea.vmem %s325, %s1442
      %v1444 = vld [vmem:[%s1443] sm:$0xff]
      %v1445 = vld [vmem:[%s1443 + $0x8] sm:$0xff]
      %v1446 = vld [vmem:[%s1443 + $0x10] sm:$0x3]
      %v1448 = vsel %vm349, %v1444, 0
      %v1451 = vsel %vm349, %v1445, 0
      %v1454 = vsel %vm349, %v1446, 0
      %1456 = vmatprep.subr.mxu0 0.0
      %1457 = vmatpush1.msra.mxu0 %v361
      %1458 = vmatprep.subr.mxu0 0.0
      %1459 = vmatpush1.msra.mxu0 0.0
      %1460 = vmatprep.subr.mxu0 0.0
      %1461 = vmatpush1.msra.mxu0 0.0
      %1462 = vmatprep.subr.mxu0 0.0
      %1463 = vmatpush1.msra.mxu0 0.0
      %1464 = vmatprep.subr.mxu0 0.0
      %1465 = vmatpush1.msra.mxu0 0.0
      %1466 = vmatprep.subr.mxu0 0.0
      %1467 = vmatpush1.msra.mxu0 0.0
      %1468 = vmatprep.subr.mxu0 0.0
      %1469 = vmatpush1.msra.mxu0 0.0
      %1470 = vmatprep.subr.mxu0 0.0
      %1471 = vmatpush1.msra.mxu0 0.0
      %1472 = vmatprep.subr.mxu0 0.0
      %1473 = vmatpush1.msra.mxu0 0.0
      %1474 = vmatprep.subr.mxu0 0.0
      %1475 = vmatpush1.msra.mxu0 0.0
      %1476 = vmatprep.subr.mxu0 0.0
      %1477 = vmatpush1.msra.mxu0 0.0
      %1478 = vmatprep.subr.mxu0 0.0
      %1479 = vmatpush1.msra.mxu0 0.0
      %1480 = vmatprep.subr.mxu0 0.0
      %1481 = vmatpush1.msra.mxu0 0.0
      %1482 = vmatprep.subr.mxu0 0.0
      %1483 = vmatpush1.msra.mxu0 0.0
      %1484 = vmatprep.subr.mxu0 0.0
      %1485 = vmatpush1.msra.mxu0 0.0
      %1486 = vmatprep.subr.mxu0 0.0
      %1487 = vmatpush1.msra.mxu0 0.0
      %1488 = vmatprep.subr.mxu0 0.0
      %1489 = vmatpush1.msra.mxu0 0.0
      %1490 = vmatprep.subr.mxu0 0.0
      %1491 = vmatpush1.msra.mxu0 0.0
      %1492 = vmatprep.subr.mxu0 0.0
      %1493 = vmatpush1.msra.mxu0 0.0
      %1494 = vmatprep.subr.mxu0 0.0
      %1495 = vmatpush1.msra.mxu0 0.0
      %1496 = vmatprep.subr.mxu0 0.0
      %1497 = vmatpush1.msra.mxu0 0.0
      %1498 = vmatprep.subr.mxu0 0.0
      %1499 = vmatpush1.msra.mxu0 0.0
      %1500 = vmatprep.subr.mxu0 0.0
      %1501 = vmatpush1.msra.mxu0 0.0
      %1502 = vmatprep.subr.mxu0 0.0
      %1503 = vmatpush1.msra.mxu0 0.0
      %1504 = vmatprep.subr.mxu0 0.0
      %1505 = vmatpush1.msra.mxu0 0.0
      %1506 = vmatprep.subr.mxu0 0.0
      %1507 = vmatpush1.msra.mxu0 0.0
      %1508 = vmatprep.subr.mxu0 0.0
      %1509 = vmatpush1.msra.mxu0 0.0
      %1510 = vmatprep.subr.mxu0 0.0
      %1511 = vmatpush1.msra.mxu0 0.0
      %1512 = vmatprep.subr.mxu0 0.0
      %1513 = vmatpush1.msra.mxu0 0.0
      %1514 = vmatprep.subr.mxu0 0.0
      %1515 = vmatpush1.msra.mxu0 0.0
      %1516 = vmatprep.subr.mxu0 0.0
      %1517 = vmatpush1.msra.mxu0 0.0
      %1518 = vmatprep.subr.mxu0 0.0
      %1519 = vmatpush1.msra.mxu0 0.0
      %1520 = vmatprep.mubr.f32.mxu0 0.0
      %1521 = vmatmul.mubr.f32.gmra.mrb[0].mxu0 %v1448
      %v1522 = vpop.f32.mrb[0].mxu0
      %v1523 = vadd.f32 0.0, %v1522
      %v1524 = vpop.f32.mrb[0].mxu0
      %1525 = vmatprep.mubr.f32.mxu0 0.0
      %1526 = vmatmul.mubr.f32.gmra.mrb[0].mxu0 %v1451
      %v1527 = vpop.f32.mrb[0].mxu0
      %v1528 = vadd.f32 0.0, %v1527
      %v1529 = vpop.f32.mrb[0].mxu0
      %1530 = vmatprep.mubr.f32.mxu0 0.0
      %1531 = vmatmul.mubr.f32.gmra.mrb[0].mxu0 %v1454
      %v1532 = vpop.f32.mrb[0].mxu0
      %v1533 = vadd.f32 0.0, %v1532
      %v1534 = vpop.f32.mrb[0].mxu0
      %1535 = vdwg.mxu0
      %v1536 = vmul.f32 %v1523, %v447
      %v1537 = vmul.f32 %v1528, %v447
      %v1538 = vmul.f32 %v1533, %v447
      %v1539 = vadd.f32 %v1536, %v456
      %v1540 = vadd.f32 %v1537, %v456
      %v1541 = vadd.f32 %v1538, %v456
      %v1542 = vadd.f32 %v1539, 3.0
      %v1543 = vadd.f32 %v1540, 3.0
      %v1544 = vadd.f32 %v1541, 3.0
      %v1545 = vmax.f32 %v1542, 0.0
      %v1546 = vmax.f32 %v1543, 0.0
      %v1547 = vmax.f32 %v1544, 0.0
      %v1548 = vmin.f32 %v1545, 6.0
      %v1549 = vmin.f32 %v1546, 6.0
      %v1550 = vmin.f32 %v1547, 6.0
      %v1551 = vmul.f32 %v1548, 0.16666667
      %v1552 = vmul.f32 %v1549, 0.16666667
      %v1553 = vmul.f32 %v1550, 0.16666667
      %v1554 = vmul.f32 %v1539, %v1551
      %v1555 = vmul.f32 %v1540, %v1552
      %v1556 = vmul.f32 %v1541, %v1553
      %s1557 = scalar_lea.vmem [#allocation2], 216
      %1558 = vst.msk [vmem:[%s1557] sm:$0xff] %vm476, %v1554
      %1559 = vst.msk [vmem:[%s1557 + $0x8] sm:$0xff] %vm476, %v1555
      %1560 = vst.msk [vmem:[%s1557 + $0x10] sm:$0x3] %vm479, %v1556
      %s1561 = sadd.s32 %s340, 10
      %s1562 = smul.u32 %s1561, 24
      %s1563 = scalar_lea.vmem %s325, %s1562
      %v1564 = vld [vmem:[%s1563] sm:$0xff]
      %v1565 = vld [vmem:[%s1563 + $0x8] sm:$0xff]
      %v1566 = vld [vmem:[%s1563 + $0x10] sm:$0x3]
      %v1568 = vsel %vm349, %v1564, 0
      %v1571 = vsel %vm349, %v1565, 0
      %v1574 = vsel %vm349, %v1566, 0
      %1576 = vmatprep.subr.mxu0 0.0
      %1577 = vmatpush1.msra.mxu0 %v361
      %1578 = vmatprep.subr.mxu0 0.0
      %1579 = vmatpush1.msra.mxu0 0.0
      %1580 = vmatprep.subr.mxu0 0.0
      %1581 = vmatpush1.msra.mxu0 0.0
      %1582 = vmatprep.subr.mxu0 0.0
      %1583 = vmatpush1.msra.mxu0 0.0
      %1584 = vmatprep.subr.mxu0 0.0
      %1585 = vmatpush1.msra.mxu0 0.0
      %1586 = vmatprep.subr.mxu0 0.0
      %1587 = vmatpush1.msra.mxu0 0.0
      %1588 = vmatprep.subr.mxu0 0.0
      %1589 = vmatpush1.msra.mxu0 0.0
      %1590 = vmatprep.subr.mxu0 0.0
      %1591 = vmatpush1.msra.mxu0 0.0
      %1592 = vmatprep.subr.mxu0 0.0
      %1593 = vmatpush1.msra.mxu0 0.0
      %1594 = vmatprep.subr.mxu0 0.0
      %1595 = vmatpush1.msra.mxu0 0.0
      %1596 = vmatprep.subr.mxu0 0.0
      %1597 = vmatpush1.msra.mxu0 0.0
      %1598 = vmatprep.subr.mxu0 0.0
      %1599 = vmatpush1.msra.mxu0 0.0
      %1600 = vmatprep.subr.mxu0 0.0
      %1601 = vmatpush1.msra.mxu0 0.0
      %1602 = vmatprep.subr.mxu0 0.0
      %1603 = vmatpush1.msra.mxu0 0.0
      %1604 = vmatprep.subr.mxu0 0.0
      %1605 = vmatpush1.msra.mxu0 0.0
      %1606 = vmatprep.subr.mxu0 0.0
      %1607 = vmatpush1.msra.mxu0 0.0
      %1608 = vmatprep.subr.mxu0 0.0
      %1609 = vmatpush1.msra.mxu0 0.0
      %1610 = vmatprep.subr.mxu0 0.0
      %1611 = vmatpush1.msra.mxu0 0.0
      %1612 = vmatprep.subr.mxu0 0.0
      %1613 = vmatpush1.msra.mxu0 0.0
      %1614 = vmatprep.subr.mxu0 0.0
      %1615 = vmatpush1.msra.mxu0 0.0
      %1616 = vmatprep.subr.mxu0 0.0
      %1617 = vmatpush1.msra.mxu0 0.0
      %1618 = vmatprep.subr.mxu0 0.0
      %1619 = vmatpush1.msra.mxu0 0.0
      %1620 = vmatprep.subr.mxu0 0.0
      %1621 = vmatpush1.msra.mxu0 0.0
      %1622 = vmatprep.subr.mxu0 0.0
      %1623 = vmatpush1.msra.mxu0 0.0
      %1624 = vmatprep.subr.mxu0 0.0
      %1625 = vmatpush1.msra.mxu0 0.0
      %1626 = vmatprep.subr.mxu0 0.0
      %1627 = vmatpush1.msra.mxu0 0.0
      %1628 = vmatprep.subr.mxu0 0.0
      %1629 = vmatpush1.msra.mxu0 0.0
      %1630 = vmatprep.subr.mxu0 0.0
      %1631 = vmatpush1.msra.mxu0 0.0
      %1632 = vmatprep.subr.mxu0 0.0
      %1633 = vmatpush1.msra.mxu0 0.0
      %1634 = vmatprep.subr.mxu0 0.0
      %1635 = vmatpush1.msra.mxu0 0.0
      %1636 = vmatprep.subr.mxu0 0.0
      %1637 = vmatpush1.msra.mxu0 0.0
      %1638 = vmatprep.subr.mxu0 0.0
      %1639 = vmatpush1.msra.mxu0 0.0
      %1640 = vmatprep.mubr.f32.mxu0 0.0
      %1641 = vmatmul.mubr.f32.gmra.mrb[0].mxu0 %v1568
      %v1642 = vpop.f32.mrb[0].mxu0
      %v1643 = vadd.f32 0.0, %v1642
      %v1644 = vpop.f32.mrb[0].mxu0
      %1645 = vmatprep.mubr.f32.mxu0 0.0
      %1646 = vmatmul.mubr.f32.gmra.mrb[0].mxu0 %v1571
      %v1647 = vpop.f32.mrb[0].mxu0
      %v1648 = vadd.f32 0.0, %v1647
      %v1649 = vpop.f32.mrb[0].mxu0
      %1650 = vmatprep.mubr.f32.mxu0 0.0
      %1651 = vmatmul.mubr.f32.gmra.mrb[0].mxu0 %v1574
      %v1652 = vpop.f32.mrb[0].mxu0
      %v1653 = vadd.f32 0.0, %v1652
      %v1654 = vpop.f32.mrb[0].mxu0
      %1655 = vdwg.mxu0
      %v1656 = vmul.f32 %v1643, %v447
      %v1657 = vmul.f32 %v1648, %v447
      %v1658 = vmul.f32 %v1653, %v447
      %v1659 = vadd.f32 %v1656, %v456
      %v1660 = vadd.f32 %v1657, %v456
      %v1661 = vadd.f32 %v1658, %v456
      %v1662 = vadd.f32 %v1659, 3.0
      %v1663 = vadd.f32 %v1660, 3.0
      %v1664 = vadd.f32 %v1661, 3.0
      %v1665 = vmax.f32 %v1662, 0.0
      %v1666 = vmax.f32 %v1663, 0.0
      %v1667 = vmax.f32 %v1664, 0.0
      %v1668 = vmin.f32 %v1665, 6.0
      %v1669 = vmin.f32 %v1666, 6.0
      %v1670 = vmin.f32 %v1667, 6.0
      %v1671 = vmul.f32 %v1668, 0.16666667
      %v1672 = vmul.f32 %v1669, 0.16666667
      %v1673 = vmul.f32 %v1670, 0.16666667
      %v1674 = vmul.f32 %v1659, %v1671
      %v1675 = vmul.f32 %v1660, %v1672
      %v1676 = vmul.f32 %v1661, %v1673
      %s1677 = scalar_lea.vmem [#allocation2], 240
      %1678 = vst.msk [vmem:[%s1677] sm:$0xff] %vm476, %v1674
      %1679 = vst.msk [vmem:[%s1677 + $0x8] sm:$0xff] %vm476, %v1675
      %1680 = vst.msk [vmem:[%s1677 + $0x10] sm:$0x3] %vm479, %v1676
      %s1681 = sadd.s32 %s340, 11
      %s1682 = smul.u32 %s1681, 24
      %s1683 = scalar_lea.vmem %s325, %s1682
      %v1684 = vld [vmem:[%s1683] sm:$0xff]
      %v1685 = vld [vmem:[%s1683 + $0x8] sm:$0xff]
      %v1686 = vld [vmem:[%s1683 + $0x10] sm:$0x3]
      %v1688 = vsel %vm349, %v1684, 0
      %v1691 = vsel %vm349, %v1685, 0
      %v1694 = vsel %vm349, %v1686, 0
      %1696 = vmatprep.subr.mxu0 0.0
      %1697 = vmatpush1.msra.mxu0 %v361
      %1698 = vmatprep.subr.mxu0 0.0
      %1699 = vmatpush1.msra.mxu0 0.0
      %1700 = vmatprep.subr.mxu0 0.0
      %1701 = vmatpush1.msra.mxu0 0.0
      %1702 = vmatprep.subr.mxu0 0.0
      %1703 = vmatpush1.msra.mxu0 0.0
      %1704 = vmatprep.subr.mxu0 0.0
      %1705 = vmatpush1.msra.mxu0 0.0
      %1706 = vmatprep.subr.mxu0 0.0
      %1707 = vmatpush1.msra.mxu0 0.0
      %1708 = vmatprep.subr.mxu0 0.0
      %1709 = vmatpush1.msra.mxu0 0.0
      %1710 = vmatprep.subr.mxu0 0.0
      %1711 = vmatpush1.msra.mxu0 0.0
      %1712 = vmatprep.subr.mxu0 0.0
      %1713 = vmatpush1.msra.mxu0 0.0
      %1714 = vmatprep.subr.mxu0 0.0
      %1715 = vmatpush1.msra.mxu0 0.0
      %1716 = vmatprep.subr.mxu0 0.0
      %1717 = vmatpush1.msra.mxu0 0.0
      %1718 = vmatprep.subr.mxu0 0.0
      %1719 = vmatpush1.msra.mxu0 0.0
      %1720 = vmatprep.subr.mxu0 0.0
      %1721 = vmatpush1.msra.mxu0 0.0
      %1722 = vmatprep.subr.mxu0 0.0
      %1723 = vmatpush1.msra.mxu0 0.0
      %1724 = vmatprep.subr.mxu0 0.0
      %1725 = vmatpush1.msra.mxu0 0.0
      %1726 = vmatprep.subr.mxu0 0.0
      %1727 = vmatpush1.msra.mxu0 0.0
      %1728 = vmatprep.subr.mxu0 0.0
      %1729 = vmatpush1.msra.mxu0 0.0
      %1730 = vmatprep.subr.mxu0 0.0
      %1731 = vmatpush1.msra.mxu0 0.0
      %1732 = vmatprep.subr.mxu0 0.0
      %1733 = vmatpush1.msra.mxu0 0.0
      %1734 = vmatprep.subr.mxu0 0.0
      %1735 = vmatpush1.msra.mxu0 0.0
      %1736 = vmatprep.subr.mxu0 0.0
      %1737 = vmatpush1.msra.mxu0 0.0
      %1738 = vmatprep.subr.mxu0 0.0
      %1739 = vmatpush1.msra.mxu0 0.0
      %1740 = vmatprep.subr.mxu0 0.0
      %1741 = vmatpush1.msra.mxu0 0.0
      %1742 = vmatprep.subr.mxu0 0.0
      %1743 = vmatpush1.msra.mxu0 0.0
      %1744 = vmatprep.subr.mxu0 0.0
      %1745 = vmatpush1.msra.mxu0 0.0
      %1746 = vmatprep.subr.mxu0 0.0
      %1747 = vmatpush1.msra.mxu0 0.0
      %1748 = vmatprep.subr.mxu0 0.0
      %1749 = vmatpush1.msra.mxu0 0.0
      %1750 = vmatprep.subr.mxu0 0.0
      %1751 = vmatpush1.msra.mxu0 0.0
      %1752 = vmatprep.subr.mxu0 0.0
      %1753 = vmatpush1.msra.mxu0 0.0
      %1754 = vmatprep.subr.mxu0 0.0
      %1755 = vmatpush1.msra.mxu0 0.0
      %1756 = vmatprep.subr.mxu0 0.0
      %1757 = vmatpush1.msra.mxu0 0.0
      %1758 = vmatprep.subr.mxu0 0.0
      %1759 = vmatpush1.msra.mxu0 0.0
      %1760 = vmatprep.mubr.f32.mxu0 0.0
      %1761 = vmatmul.mubr.f32.gmra.mrb[0].mxu0 %v1688
      %v1762 = vpop.f32.mrb[0].mxu0
      %v1763 = vadd.f32 0.0, %v1762
      %v1764 = vpop.f32.mrb[0].mxu0
      %1765 = vmatprep.mubr.f32.mxu0 0.0
      %1766 = vmatmul.mubr.f32.gmra.mrb[0].mxu0 %v1691
      %v1767 = vpop.f32.mrb[0].mxu0
      %v1768 = vadd.f32 0.0, %v1767
      %v1769 = vpop.f32.mrb[0].mxu0
      %1770 = vmatprep.mubr.f32.mxu0 0.0
      %1771 = vmatmul.mubr.f32.gmra.mrb[0].mxu0 %v1694
      %v1772 = vpop.f32.mrb[0].mxu0
      %v1773 = vadd.f32 0.0, %v1772
      %v1774 = vpop.f32.mrb[0].mxu0
      %1775 = vdwg.mxu0
      %v1776 = vmul.f32 %v1763, %v447
      %v1777 = vmul.f32 %v1768, %v447
      %v1778 = vmul.f32 %v1773, %v447
      %v1779 = vadd.f32 %v1776, %v456
      %v1780 = vadd.f32 %v1777, %v456
      %v1781 = vadd.f32 %v1778, %v456
      %v1782 = vadd.f32 %v1779, 3.0
      %v1783 = vadd.f32 %v1780, 3.0
      %v1784 = vadd.f32 %v1781, 3.0
      %v1785 = vmax.f32 %v1782, 0.0
      %v1786 = vmax.f32 %v1783, 0.0
      %v1787 = vmax.f32 %v1784, 0.0
      %v1788 = vmin.f32 %v1785, 6.0
      %v1789 = vmin.f32 %v1786, 6.0
      %v1790 = vmin.f32 %v1787, 6.0
      %v1791 = vmul.f32 %v1788, 0.16666667
      %v1792 = vmul.f32 %v1789, 0.16666667
      %v1793 = vmul.f32 %v1790, 0.16666667
      %v1794 = vmul.f32 %v1779, %v1791
      %v1795 = vmul.f32 %v1780, %v1792
      %v1796 = vmul.f32 %v1781, %v1793
      %s1797 = scalar_lea.vmem [#allocation2], 264
      %1798 = vst.msk [vmem:[%s1797] sm:$0xff] %vm476, %v1794
      %1799 = vst.msk [vmem:[%s1797 + $0x8] sm:$0xff] %vm476, %v1795
      %1800 = vst.msk [vmem:[%s1797 + $0x10] sm:$0x3] %vm479, %v1796
      %s1801 = sadd.s32 %s340, 12
      %s1802 = smul.u32 %s1801, 24
      %s1803 = scalar_lea.vmem %s325, %s1802
      %v1804 = vld [vmem:[%s1803] sm:$0xff]
      %v1805 = vld [vmem:[%s1803 + $0x8] sm:$0xff]
      %v1806 = vld [vmem:[%s1803 + $0x10] sm:$0x3]
      %v1808 = vsel %vm349, %v1804, 0
      %v1811 = vsel %vm349, %v1805, 0
      %v1814 = vsel %vm349, %v1806, 0
      %1816 = vmatprep.subr.mxu0 0.0
      %1817 = vmatpush1.msra.mxu0 %v361
      %1818 = vmatprep.subr.mxu0 0.0
      %1819 = vmatpush1.msra.mxu0 0.0
      %1820 = vmatprep.subr.mxu0 0.0
      %1821 = vmatpush1.msra.mxu0 0.0
      %1822 = vmatprep.subr.mxu0 0.0
      %1823 = vmatpush1.msra.mxu0 0.0
      %1824 = vmatprep.subr.mxu0 0.0
      %1825 = vmatpush1.msra.mxu0 0.0
      %1826 = vmatprep.subr.mxu0 0.0
      %1827 = vmatpush1.msra.mxu0 0.0
      %1828 = vmatprep.subr.mxu0 0.0
      %1829 = vmatpush1.msra.mxu0 0.0
      %1830 = vmatprep.subr.mxu0 0.0
      %1831 = vmatpush1.msra.mxu0 0.0
      %1832 = vmatprep.subr.mxu0 0.0
      %1833 = vmatpush1.msra.mxu0 0.0
      %1834 = vmatprep.subr.mxu0 0.0
      %1835 = vmatpush1.msra.mxu0 0.0
      %1836 = vmatprep.subr.mxu0 0.0
      %1837 = vmatpush1.msra.mxu0 0.0
      %1838 = vmatprep.subr.mxu0 0.0
      %1839 = vmatpush1.msra.mxu0 0.0
      %1840 = vmatprep.subr.mxu0 0.0
      %1841 = vmatpush1.msra.mxu0 0.0
      %1842 = vmatprep.subr.mxu0 0.0
      %1843 = vmatpush1.msra.mxu0 0.0
      %1844 = vmatprep.subr.mxu0 0.0
      %1845 = vmatpush1.msra.mxu0 0.0
      %1846 = vmatprep.subr.mxu0 0.0
      %1847 = vmatpush1.msra.mxu0 0.0
      %1848 = vmatprep.subr.mxu0 0.0
      %1849 = vmatpush1.msra.mxu0 0.0
      %1850 = vmatprep.subr.mxu0 0.0
      %1851 = vmatpush1.msra.mxu0 0.0
      %1852 = vmatprep.subr.mxu0 0.0
      %1853 = vmatpush1.msra.mxu0 0.0
      %1854 = vmatprep.subr.mxu0 0.0
      %1855 = vmatpush1.msra.mxu0 0.0
      %1856 = vmatprep.subr.mxu0 0.0
      %1857 = vmatpush1.msra.mxu0 0.0
      %1858 = vmatprep.subr.mxu0 0.0
      %1859 = vmatpush1.msra.mxu0 0.0
      %1860 = vmatprep.subr.mxu0 0.0
      %1861 = vmatpush1.msra.mxu0 0.0
      %1862 = vmatprep.subr.mxu0 0.0
      %1863 = vmatpush1.msra.mxu0 0.0
      %1864 = vmatprep.subr.mxu0 0.0
      %1865 = vmatpush1.msra.mxu0 0.0
      %1866 = vmatprep.subr.mxu0 0.0
      %1867 = vmatpush1.msra.mxu0 0.0
      %1868 = vmatprep.subr.mxu0 0.0
      %1869 = vmatpush1.msra.mxu0 0.0
      %1870 = vmatprep.subr.mxu0 0.0
      %1871 = vmatpush1.msra.mxu0 0.0
      %1872 = vmatprep.subr.mxu0 0.0
      %1873 = vmatpush1.msra.mxu0 0.0
      %1874 = vmatprep.subr.mxu0 0.0
      %1875 = vmatpush1.msra.mxu0 0.0
      %1876 = vmatprep.subr.mxu0 0.0
      %1877 = vmatpush1.msra.mxu0 0.0
      %1878 = vmatprep.subr.mxu0 0.0
      %1879 = vmatpush1.msra.mxu0 0.0
      %1880 = vmatprep.mubr.f32.mxu0 0.0
      %1881 = vmatmul.mubr.f32.gmra.mrb[0].mxu0 %v1808
      %v1882 = vpop.f32.mrb[0].mxu0
      %v1883 = vadd.f32 0.0, %v1882
      %v1884 = vpop.f32.mrb[0].mxu0
      %1885 = vmatprep.mubr.f32.mxu0 0.0
      %1886 = vmatmul.mubr.f32.gmra.mrb[0].mxu0 %v1811
      %v1887 = vpop.f32.mrb[0].mxu0
      %v1888 = vadd.f32 0.0, %v1887
      %v1889 = vpop.f32.mrb[0].mxu0
      %1890 = vmatprep.mubr.f32.mxu0 0.0
      %1891 = vmatmul.mubr.f32.gmra.mrb[0].mxu0 %v1814
      %v1892 = vpop.f32.mrb[0].mxu0
      %v1893 = vadd.f32 0.0, %v1892
      %v1894 = vpop.f32.mrb[0].mxu0
      %1895 = vdwg.mxu0
      %v1896 = vmul.f32 %v1883, %v447
      %v1897 = vmul.f32 %v1888, %v447
      %v1898 = vmul.f32 %v1893, %v447
      %v1899 = vadd.f32 %v1896, %v456
      %v1900 = vadd.f32 %v1897, %v456
      %v1901 = vadd.f32 %v1898, %v456
      %v1902 = vadd.f32 %v1899, 3.0
      %v1903 = vadd.f32 %v1900, 3.0
      %v1904 = vadd.f32 %v1901, 3.0
      %v1905 = vmax.f32 %v1902, 0.0
      %v1906 = vmax.f32 %v1903, 0.0
      %v1907 = vmax.f32 %v1904, 0.0
      %v1908 = vmin.f32 %v1905, 6.0
      %v1909 = vmin.f32 %v1906, 6.0
      %v1910 = vmin.f32 %v1907, 6.0
      %v1911 = vmul.f32 %v1908, 0.16666667
      %v1912 = vmul.f32 %v1909, 0.16666667
      %v1913 = vmul.f32 %v1910, 0.16666667
      %v1914 = vmul.f32 %v1899, %v1911
      %v1915 = vmul.f32 %v1900, %v1912
      %v1916 = vmul.f32 %v1901, %v1913
      %s1917 = scalar_lea.vmem [#allocation2], 288
      %1918 = vst.msk [vmem:[%s1917] sm:$0xff] %vm476, %v1914
      %1919 = vst.msk [vmem:[%s1917 + $0x8] sm:$0xff] %vm476, %v1915
      %1920 = vst.msk [vmem:[%s1917 + $0x10] sm:$0x3] %vm479, %v1916
      %s1921 = sadd.s32 %s340, 13
      %s1922 = smul.u32 %s1921, 24
      %s1923 = scalar_lea.vmem %s325, %s1922
      %v1924 = vld [vmem:[%s1923] sm:$0xff]
      %v1925 = vld [vmem:[%s1923 + $0x8] sm:$0xff]
      %v1926 = vld [vmem:[%s1923 + $0x10] sm:$0x3]
      %v1928 = vsel %vm349, %v1924, 0
      %v1931 = vsel %vm349, %v1925, 0
      %v1934 = vsel %vm349, %v1926, 0
      %1936 = vmatprep.subr.mxu0 0.0
      %1937 = vmatpush1.msra.mxu0 %v361
      %1938 = vmatprep.subr.mxu0 0.0
      %1939 = vmatpush1.msra.mxu0 0.0
      %1940 = vmatprep.subr.mxu0 0.0
      %1941 = vmatpush1.msra.mxu0 0.0
      %1942 = vmatprep.subr.mxu0 0.0
      %1943 = vmatpush1.msra.mxu0 0.0
      %1944 = vmatprep.subr.mxu0 0.0
      %1945 = vmatpush1.msra.mxu0 0.0
      %1946 = vmatprep.subr.mxu0 0.0
      %1947 = vmatpush1.msra.mxu0 0.0
      %1948 = vmatprep.subr.mxu0 0.0
      %1949 = vmatpush1.msra.mxu0 0.0
      %1950 = vmatprep.subr.mxu0 0.0
      %1951 = vmatpush1.msra.mxu0 0.0
      %1952 = vmatprep.subr.mxu0 0.0
      %1953 = vmatpush1.msra.mxu0 0.0
      %1954 = vmatprep.subr.mxu0 0.0
      %1955 = vmatpush1.msra.mxu0 0.0
      %1956 = vmatprep.subr.mxu0 0.0
      %1957 = vmatpush1.msra.mxu0 0.0
      %1958 = vmatprep.subr.mxu0 0.0
      %1959 = vmatpush1.msra.mxu0 0.0
      %1960 = vmatprep.subr.mxu0 0.0
      %1961 = vmatpush1.msra.mxu0 0.0
      %1962 = vmatprep.subr.mxu0 0.0
      %1963 = vmatpush1.msra.mxu0 0.0
      %1964 = vmatprep.subr.mxu0 0.0
      %1965 = vmatpush1.msra.mxu0 0.0
      %1966 = vmatprep.subr.mxu0 0.0
      %1967 = vmatpush1.msra.mxu0 0.0
      %1968 = vmatprep.subr.mxu0 0.0
      %1969 = vmatpush1.msra.mxu0 0.0
      %1970 = vmatprep.subr.mxu0 0.0
      %1971 = vmatpush1.msra.mxu0 0.0
      %1972 = vmatprep.subr.mxu0 0.0
      %1973 = vmatpush1.msra.mxu0 0.0
      %1974 = vmatprep.subr.mxu0 0.0
      %1975 = vmatpush1.msra.mxu0 0.0
      %1976 = vmatprep.subr.mxu0 0.0
      %1977 = vmatpush1.msra.mxu0 0.0
      %1978 = vmatprep.subr.mxu0 0.0
      %1979 = vmatpush1.msra.mxu0 0.0
      %1980 = vmatprep.subr.mxu0 0.0
      %1981 = vmatpush1.msra.mxu0 0.0
      %1982 = vmatprep.subr.mxu0 0.0
      %1983 = vmatpush1.msra.mxu0 0.0
      %1984 = vmatprep.subr.mxu0 0.0
      %1985 = vmatpush1.msra.mxu0 0.0
      %1986 = vmatprep.subr.mxu0 0.0
      %1987 = vmatpush1.msra.mxu0 0.0
      %1988 = vmatprep.subr.mxu0 0.0
      %1989 = vmatpush1.msra.mxu0 0.0
      %1990 = vmatprep.subr.mxu0 0.0
      %1991 = vmatpush1.msra.mxu0 0.0
      %1992 = vmatprep.subr.mxu0 0.0
      %1993 = vmatpush1.msra.mxu0 0.0
      %1994 = vmatprep.subr.mxu0 0.0
      %1995 = vmatpush1.msra.mxu0 0.0
      %1996 = vmatprep.subr.mxu0 0.0
      %1997 = vmatpush1.msra.mxu0 0.0
      %1998 = vmatprep.subr.mxu0 0.0
      %1999 = vmatpush1.msra.mxu0 0.0
      %2000 = vmatprep.mubr.f32.mxu0 0.0
      %2001 = vmatmul.mubr.f32.gmra.mrb[0].mxu0 %v1928
      %v2002 = vpop.f32.mrb[0].mxu0
      %v2003 = vadd.f32 0.0, %v2002
      %v2004 = vpop.f32.mrb[0].mxu0
      %2005 = vmatprep.mubr.f32.mxu0 0.0
      %2006 = vmatmul.mubr.f32.gmra.mrb[0].mxu0 %v1931
      %v2007 = vpop.f32.mrb[0].mxu0
      %v2008 = vadd.f32 0.0, %v2007
      %v2009 = vpop.f32.mrb[0].mxu0
      %2010 = vmatprep.mubr.f32.mxu0 0.0
      %2011 = vmatmul.mubr.f32.gmra.mrb[0].mxu0 %v1934
      %v2012 = vpop.f32.mrb[0].mxu0
      %v2013 = vadd.f32 0.0, %v2012
      %v2014 = vpop.f32.mrb[0].mxu0
      %2015 = vdwg.mxu0
      %v2016 = vmul.f32 %v2003, %v447
      %v2017 = vmul.f32 %v2008, %v447
      %v2018 = vmul.f32 %v2013, %v447
      %v2019 = vadd.f32 %v2016, %v456
      %v2020 = vadd.f32 %v2017, %v456
      %v2021 = vadd.f32 %v2018, %v456
      %v2022 = vadd.f32 %v2019, 3.0
      %v2023 = vadd.f32 %v2020, 3.0
      %v2024 = vadd.f32 %v2021, 3.0
      %v2025 = vmax.f32 %v2022, 0.0
      %v2026 = vmax.f32 %v2023, 0.0
      %v2027 = vmax.f32 %v2024, 0.0
      %v2028 = vmin.f32 %v2025, 6.0
      %v2029 = vmin.f32 %v2026, 6.0
      %v2030 = vmin.f32 %v2027, 6.0
      %v2031 = vmul.f32 %v2028, 0.16666667
      %v2032 = vmul.f32 %v2029, 0.16666667
      %v2033 = vmul.f32 %v2030, 0.16666667
      %v2034 = vmul.f32 %v2019, %v2031
      %v2035 = vmul.f32 %v2020, %v2032
      %v2036 = vmul.f32 %v2021, %v2033
      %s2037 = scalar_lea.vmem [#allocation2], 312
      %2038 = vst.msk [vmem:[%s2037] sm:$0xff] %vm476, %v2034
      %2039 = vst.msk [vmem:[%s2037 + $0x8] sm:$0xff] %vm476, %v2035
      %2040 = vst.msk [vmem:[%s2037 + $0x10] sm:$0x3] %vm479, %v2036
      %s2041 = sadd.s32 %s340, 14
      %s2042 = smul.u32 %s2041, 24
      %s2043 = scalar_lea.vmem %s325, %s2042
      %v2044 = vld [vmem:[%s2043] sm:$0xff]
      %v2045 = vld [vmem:[%s2043 + $0x8] sm:$0xff]
      %v2046 = vld [vmem:[%s2043 + $0x10] sm:$0x3]
      %v2048 = vsel %vm349, %v2044, 0
      %v2051 = vsel %vm349, %v2045, 0
      %v2054 = vsel %vm349, %v2046, 0
      %2056 = vmatprep.subr.mxu0 0.0
      %2057 = vmatpush1.msra.mxu0 %v361
      %2058 = vmatprep.subr.mxu0 0.0
      %2059 = vmatpush1.msra.mxu0 0.0
      %2060 = vmatprep.subr.mxu0 0.0
      %2061 = vmatpush1.msra.mxu0 0.0
      %2062 = vmatprep.subr.mxu0 0.0
      %2063 = vmatpush1.msra.mxu0 0.0
      %2064 = vmatprep.subr.mxu0 0.0
      %2065 = vmatpush1.msra.mxu0 0.0
      %2066 = vmatprep.subr.mxu0 0.0
      %2067 = vmatpush1.msra.mxu0 0.0
      %2068 = vmatprep.subr.mxu0 0.0
      %2069 = vmatpush1.msra.mxu0 0.0
      %2070 = vmatprep.subr.mxu0 0.0
      %2071 = vmatpush1.msra.mxu0 0.0
      %2072 = vmatprep.subr.mxu0 0.0
      %2073 = vmatpush1.msra.mxu0 0.0
      %2074 = vmatprep.subr.mxu0 0.0
      %2075 = vmatpush1.msra.mxu0 0.0
      %2076 = vmatprep.subr.mxu0 0.0
      %2077 = vmatpush1.msra.mxu0 0.0
      %2078 = vmatprep.subr.mxu0 0.0
      %2079 = vmatpush1.msra.mxu0 0.0
      %2080 = vmatprep.subr.mxu0 0.0
      %2081 = vmatpush1.msra.mxu0 0.0
      %2082 = vmatprep.subr.mxu0 0.0
      %2083 = vmatpush1.msra.mxu0 0.0
      %2084 = vmatprep.subr.mxu0 0.0
      %2085 = vmatpush1.msra.mxu0 0.0
      %2086 = vmatprep.subr.mxu0 0.0
      %2087 = vmatpush1.msra.mxu0 0.0
      %2088 = vmatprep.subr.mxu0 0.0
      %2089 = vmatpush1.msra.mxu0 0.0
      %2090 = vmatprep.subr.mxu0 0.0
      %2091 = vmatpush1.msra.mxu0 0.0
      %2092 = vmatprep.subr.mxu0 0.0
      %2093 = vmatpush1.msra.mxu0 0.0
      %2094 = vmatprep.subr.mxu0 0.0
      %2095 = vmatpush1.msra.mxu0 0.0
      %2096 = vmatprep.subr.mxu0 0.0
      %2097 = vmatpush1.msra.mxu0 0.0
      %2098 = vmatprep.subr.mxu0 0.0
      %2099 = vmatpush1.msra.mxu0 0.0
      %2100 = vmatprep.subr.mxu0 0.0
      %2101 = vmatpush1.msra.mxu0 0.0
      %2102 = vmatprep.subr.mxu0 0.0
      %2103 = vmatpush1.msra.mxu0 0.0
      %2104 = vmatprep.subr.mxu0 0.0
      %2105 = vmatpush1.msra.mxu0 0.0
      %2106 = vmatprep.subr.mxu0 0.0
      %2107 = vmatpush1.msra.mxu0 0.0
      %2108 = vmatprep.subr.mxu0 0.0
      %2109 = vmatpush1.msra.mxu0 0.0
      %2110 = vmatprep.subr.mxu0 0.0
      %2111 = vmatpush1.msra.mxu0 0.0
      %2112 = vmatprep.subr.mxu0 0.0
      %2113 = vmatpush1.msra.mxu0 0.0
      %2114 = vmatprep.subr.mxu0 0.0
      %2115 = vmatpush1.msra.mxu0 0.0
      %2116 = vmatprep.subr.mxu0 0.0
      %2117 = vmatpush1.msra.mxu0 0.0
      %2118 = vmatprep.subr.mxu0 0.0
      %2119 = vmatpush1.msra.mxu0 0.0
      %2120 = vmatprep.mubr.f32.mxu0 0.0
      %2121 = vmatmul.mubr.f32.gmra.mrb[0].mxu0 %v2048
      %v2122 = vpop.f32.mrb[0].mxu0
      %v2123 = vadd.f32 0.0, %v2122
      %v2124 = vpop.f32.mrb[0].mxu0
      %2125 = vmatprep.mubr.f32.mxu0 0.0
      %2126 = vmatmul.mubr.f32.gmra.mrb[0].mxu0 %v2051
      %v2127 = vpop.f32.mrb[0].mxu0
      %v2128 = vadd.f32 0.0, %v2127
      %v2129 = vpop.f32.mrb[0].mxu0
      %2130 = vmatprep.mubr.f32.mxu0 0.0
      %2131 = vmatmul.mubr.f32.gmra.mrb[0].mxu0 %v2054
      %v2132 = vpop.f32.mrb[0].mxu0
      %v2133 = vadd.f32 0.0, %v2132
      %v2134 = vpop.f32.mrb[0].mxu0
      %2135 = vdwg.mxu0
      %v2136 = vmul.f32 %v2123, %v447
      %v2137 = vmul.f32 %v2128, %v447
      %v2138 = vmul.f32 %v2133, %v447
      %v2139 = vadd.f32 %v2136, %v456
      %v2140 = vadd.f32 %v2137, %v456
      %v2141 = vadd.f32 %v2138, %v456
      %v2142 = vadd.f32 %v2139, 3.0
      %v2143 = vadd.f32 %v2140, 3.0
      %v2144 = vadd.f32 %v2141, 3.0
      %v2145 = vmax.f32 %v2142, 0.0
      %v2146 = vmax.f32 %v2143, 0.0
      %v2147 = vmax.f32 %v2144, 0.0
      %v2148 = vmin.f32 %v2145, 6.0
      %v2149 = vmin.f32 %v2146, 6.0
      %v2150 = vmin.f32 %v2147, 6.0
      %v2151 = vmul.f32 %v2148, 0.16666667
      %v2152 = vmul.f32 %v2149, 0.16666667
      %v2153 = vmul.f32 %v2150, 0.16666667
      %v2154 = vmul.f32 %v2139, %v2151
      %v2155 = vmul.f32 %v2140, %v2152
      %v2156 = vmul.f32 %v2141, %v2153
      %s2157 = scalar_lea.vmem [#allocation2], 336
      %2158 = vst.msk [vmem:[%s2157] sm:$0xff] %vm476, %v2154
      %2159 = vst.msk [vmem:[%s2157 + $0x8] sm:$0xff] %vm476, %v2155
      %2160 = vst.msk [vmem:[%s2157 + $0x10] sm:$0x3] %vm479, %v2156
      %s2161 = sadd.s32 %s340, 15
      %s2162 = smul.u32 %s2161, 24
      %s2163 = scalar_lea.vmem %s325, %s2162
      %v2164 = vld [vmem:[%s2163] sm:$0xff]
      %v2165 = vld [vmem:[%s2163 + $0x8] sm:$0xff]
      %v2166 = vld [vmem:[%s2163 + $0x10] sm:$0x3]
      %v2168 = vsel %vm349, %v2164, 0
      %v2171 = vsel %vm349, %v2165, 0
      %v2174 = vsel %vm349, %v2166, 0
      %2176 = vmatprep.subr.mxu0 0.0
      %2177 = vmatpush1.msra.mxu0 %v361
      %2178 = vmatprep.subr.mxu0 0.0
      %2179 = vmatpush1.msra.mxu0 0.0
      %2180 = vmatprep.subr.mxu0 0.0
      %2181 = vmatpush1.msra.mxu0 0.0
      %2182 = vmatprep.subr.mxu0 0.0
      %2183 = vmatpush1.msra.mxu0 0.0
      %2184 = vmatprep.subr.mxu0 0.0
      %2185 = vmatpush1.msra.mxu0 0.0
      %2186 = vmatprep.subr.mxu0 0.0
      %2187 = vmatpush1.msra.mxu0 0.0
      %2188 = vmatprep.subr.mxu0 0.0
      %2189 = vmatpush1.msra.mxu0 0.0
      %2190 = vmatprep.subr.mxu0 0.0
      %2191 = vmatpush1.msra.mxu0 0.0
      %2192 = vmatprep.subr.mxu0 0.0
      %2193 = vmatpush1.msra.mxu0 0.0
      %2194 = vmatprep.subr.mxu0 0.0
      %2195 = vmatpush1.msra.mxu0 0.0
      %2196 = vmatprep.subr.mxu0 0.0
      %2197 = vmatpush1.msra.mxu0 0.0
      %2198 = vmatprep.subr.mxu0 0.0
      %2199 = vmatpush1.msra.mxu0 0.0
      %2200 = vmatprep.subr.mxu0 0.0
      %2201 = vmatpush1.msra.mxu0 0.0
      %2202 = vmatprep.subr.mxu0 0.0
      %2203 = vmatpush1.msra.mxu0 0.0
      %2204 = vmatprep.subr.mxu0 0.0
      %2205 = vmatpush1.msra.mxu0 0.0
      %2206 = vmatprep.subr.mxu0 0.0
      %2207 = vmatpush1.msra.mxu0 0.0
      %2208 = vmatprep.subr.mxu0 0.0
      %2209 = vmatpush1.msra.mxu0 0.0
      %2210 = vmatprep.subr.mxu0 0.0
      %2211 = vmatpush1.msra.mxu0 0.0
      %2212 = vmatprep.subr.mxu0 0.0
      %2213 = vmatpush1.msra.mxu0 0.0
      %2214 = vmatprep.subr.mxu0 0.0
      %2215 = vmatpush1.msra.mxu0 0.0
      %2216 = vmatprep.subr.mxu0 0.0
      %2217 = vmatpush1.msra.mxu0 0.0
      %2218 = vmatprep.subr.mxu0 0.0
      %2219 = vmatpush1.msra.mxu0 0.0
      %2220 = vmatprep.subr.mxu0 0.0
      %2221 = vmatpush1.msra.mxu0 0.0
      %2222 = vmatprep.subr.mxu0 0.0
      %2223 = vmatpush1.msra.mxu0 0.0
      %2224 = vmatprep.subr.mxu0 0.0
      %2225 = vmatpush1.msra.mxu0 0.0
      %2226 = vmatprep.subr.mxu0 0.0
      %2227 = vmatpush1.msra.mxu0 0.0
      %2228 = vmatprep.subr.mxu0 0.0
      %2229 = vmatpush1.msra.mxu0 0.0
      %2230 = vmatprep.subr.mxu0 0.0
      %2231 = vmatpush1.msra.mxu0 0.0
      %2232 = vmatprep.subr.mxu0 0.0
      %2233 = vmatpush1.msra.mxu0 0.0
      %2234 = vmatprep.subr.mxu0 0.0
      %2235 = vmatpush1.msra.mxu0 0.0
      %2236 = vmatprep.subr.mxu0 0.0
      %2237 = vmatpush1.msra.mxu0 0.0
      %2238 = vmatprep.subr.mxu0 0.0
      %2239 = vmatpush1.msra.mxu0 0.0
      %2240 = vmatprep.mubr.f32.mxu0 0.0
      %2241 = vmatmul.mubr.f32.gmra.mrb[0].mxu0 %v2168
      %v2242 = vpop.f32.mrb[0].mxu0
      %v2243 = vadd.f32 0.0, %v2242
      %v2244 = vpop.f32.mrb[0].mxu0
      %2245 = vmatprep.mubr.f32.mxu0 0.0
      %2246 = vmatmul.mubr.f32.gmra.mrb[0].mxu0 %v2171
      %v2247 = vpop.f32.mrb[0].mxu0
      %v2248 = vadd.f32 0.0, %v2247
      %v2249 = vpop.f32.mrb[0].mxu0
      %2250 = vmatprep.mubr.f32.mxu0 0.0
      %2251 = vmatmul.mubr.f32.gmra.mrb[0].mxu0 %v2174
      %v2252 = vpop.f32.mrb[0].mxu0
      %v2253 = vadd.f32 0.0, %v2252
      %v2254 = vpop.f32.mrb[0].mxu0
      %2255 = vdwg.mxu0
      %v2256 = vmul.f32 %v2243, %v447
      %v2257 = vmul.f32 %v2248, %v447
      %v2258 = vmul.f32 %v2253, %v447
      %v2259 = vadd.f32 %v2256, %v456
      %v2260 = vadd.f32 %v2257, %v456
      %v2261 = vadd.f32 %v2258, %v456
      %v2262 = vadd.f32 %v2259, 3.0
      %v2263 = vadd.f32 %v2260, 3.0
      %v2264 = vadd.f32 %v2261, 3.0
      %v2265 = vmax.f32 %v2262, 0.0
      %v2266 = vmax.f32 %v2263, 0.0
      %v2267 = vmax.f32 %v2264, 0.0
      %v2268 = vmin.f32 %v2265, 6.0
      %v2269 = vmin.f32 %v2266, 6.0
      %v2270 = vmin.f32 %v2267, 6.0
      %v2271 = vmul.f32 %v2268, 0.16666667
      %v2272 = vmul.f32 %v2269, 0.16666667
      %v2273 = vmul.f32 %v2270, 0.16666667
      %v2274 = vmul.f32 %v2259, %v2271
      %v2275 = vmul.f32 %v2260, %v2272
      %v2276 = vmul.f32 %v2261, %v2273
      %s2277 = scalar_lea.vmem [#allocation2], 360
      %2278 = vst.msk [vmem:[%s2277] sm:$0xff] %vm476, %v2274
      %2279 = vst.msk [vmem:[%s2277 + $0x8] sm:$0xff] %vm476, %v2275
      %2280 = vst.msk [vmem:[%s2277 + $0x10] sm:$0x3] %vm479, %v2276
      %s2281 = sadd.s32 %s340, 16
      %s2282 = smul.u32 %s2281, 24
      %s2283 = scalar_lea.vmem %s325, %s2282
      %v2284 = vld [vmem:[%s2283] sm:$0xff]
      %v2285 = vld [vmem:[%s2283 + $0x8] sm:$0xff]
      %v2286 = vld [vmem:[%s2283 + $0x10] sm:$0x3]
      %v2288 = vsel %vm349, %v2284, 0
      %v2291 = vsel %vm349, %v2285, 0
      %v2294 = vsel %vm349, %v2286, 0
      %2296 = vmatprep.subr.mxu0 0.0
      %2297 = vmatpush1.msra.mxu0 %v361
      %2298 = vmatprep.subr.mxu0 0.0
      %2299 = vmatpush1.msra.mxu0 0.0
      %2300 = vmatprep.subr.mxu0 0.0
      %2301 = vmatpush1.msra.mxu0 0.0
      %2302 = vmatprep.subr.mxu0 0.0
      %2303 = vmatpush1.msra.mxu0 0.0
      %2304 = vmatprep.subr.mxu0 0.0
      %2305 = vmatpush1.msra.mxu0 0.0
      %2306 = vmatprep.subr.mxu0 0.0
      %2307 = vmatpush1.msra.mxu0 0.0
      %2308 = vmatprep.subr.mxu0 0.0
      %2309 = vmatpush1.msra.mxu0 0.0
      %2310 = vmatprep.subr.mxu0 0.0
      %2311 = vmatpush1.msra.mxu0 0.0
      %2312 = vmatprep.subr.mxu0 0.0
      %2313 = vmatpush1.msra.mxu0 0.0
      %2314 = vmatprep.subr.mxu0 0.0
      %2315 = vmatpush1.msra.mxu0 0.0
      %2316 = vmatprep.subr.mxu0 0.0
      %2317 = vmatpush1.msra.mxu0 0.0
      %2318 = vmatprep.subr.mxu0 0.0
      %2319 = vmatpush1.msra.mxu0 0.0
      %2320 = vmatprep.subr.mxu0 0.0
      %2321 = vmatpush1.msra.mxu0 0.0
      %2322 = vmatprep.subr.mxu0 0.0
      %2323 = vmatpush1.msra.mxu0 0.0
      %2324 = vmatprep.subr.mxu0 0.0
      %2325 = vmatpush1.msra.mxu0 0.0
      %2326 = vmatprep.subr.mxu0 0.0
      %2327 = vmatpush1.msra.mxu0 0.0
      %2328 = vmatprep.subr.mxu0 0.0
      %2329 = vmatpush1.msra.mxu0 0.0
      %2330 = vmatprep.subr.mxu0 0.0
      %2331 = vmatpush1.msra.mxu0 0.0
      %2332 = vmatprep.subr.mxu0 0.0
      %2333 = vmatpush1.msra.mxu0 0.0
      %2334 = vmatprep.subr.mxu0 0.0
      %2335 = vmatpush1.msra.mxu0 0.0
      %2336 = vmatprep.subr.mxu0 0.0
      %2337 = vmatpush1.msra.mxu0 0.0
      %2338 = vmatprep.subr.mxu0 0.0
      %2339 = vmatpush1.msra.mxu0 0.0
      %2340 = vmatprep.subr.mxu0 0.0
      %2341 = vmatpush1.msra.mxu0 0.0
      %2342 = vmatprep.subr.mxu0 0.0
      %2343 = vmatpush1.msra.mxu0 0.0
      %2344 = vmatprep.subr.mxu0 0.0
      %2345 = vmatpush1.msra.mxu0 0.0
      %2346 = vmatprep.subr.mxu0 0.0
      %2347 = vmatpush1.msra.mxu0 0.0
      %2348 = vmatprep.subr.mxu0 0.0
      %2349 = vmatpush1.msra.mxu0 0.0
      %2350 = vmatprep.subr.mxu0 0.0
      %2351 = vmatpush1.msra.mxu0 0.0
      %2352 = vmatprep.subr.mxu0 0.0
      %2353 = vmatpush1.msra.mxu0 0.0
      %2354 = vmatprep.subr.mxu0 0.0
      %2355 = vmatpush1.msra.mxu0 0.0
      %2356 = vmatprep.subr.mxu0 0.0
      %2357 = vmatpush1.msra.mxu0 0.0
      %2358 = vmatprep.subr.mxu0 0.0
      %2359 = vmatpush1.msra.mxu0 0.0
      %2360 = vmatprep.mubr.f32.mxu0 0.0
      %2361 = vmatmul.mubr.f32.gmra.mrb[0].mxu0 %v2288
      %v2362 = vpop.f32.mrb[0].mxu0
      %v2363 = vadd.f32 0.0, %v2362
      %v2364 = vpop.f32.mrb[0].mxu0
      %2365 = vmatprep.mubr.f32.mxu0 0.0
      %2366 = vmatmul.mubr.f32.gmra.mrb[0].mxu0 %v2291
      %v2367 = vpop.f32.mrb[0].mxu0
      %v2368 = vadd.f32 0.0, %v2367
      %v2369 = vpop.f32.mrb[0].mxu0
      %2370 = vmatprep.mubr.f32.mxu0 0.0
      %2371 = vmatmul.mubr.f32.gmra.mrb[0].mxu0 %v2294
      %v2372 = vpop.f32.mrb[0].mxu0
      %v2373 = vadd.f32 0.0, %v2372
      %v2374 = vpop.f32.mrb[0].mxu0
      %2375 = vdwg.mxu0
      %v2376 = vmul.f32 %v2363, %v447
      %v2377 = vmul.f32 %v2368, %v447
      %v2378 = vmul.f32 %v2373, %v447
      %v2379 = vadd.f32 %v2376, %v456
      %v2380 = vadd.f32 %v2377, %v456
      %v2381 = vadd.f32 %v2378, %v456
      %v2382 = vadd.f32 %v2379, 3.0
      %v2383 = vadd.f32 %v2380, 3.0
      %v2384 = vadd.f32 %v2381, 3.0
      %v2385 = vmax.f32 %v2382, 0.0
      %v2386 = vmax.f32 %v2383, 0.0
      %v2387 = vmax.f32 %v2384, 0.0
      %v2388 = vmin.f32 %v2385, 6.0
      %v2389 = vmin.f32 %v2386, 6.0
      %v2390 = vmin.f32 %v2387, 6.0
      %v2391 = vmul.f32 %v2388, 0.16666667
      %v2392 = vmul.f32 %v2389, 0.16666667
      %v2393 = vmul.f32 %v2390, 0.16666667
      %v2394 = vmul.f32 %v2379, %v2391
      %v2395 = vmul.f32 %v2380, %v2392
      %v2396 = vmul.f32 %v2381, %v2393
      %s2397 = scalar_lea.vmem [#allocation2], 384
      %2398 = vst.msk [vmem:[%s2397] sm:$0xff] %vm476, %v2394
      %2399 = vst.msk [vmem:[%s2397 + $0x8] sm:$0xff] %vm476, %v2395
      %2400 = vst.msk [vmem:[%s2397 + $0x10] sm:$0x3] %vm479, %v2396
      %s2401 = sadd.s32 %s340, 17
      %s2402 = smul.u32 %s2401, 24
      %s2403 = scalar_lea.vmem %s325, %s2402
      %v2404 = vld [vmem:[%s2403] sm:$0xff]
      %v2405 = vld [vmem:[%s2403 + $0x8] sm:$0xff]
      %v2406 = vld [vmem:[%s2403 + $0x10] sm:$0x3]
      %v2408 = vsel %vm349, %v2404, 0
      %v2411 = vsel %vm349, %v2405, 0
      %v2414 = vsel %vm349, %v2406, 0
      %2416 = vmatprep.subr.mxu0 0.0
      %2417 = vmatpush1.msra.mxu0 %v361
      %2418 = vmatprep.subr.mxu0 0.0
      %2419 = vmatpush1.msra.mxu0 0.0
      %2420 = vmatprep.subr.mxu0 0.0
      %2421 = vmatpush1.msra.mxu0 0.0
      %2422 = vmatprep.subr.mxu0 0.0
      %2423 = vmatpush1.msra.mxu0 0.0
      %2424 = vmatprep.subr.mxu0 0.0
      %2425 = vmatpush1.msra.mxu0 0.0
      %2426 = vmatprep.subr.mxu0 0.0
      %2427 = vmatpush1.msra.mxu0 0.0
      %2428 = vmatprep.subr.mxu0 0.0
      %2429 = vmatpush1.msra.mxu0 0.0
      %2430 = vmatprep.subr.mxu0 0.0
      %2431 = vmatpush1.msra.mxu0 0.0
      %2432 = vmatprep.subr.mxu0 0.0
      %2433 = vmatpush1.msra.mxu0 0.0
      %2434 = vmatprep.subr.mxu0 0.0
      %2435 = vmatpush1.msra.mxu0 0.0
      %2436 = vmatprep.subr.mxu0 0.0
      %2437 = vmatpush1.msra.mxu0 0.0
      %2438 = vmatprep.subr.mxu0 0.0
      %2439 = vmatpush1.msra.mxu0 0.0
      %2440 = vmatprep.subr.mxu0 0.0
      %2441 = vmatpush1.msra.mxu0 0.0
      %2442 = vmatprep.subr.mxu0 0.0
      %2443 = vmatpush1.msra.mxu0 0.0
      %2444 = vmatprep.subr.mxu0 0.0
      %2445 = vmatpush1.msra.mxu0 0.0
      %2446 = vmatprep.subr.mxu0 0.0
      %2447 = vmatpush1.msra.mxu0 0.0
      %2448 = vmatprep.subr.mxu0 0.0
      %2449 = vmatpush1.msra.mxu0 0.0
      %2450 = vmatprep.subr.mxu0 0.0
      %2451 = vmatpush1.msra.mxu0 0.0
      %2452 = vmatprep.subr.mxu0 0.0
      %2453 = vmatpush1.msra.mxu0 0.0
      %2454 = vmatprep.subr.mxu0 0.0
      %2455 = vmatpush1.msra.mxu0 0.0
      %2456 = vmatprep.subr.mxu0 0.0
      %2457 = vmatpush1.msra.mxu0 0.0
      %2458 = vmatprep.subr.mxu0 0.0
      %2459 = vmatpush1.msra.mxu0 0.0
      %2460 = vmatprep.subr.mxu0 0.0
      %2461 = vmatpush1.msra.mxu0 0.0
      %2462 = vmatprep.subr.mxu0 0.0
      %2463 = vmatpush1.msra.mxu0 0.0
      %2464 = vmatprep.subr.mxu0 0.0
      %2465 = vmatpush1.msra.mxu0 0.0
      %2466 = vmatprep.subr.mxu0 0.0
      %2467 = vmatpush1.msra.mxu0 0.0
      %2468 = vmatprep.subr.mxu0 0.0
      %2469 = vmatpush1.msra.mxu0 0.0
      %2470 = vmatprep.subr.mxu0 0.0
      %2471 = vmatpush1.msra.mxu0 0.0
      %2472 = vmatprep.subr.mxu0 0.0
      %2473 = vmatpush1.msra.mxu0 0.0
      %2474 = vmatprep.subr.mxu0 0.0
      %2475 = vmatpush1.msra.mxu0 0.0
      %2476 = vmatprep.subr.mxu0 0.0
      %2477 = vmatpush1.msra.mxu0 0.0
      %2478 = vmatprep.subr.mxu0 0.0
      %2479 = vmatpush1.msra.mxu0 0.0
      %2480 = vmatprep.mubr.f32.mxu0 0.0
      %2481 = vmatmul.mubr.f32.gmra.mrb[0].mxu0 %v2408
      %v2482 = vpop.f32.mrb[0].mxu0
      %v2483 = vadd.f32 0.0, %v2482
      %v2484 = vpop.f32.mrb[0].mxu0
      %2485 = vmatprep.mubr.f32.mxu0 0.0
      %2486 = vmatmul.mubr.f32.gmra.mrb[0].mxu0 %v2411
      %v2487 = vpop.f32.mrb[0].mxu0
      %v2488 = vadd.f32 0.0, %v2487
      %v2489 = vpop.f32.mrb[0].mxu0
      %2490 = vmatprep.mubr.f32.mxu0 0.0
      %2491 = vmatmul.mubr.f32.gmra.mrb[0].mxu0 %v2414
      %v2492 = vpop.f32.mrb[0].mxu0
      %v2493 = vadd.f32 0.0, %v2492
      %v2494 = vpop.f32.mrb[0].mxu0
      %2495 = vdwg.mxu0
      %v2496 = vmul.f32 %v2483, %v447
      %v2497 = vmul.f32 %v2488, %v447
      %v2498 = vmul.f32 %v2493, %v447
      %v2499 = vadd.f32 %v2496, %v456
      %v2500 = vadd.f32 %v2497, %v456
      %v2501 = vadd.f32 %v2498, %v456
      %v2502 = vadd.f32 %v2499, 3.0
      %v2503 = vadd.f32 %v2500, 3.0
      %v2504 = vadd.f32 %v2501, 3.0
      %v2505 = vmax.f32 %v2502, 0.0
      %v2506 = vmax.f32 %v2503, 0.0
      %v2507 = vmax.f32 %v2504, 0.0
      %v2508 = vmin.f32 %v2505, 6.0
      %v2509 = vmin.f32 %v2506, 6.0
      %v2510 = vmin.f32 %v2507, 6.0
      %v2511 = vmul.f32 %v2508, 0.16666667
      %v2512 = vmul.f32 %v2509, 0.16666667
      %v2513 = vmul.f32 %v2510, 0.16666667
      %v2514 = vmul.f32 %v2499, %v2511
      %v2515 = vmul.f32 %v2500, %v2512
      %v2516 = vmul.f32 %v2501, %v2513
      %s2517 = scalar_lea.vmem [#allocation2], 408
      %2518 = vst.msk [vmem:[%s2517] sm:$0xff] %vm476, %v2514
      %2519 = vst.msk [vmem:[%s2517 + $0x8] sm:$0xff] %vm476, %v2515
      %2520 = vst.msk [vmem:[%s2517 + $0x10] sm:$0x3] %vm479, %v2516
      %v2521 = vld [vmem:[%s4] sm:$0xff]
      %v2522 = vld [vmem:[%s4 + $0x8] sm:$0x1]
      %v2523 = vld [vmem:[#allocation2] sm:$0xff]
      %v2524 = vld [vmem:[#allocation2 + $0x8] sm:$0xff]
      %v2525 = vld [vmem:[#allocation2 + $0x18] sm:$0xff]
      %v2526 = vld [vmem:[#allocation2 + $0x20] sm:$0xff]
      %v2527 = vld [vmem:[#allocation2 + $0x30] sm:$0xff]
      %v2528 = vld [vmem:[#allocation2 + $0x38] sm:$0xff]
      %v2529 = vld [vmem:[#allocation2 + $0x48] sm:$0xff]
      %v2530 = vld [vmem:[#allocation2 + $0x50] sm:$0xff]
      %v2531 = vld [vmem:[#allocation2 + $0x60] sm:$0xff]
      %v2532 = vld [vmem:[#allocation2 + $0x68] sm:$0xff]
      %v2533 = vld [vmem:[#allocation2 + $0x78] sm:$0xff]
      %v2534 = vld [vmem:[#allocation2 + $0x80] sm:$0xff]
      %v2535 = vld [vmem:[#allocation2 + $0x90] sm:$0xff]
      %v2536 = vld [vmem:[#allocation2 + $0x98] sm:$0xff]
      %v2537 = vld [vmem:[#allocation2 + $0xa8] sm:$0xff]
      %v2538 = vld [vmem:[#allocation2 + $0xb0] sm:$0xff]
      %v2539 = vld [vmem:[#allocation2 + $0xc0] sm:$0xff]
      %v2540 = vld [vmem:[#allocation2 + $0xc8] sm:$0xff]
      %v2541 = vld [vmem:[#allocation2 + $0xd8] sm:$0xff]
      %v2542 = vld [vmem:[#allocation2 + $0xe0] sm:$0xff]
      %v2543 = vld [vmem:[#allocation2 + $0xf0] sm:$0xff]
      %v2544 = vld [vmem:[#allocation2 + $0xf8] sm:$0xff]
      %v2545 = vld [vmem:[#allocation2 + $0x108] sm:$0xff]
      %v2546 = vld [vmem:[#allocation2 + $0x110] sm:$0xff]
      %v2547 = vld [vmem:[#allocation2 + $0x120] sm:$0xff]
      %v2548 = vld [vmem:[#allocation2 + $0x128] sm:$0xff]
      %v2549 = vld [vmem:[#allocation2 + $0x138] sm:$0xff]
      %v2550 = vld [vmem:[#allocation2 + $0x140] sm:$0xff]
      %v2551 = vld [vmem:[#allocation2 + $0x150] sm:$0xff]
      %v2552 = vld [vmem:[#allocation2 + $0x158] sm:$0xff]
      %v2553 = vld [vmem:[#allocation2 + $0x168] sm:$0xff]
      %v2554 = vld [vmem:[#allocation2 + $0x170] sm:$0xff]
      %v2555 = vlaneseq
      %v2556 = vshrl.u32 %v2555, 7
      %v2557 = vsub.s32 0, %v2556
      %v2558 = vrot.slane %v2521, %v2557
      %v2559 = vmul.f32 %v2523, %v2558
      %v2560 = vmul.f32 %v2524, %v2558
      %v2561 = vmul.f32 %v2525, %v2558
      %v2562 = vmul.f32 %v2526, %v2558
      %v2563 = vmul.f32 %v2527, %v2558
      %v2564 = vmul.f32 %v2528, %v2558
      %v2565 = vmul.f32 %v2529, %v2558
      %v2566 = vmul.f32 %v2530, %v2558
      %v2567 = vmul.f32 %v2531, %v2558
      %v2568 = vmul.f32 %v2532, %v2558
      %v2569 = vmul.f32 %v2533, %v2558
      %v2570 = vmul.f32 %v2534, %v2558
      %v2571 = vmul.f32 %v2535, %v2558
      %v2572 = vmul.f32 %v2536, %v2558
      %v2573 = vmul.f32 %v2537, %v2558
      %v2574 = vmul.f32 %v2538, %v2558
      %v2575 = vmul.f32 %v2539, %v2558
      %v2576 = vmul.f32 %v2540, %v2558
      %v2577 = vmul.f32 %v2541, %v2558
      %v2578 = vmul.f32 %v2542, %v2558
      %v2579 = vmul.f32 %v2543, %v2558
      %v2580 = vmul.f32 %v2544, %v2558
      %v2581 = vmul.f32 %v2545, %v2558
      %v2582 = vmul.f32 %v2546, %v2558
      %v2583 = vmul.f32 %v2547, %v2558
      %v2584 = vmul.f32 %v2548, %v2558
      %v2585 = vmul.f32 %v2549, %v2558
      %v2586 = vmul.f32 %v2550, %v2558
      %v2587 = vmul.f32 %v2551, %v2558
      %v2588 = vmul.f32 %v2552, %v2558
      %v2589 = vmul.f32 %v2553, %v2558
      %v2590 = vmul.f32 %v2554, %v2558
      %v2591 = vadd.f32 %v2559, 0.0
      %v2592 = vadd.f32 %v2560, 0.0
      %v2593 = vadd.f32 %v2561, 0.0
      %v2594 = vadd.f32 %v2562, 0.0
      %v2595 = vadd.f32 %v2563, 0.0
      %v2596 = vadd.f32 %v2564, 0.0
      %v2597 = vadd.f32 %v2565, 0.0
      %v2598 = vadd.f32 %v2566, 0.0
      %v2599 = vadd.f32 %v2567, 0.0
      %v2600 = vadd.f32 %v2568, 0.0
      %v2601 = vadd.f32 %v2569, 0.0
      %v2602 = vadd.f32 %v2570, 0.0
      %v2603 = vadd.f32 %v2571, 0.0
      %v2604 = vadd.f32 %v2572, 0.0
      %v2605 = vadd.f32 %v2573, 0.0
      %v2606 = vadd.f32 %v2574, 0.0
      %v2607 = vadd.f32 %v2575, 0.0
      %v2608 = vadd.f32 %v2576, 0.0
      %v2609 = vadd.f32 %v2577, 0.0
      %v2610 = vadd.f32 %v2578, 0.0
      %v2611 = vadd.f32 %v2579, 0.0
      %v2612 = vadd.f32 %v2580, 0.0
      %v2613 = vadd.f32 %v2581, 0.0
      %v2614 = vadd.f32 %v2582, 0.0
      %v2615 = vadd.f32 %v2583, 0.0
      %v2616 = vadd.f32 %v2584, 0.0
      %v2617 = vadd.f32 %v2585, 0.0
      %v2618 = vadd.f32 %v2586, 0.0
      %v2619 = vadd.f32 %v2587, 0.0
      %v2620 = vadd.f32 %v2588, 0.0
      %v2621 = vadd.f32 %v2589, 0.0
      %v2622 = vadd.f32 %v2590, 0.0
      %v2623 = vld [vmem:[#allocation2 + $0x1] sm:$0xff]
      %v2624 = vld [vmem:[#allocation2 + $0x9] sm:$0xff]
      %v2625 = vld [vmem:[#allocation2 + $0x19] sm:$0xff]
      %v2626 = vld [vmem:[#allocation2 + $0x21] sm:$0xff]
      %v2627 = vld [vmem:[#allocation2 + $0x31] sm:$0xff]
      %v2628 = vld [vmem:[#allocation2 + $0x39] sm:$0xff]
      %v2629 = vld [vmem:[#allocation2 + $0x49] sm:$0xff]
      %v2630 = vld [vmem:[#allocation2 + $0x51] sm:$0xff]
      %v2631 = vld [vmem:[#allocation2 + $0x61] sm:$0xff]
      %v2632 = vld [vmem:[#allocation2 + $0x69] sm:$0xff]
      %v2633 = vld [vmem:[#allocation2 + $0x79] sm:$0xff]
      %v2634 = vld [vmem:[#allocation2 + $0x81] sm:$0xff]
      %v2635 = vld [vmem:[#allocation2 + $0x91] sm:$0xff]
      %v2636 = vld [vmem:[#allocation2 + $0x99] sm:$0xff]
      %v2637 = vld [vmem:[#allocation2 + $0xa9] sm:$0xff]
      %v2638 = vld [vmem:[#allocation2 + $0xb1] sm:$0xff]
      %v2639 = vld [vmem:[#allocation2 + $0xc1] sm:$0xff]
      %v2640 = vld [vmem:[#allocation2 + $0xc9] sm:$0xff]
      %v2641 = vld [vmem:[#allocation2 + $0xd9] sm:$0xff]
      %v2642 = vld [vmem:[#allocation2 + $0xe1] sm:$0xff]
      %v2643 = vld [vmem:[#allocation2 + $0xf1] sm:$0xff]
      %v2644 = vld [vmem:[#allocation2 + $0xf9] sm:$0xff]
      %v2645 = vld [vmem:[#allocation2 + $0x109] sm:$0xff]
      %v2646 = vld [vmem:[#allocation2 + $0x111] sm:$0xff]
      %v2647 = vld [vmem:[#allocation2 + $0x121] sm:$0xff]
      %v2648 = vld [vmem:[#allocation2 + $0x129] sm:$0xff]
      %v2649 = vld [vmem:[#allocation2 + $0x139] sm:$0xff]
      %v2650 = vld [vmem:[#allocation2 + $0x141] sm:$0xff]
      %v2651 = vld [vmem:[#allocation2 + $0x151] sm:$0xff]
      %v2652 = vld [vmem:[#allocation2 + $0x159] sm:$0xff]
      %v2653 = vld [vmem:[#allocation2 + $0x169] sm:$0xff]
      %v2654 = vld [vmem:[#allocation2 + $0x171] sm:$0xff]
      %v2655 = vlaneseq
      %v2656 = vshrl.u32 %v2655, 7
      %v2657 = vsub.s32 1, %v2656
      %v2658 = vrot.slane %v2521, %v2657
      %v2659 = vmul.f32 %v2623, %v2658
      %v2660 = vmul.f32 %v2624, %v2658
      %v2661 = vmul.f32 %v2625, %v2658
      %v2662 = vmul.f32 %v2626, %v2658
      %v2663 = vmul.f32 %v2627, %v2658
      %v2664 = vmul.f32 %v2628, %v2658
      %v2665 = vmul.f32 %v2629, %v2658
      %v2666 = vmul.f32 %v2630, %v2658
      %v2667 = vmul.f32 %v2631, %v2658
      %v2668 = vmul.f32 %v2632, %v2658
      %v2669 = vmul.f32 %v2633, %v2658
      %v2670 = vmul.f32 %v2634, %v2658
      %v2671 = vmul.f32 %v2635, %v2658
      %v2672 = vmul.f32 %v2636, %v2658
      %v2673 = vmul.f32 %v2637, %v2658
      %v2674 = vmul.f32 %v2638, %v2658
      %v2675 = vmul.f32 %v2639, %v2658
      %v2676 = vmul.f32 %v2640, %v2658
      %v2677 = vmul.f32 %v2641, %v2658
      %v2678 = vmul.f32 %v2642, %v2658
      %v2679 = vmul.f32 %v2643, %v2658
      %v2680 = vmul.f32 %v2644, %v2658
      %v2681 = vmul.f32 %v2645, %v2658
      %v2682 = vmul.f32 %v2646, %v2658
      %v2683 = vmul.f32 %v2647, %v2658
      %v2684 = vmul.f32 %v2648, %v2658
      %v2685 = vmul.f32 %v2649, %v2658
      %v2686 = vmul.f32 %v2650, %v2658
      %v2687 = vmul.f32 %v2651, %v2658
      %v2688 = vmul.f32 %v2652, %v2658
      %v2689 = vmul.f32 %v2653, %v2658
      %v2690 = vmul.f32 %v2654, %v2658
      %v2691 = vadd.f32 %v2591, %v2659
      %v2692 = vadd.f32 %v2592, %v2660
      %v2693 = vadd.f32 %v2593, %v2661
      %v2694 = vadd.f32 %v2594, %v2662
      %v2695 = vadd.f32 %v2595, %v2663
      %v2696 = vadd.f32 %v2596, %v2664
      %v2697 = vadd.f32 %v2597, %v2665
      %v2698 = vadd.f32 %v2598, %v2666
      %v2699 = vadd.f32 %v2599, %v2667
      %v2700 = vadd.f32 %v2600, %v2668
      %v2701 = vadd.f32 %v2601, %v2669
      %v2702 = vadd.f32 %v2602, %v2670
      %v2703 = vadd.f32 %v2603, %v2671
      %v2704 = vadd.f32 %v2604, %v2672
      %v2705 = vadd.f32 %v2605, %v2673
      %v2706 = vadd.f32 %v2606, %v2674
      %v2707 = vadd.f32 %v2607, %v2675
      %v2708 = vadd.f32 %v2608, %v2676
      %v2709 = vadd.f32 %v2609, %v2677
      %v2710 = vadd.f32 %v2610, %v2678
      %v2711 = vadd.f32 %v2611, %v2679
      %v2712 = vadd.f32 %v2612, %v2680
      %v2713 = vadd.f32 %v2613, %v2681
      %v2714 = vadd.f32 %v2614, %v2682
      %v2715 = vadd.f32 %v2615, %v2683
      %v2716 = vadd.f32 %v2616, %v2684
      %v2717 = vadd.f32 %v2617, %v2685
      %v2718 = vadd.f32 %v2618, %v2686
      %v2719 = vadd.f32 %v2619, %v2687
      %v2720 = vadd.f32 %v2620, %v2688
      %v2721 = vadd.f32 %v2621, %v2689
      %v2722 = vadd.f32 %v2622, %v2690
      %v2723 = vld [vmem:[#allocation2 + $0x2] sm:$0xff]
      %v2724 = vld [vmem:[#allocation2 + $0xa] sm:$0xff]
      %v2725 = vld [vmem:[#allocation2 + $0x1a] sm:$0xff]
      %v2726 = vld [vmem:[#allocation2 + $0x22] sm:$0xff]
      %v2727 = vld [vmem:[#allocation2 + $0x32] sm:$0xff]
      %v2728 = vld [vmem:[#allocation2 + $0x3a] sm:$0xff]
      %v2729 = vld [vmem:[#allocation2 + $0x4a] sm:$0xff]
      %v2730 = vld [vmem:[#allocation2 + $0x52] sm:$0xff]
      %v2731 = vld [vmem:[#allocation2 + $0x62] sm:$0xff]
      %v2732 = vld [vmem:[#allocation2 + $0x6a] sm:$0xff]
      %v2733 = vld [vmem:[#allocation2 + $0x7a] sm:$0xff]
      %v2734 = vld [vmem:[#allocation2 + $0x82] sm:$0xff]
      %v2735 = vld [vmem:[#allocation2 + $0x92] sm:$0xff]
      %v2736 = vld [vmem:[#allocation2 + $0x9a] sm:$0xff]
      %v2737 = vld [vmem:[#allocation2 + $0xaa] sm:$0xff]
      %v2738 = vld [vmem:[#allocation2 + $0xb2] sm:$0xff]
      %v2739 = vld [vmem:[#allocation2 + $0xc2] sm:$0xff]
      %v2740 = vld [vmem:[#allocation2 + $0xca] sm:$0xff]
      %v2741 = vld [vmem:[#allocation2 + $0xda] sm:$0xff]
      %v2742 = vld [vmem:[#allocation2 + $0xe2] sm:$0xff]
      %v2743 = vld [vmem:[#allocation2 + $0xf2] sm:$0xff]
      %v2744 = vld [vmem:[#allocation2 + $0xfa] sm:$0xff]
      %v2745 = vld [vmem:[#allocation2 + $0x10a] sm:$0xff]
      %v2746 = vld [vmem:[#allocation2 + $0x112] sm:$0xff]
      %v2747 = vld [vmem:[#allocation2 + $0x122] sm:$0xff]
      %v2748 = vld [vmem:[#allocation2 + $0x12a] sm:$0xff]
      %v2749 = vld [vmem:[#allocation2 + $0x13a] sm:$0xff]
      %v2750 = vld [vmem:[#allocation2 + $0x142] sm:$0xff]
      %v2751 = vld [vmem:[#allocation2 + $0x152] sm:$0xff]
      %v2752 = vld [vmem:[#allocation2 + $0x15a] sm:$0xff]
      %v2753 = vld [vmem:[#allocation2 + $0x16a] sm:$0xff]
      %v2754 = vld [vmem:[#allocation2 + $0x172] sm:$0xff]
      %v2755 = vlaneseq
      %v2756 = vshrl.u32 %v2755, 7
      %v2757 = vsub.s32 2, %v2756
      %v2758 = vrot.slane %v2521, %v2757
      %v2759 = vmul.f32 %v2723, %v2758
      %v2760 = vmul.f32 %v2724, %v2758
      %v2761 = vmul.f32 %v2725, %v2758
      %v2762 = vmul.f32 %v2726, %v2758
      %v2763 = vmul.f32 %v2727, %v2758
      %v2764 = vmul.f32 %v2728, %v2758
      %v2765 = vmul.f32 %v2729, %v2758
      %v2766 = vmul.f32 %v2730, %v2758
      %v2767 = vmul.f32 %v2731, %v2758
      %v2768 = vmul.f32 %v2732, %v2758
      %v2769 = vmul.f32 %v2733, %v2758
      %v2770 = vmul.f32 %v2734, %v2758
      %v2771 = vmul.f32 %v2735, %v2758
      %v2772 = vmul.f32 %v2736, %v2758
      %v2773 = vmul.f32 %v2737, %v2758
      %v2774 = vmul.f32 %v2738, %v2758
      %v2775 = vmul.f32 %v2739, %v2758
      %v2776 = vmul.f32 %v2740, %v2758
      %v2777 = vmul.f32 %v2741, %v2758
      %v2778 = vmul.f32 %v2742, %v2758
      %v2779 = vmul.f32 %v2743, %v2758
      %v2780 = vmul.f32 %v2744, %v2758
      %v2781 = vmul.f32 %v2745, %v2758
      %v2782 = vmul.f32 %v2746, %v2758
      %v2783 = vmul.f32 %v2747, %v2758
      %v2784 = vmul.f32 %v2748, %v2758
      %v2785 = vmul.f32 %v2749, %v2758
      %v2786 = vmul.f32 %v2750, %v2758
      %v2787 = vmul.f32 %v2751, %v2758
      %v2788 = vmul.f32 %v2752, %v2758
      %v2789 = vmul.f32 %v2753, %v2758
      %v2790 = vmul.f32 %v2754, %v2758
      %v2791 = vadd.f32 %v2691, %v2759
      %v2792 = vadd.f32 %v2692, %v2760
      %v2793 = vadd.f32 %v2693, %v2761
      %v2794 = vadd.f32 %v2694, %v2762
      %v2795 = vadd.f32 %v2695, %v2763
      %v2796 = vadd.f32 %v2696, %v2764
      %v2797 = vadd.f32 %v2697, %v2765
      %v2798 = vadd.f32 %v2698, %v2766
      %v2799 = vadd.f32 %v2699, %v2767
      %v2800 = vadd.f32 %v2700, %v2768
      %v2801 = vadd.f32 %v2701, %v2769
      %v2802 = vadd.f32 %v2702, %v2770
      %v2803 = vadd.f32 %v2703, %v2771
      %v2804 = vadd.f32 %v2704, %v2772
      %v2805 = vadd.f32 %v2705, %v2773
      %v2806 = vadd.f32 %v2706, %v2774
      %v2807 = vadd.f32 %v2707, %v2775
      %v2808 = vadd.f32 %v2708, %v2776
      %v2809 = vadd.f32 %v2709, %v2777
      %v2810 = vadd.f32 %v2710, %v2778
      %v2811 = vadd.f32 %v2711, %v2779
      %v2812 = vadd.f32 %v2712, %v2780
      %v2813 = vadd.f32 %v2713, %v2781
      %v2814 = vadd.f32 %v2714, %v2782
      %v2815 = vadd.f32 %v2715, %v2783
      %v2816 = vadd.f32 %v2716, %v2784
      %v2817 = vadd.f32 %v2717, %v2785
      %v2818 = vadd.f32 %v2718, %v2786
      %v2819 = vadd.f32 %v2719, %v2787
      %v2820 = vadd.f32 %v2720, %v2788
      %v2821 = vadd.f32 %v2721, %v2789
      %v2822 = vadd.f32 %v2722, %v2790
      %v2823 = vld [vmem:[%s597] sm:$0xff]
      %v2824 = vld [vmem:[%s597 + $0x8] sm:$0xff]
      %v2825 = vld [vmem:[%s597 + $0x18] sm:$0xff]
      %v2826 = vld [vmem:[%s597 + $0x20] sm:$0xff]
      %v2827 = vld [vmem:[%s597 + $0x30] sm:$0xff]
      %v2828 = vld [vmem:[%s597 + $0x38] sm:$0xff]
      %v2829 = vld [vmem:[%s597 + $0x48] sm:$0xff]
      %v2830 = vld [vmem:[%s597 + $0x50] sm:$0xff]
      %v2831 = vld [vmem:[%s597 + $0x60] sm:$0xff]
      %v2832 = vld [vmem:[%s597 + $0x68] sm:$0xff]
      %v2833 = vld [vmem:[%s597 + $0x78] sm:$0xff]
      %v2834 = vld [vmem:[%s597 + $0x80] sm:$0xff]
      %v2835 = vld [vmem:[%s597 + $0x90] sm:$0xff]
      %v2836 = vld [vmem:[%s597 + $0x98] sm:$0xff]
      %v2837 = vld [vmem:[%s597 + $0xa8] sm:$0xff]
      %v2838 = vld [vmem:[%s597 + $0xb0] sm:$0xff]
      %v2839 = vld [vmem:[%s597 + $0xc0] sm:$0xff]
      %v2840 = vld [vmem:[%s597 + $0xc8] sm:$0xff]
      %v2841 = vld [vmem:[%s597 + $0xd8] sm:$0xff]
      %v2842 = vld [vmem:[%s597 + $0xe0] sm:$0xff]
      %v2843 = vld [vmem:[%s597 + $0xf0] sm:$0xff]
      %v2844 = vld [vmem:[%s597 + $0xf8] sm:$0xff]
      %v2845 = vld [vmem:[%s597 + $0x108] sm:$0xff]
      %v2846 = vld [vmem:[%s597 + $0x110] sm:$0xff]
      %v2847 = vld [vmem:[%s597 + $0x120] sm:$0xff]
      %v2848 = vld [vmem:[%s597 + $0x128] sm:$0xff]
      %v2849 = vld [vmem:[%s597 + $0x138] sm:$0xff]
      %v2850 = vld [vmem:[%s597 + $0x140] sm:$0xff]
      %v2851 = vld [vmem:[%s597 + $0x150] sm:$0xff]
      %v2852 = vld [vmem:[%s597 + $0x158] sm:$0xff]
      %v2853 = vld [vmem:[%s597 + $0x168] sm:$0xff]
      %v2854 = vld [vmem:[%s597 + $0x170] sm:$0xff]
      %v2855 = vlaneseq
      %v2856 = vshrl.u32 %v2855, 7
      %v2857 = vsub.s32 3, %v2856
      %v2858 = vrot.slane %v2521, %v2857
      %v2859 = vmul.f32 %v2823, %v2858
      %v2860 = vmul.f32 %v2824, %v2858
      %v2861 = vmul.f32 %v2825, %v2858
      %v2862 = vmul.f32 %v2826, %v2858
      %v2863 = vmul.f32 %v2827, %v2858
      %v2864 = vmul.f32 %v2828, %v2858
      %v2865 = vmul.f32 %v2829, %v2858
      %v2866 = vmul.f32 %v2830, %v2858
      %v2867 = vmul.f32 %v2831, %v2858
      %v2868 = vmul.f32 %v2832, %v2858
      %v2869 = vmul.f32 %v2833, %v2858
      %v2870 = vmul.f32 %v2834, %v2858
      %v2871 = vmul.f32 %v2835, %v2858
      %v2872 = vmul.f32 %v2836, %v2858
      %v2873 = vmul.f32 %v2837, %v2858
      %v2874 = vmul.f32 %v2838, %v2858
      %v2875 = vmul.f32 %v2839, %v2858
      %v2876 = vmul.f32 %v2840, %v2858
      %v2877 = vmul.f32 %v2841, %v2858
      %v2878 = vmul.f32 %v2842, %v2858
      %v2879 = vmul.f32 %v2843, %v2858
      %v2880 = vmul.f32 %v2844, %v2858
      %v2881 = vmul.f32 %v2845, %v2858
      %v2882 = vmul.f32 %v2846, %v2858
      %v2883 = vmul.f32 %v2847, %v2858
      %v2884 = vmul.f32 %v2848, %v2858
      %v2885 = vmul.f32 %v2849, %v2858
      %v2886 = vmul.f32 %v2850, %v2858
      %v2887 = vmul.f32 %v2851, %v2858
      %v2888 = vmul.f32 %v2852, %v2858
      %v2889 = vmul.f32 %v2853, %v2858
      %v2890 = vmul.f32 %v2854, %v2858
      %v2891 = vadd.f32 %v2791, %v2859
      %v2892 = vadd.f32 %v2792, %v2860
      %v2893 = vadd.f32 %v2793, %v2861
      %v2894 = vadd.f32 %v2794, %v2862
      %v2895 = vadd.f32 %v2795, %v2863
      %v2896 = vadd.f32 %v2796, %v2864
      %v2897 = vadd.f32 %v2797, %v2865
      %v2898 = vadd.f32 %v2798, %v2866
      %v2899 = vadd.f32 %v2799, %v2867
      %v2900 = vadd.f32 %v2800, %v2868
      %v2901 = vadd.f32 %v2801, %v2869
      %v2902 = vadd.f32 %v2802, %v2870
      %v2903 = vadd.f32 %v2803, %v2871
      %v2904 = vadd.f32 %v2804, %v2872
      %v2905 = vadd.f32 %v2805, %v2873
      %v2906 = vadd.f32 %v2806, %v2874
      %v2907 = vadd.f32 %v2807, %v2875
      %v2908 = vadd.f32 %v2808, %v2876
      %v2909 = vadd.f32 %v2809, %v2877
      %v2910 = vadd.f32 %v2810, %v2878
      %v2911 = vadd.f32 %v2811, %v2879
      %v2912 = vadd.f32 %v2812, %v2880
      %v2913 = vadd.f32 %v2813, %v2881
      %v2914 = vadd.f32 %v2814, %v2882
      %v2915 = vadd.f32 %v2815, %v2883
      %v2916 = vadd.f32 %v2816, %v2884
      %v2917 = vadd.f32 %v2817, %v2885
      %v2918 = vadd.f32 %v2818, %v2886
      %v2919 = vadd.f32 %v2819, %v2887
      %v2920 = vadd.f32 %v2820, %v2888
      %v2921 = vadd.f32 %v2821, %v2889
      %v2922 = vadd.f32 %v2822, %v2890
      %v2923 = vld [vmem:[%s597 + $0x1] sm:$0xff]
      %v2924 = vld [vmem:[%s597 + $0x9] sm:$0xff]
      %v2925 = vld [vmem:[%s597 + $0x19] sm:$0xff]
      %v2926 = vld [vmem:[%s597 + $0x21] sm:$0xff]
      %v2927 = vld [vmem:[%s597 + $0x31] sm:$0xff]
      %v2928 = vld [vmem:[%s597 + $0x39] sm:$0xff]
      %v2929 = vld [vmem:[%s597 + $0x49] sm:$0xff]
      %v2930 = vld [vmem:[%s597 + $0x51] sm:$0xff]
      %v2931 = vld [vmem:[%s597 + $0x61] sm:$0xff]
      %v2932 = vld [vmem:[%s597 + $0x69] sm:$0xff]
      %v2933 = vld [vmem:[%s597 + $0x79] sm:$0xff]
      %v2934 = vld [vmem:[%s597 + $0x81] sm:$0xff]
      %v2935 = vld [vmem:[%s597 + $0x91] sm:$0xff]
      %v2936 = vld [vmem:[%s597 + $0x99] sm:$0xff]
      %v2937 = vld [vmem:[%s597 + $0xa9] sm:$0xff]
      %v2938 = vld [vmem:[%s597 + $0xb1] sm:$0xff]
      %v2939 = vld [vmem:[%s597 + $0xc1] sm:$0xff]
      %v2940 = vld [vmem:[%s597 + $0xc9] sm:$0xff]
      %v2941 = vld [vmem:[%s597 + $0xd9] sm:$0xff]
      %v2942 = vld [vmem:[%s597 + $0xe1] sm:$0xff]
      %v2943 = vld [vmem:[%s597 + $0xf1] sm:$0xff]
      %v2944 = vld [vmem:[%s597 + $0xf9] sm:$0xff]
      %v2945 = vld [vmem:[%s597 + $0x109] sm:$0xff]
      %v2946 = vld [vmem:[%s597 + $0x111] sm:$0xff]
      %v2947 = vld [vmem:[%s597 + $0x121] sm:$0xff]
      %v2948 = vld [vmem:[%s597 + $0x129] sm:$0xff]
      %v2949 = vld [vmem:[%s597 + $0x139] sm:$0xff]
      %v2950 = vld [vmem:[%s597 + $0x141] sm:$0xff]
      %v2951 = vld [vmem:[%s597 + $0x151] sm:$0xff]
      %v2952 = vld [vmem:[%s597 + $0x159] sm:$0xff]
      %v2953 = vld [vmem:[%s597 + $0x169] sm:$0xff]
      %v2954 = vld [vmem:[%s597 + $0x171] sm:$0xff]
      %v2955 = vlaneseq
      %v2956 = vshrl.u32 %v2955, 7
      %v2957 = vsub.s32 4, %v2956
      %v2958 = vrot.slane %v2521, %v2957
      %v2959 = vmul.f32 %v2923, %v2958
      %v2960 = vmul.f32 %v2924, %v2958
      %v2961 = vmul.f32 %v2925, %v2958
      %v2962 = vmul.f32 %v2926, %v2958
      %v2963 = vmul.f32 %v2927, %v2958
      %v2964 = vmul.f32 %v2928, %v2958
      %v2965 = vmul.f32 %v2929, %v2958
      %v2966 = vmul.f32 %v2930, %v2958
      %v2967 = vmul.f32 %v2931, %v2958
      %v2968 = vmul.f32 %v2932, %v2958
      %v2969 = vmul.f32 %v2933, %v2958
      %v2970 = vmul.f32 %v2934, %v2958
      %v2971 = vmul.f32 %v2935, %v2958
      %v2972 = vmul.f32 %v2936, %v2958
      %v2973 = vmul.f32 %v2937, %v2958
      %v2974 = vmul.f32 %v2938, %v2958
      %v2975 = vmul.f32 %v2939, %v2958
      %v2976 = vmul.f32 %v2940, %v2958
      %v2977 = vmul.f32 %v2941, %v2958
      %v2978 = vmul.f32 %v2942, %v2958
      %v2979 = vmul.f32 %v2943, %v2958
      %v2980 = vmul.f32 %v2944, %v2958
      %v2981 = vmul.f32 %v2945, %v2958
      %v2982 = vmul.f32 %v2946, %v2958
      %v2983 = vmul.f32 %v2947, %v2958
      %v2984 = vmul.f32 %v2948, %v2958
      %v2985 = vmul.f32 %v2949, %v2958
      %v2986 = vmul.f32 %v2950, %v2958
      %v2987 = vmul.f32 %v2951, %v2958
      %v2988 = vmul.f32 %v2952, %v2958
      %v2989 = vmul.f32 %v2953, %v2958
      %v2990 = vmul.f32 %v2954, %v2958
      %v2991 = vadd.f32 %v2891, %v2959
      %v2992 = vadd.f32 %v2892, %v2960
      %v2993 = vadd.f32 %v2893, %v2961
      %v2994 = vadd.f32 %v2894, %v2962
      %v2995 = vadd.f32 %v2895, %v2963
      %v2996 = vadd.f32 %v2896, %v2964
      %v2997 = vadd.f32 %v2897, %v2965
      %v2998 = vadd.f32 %v2898, %v2966
      %v2999 = vadd.f32 %v2899, %v2967
      %v3000 = vadd.f32 %v2900, %v2968
      %v3001 = vadd.f32 %v2901, %v2969
      %v3002 = vadd.f32 %v2902, %v2970
      %v3003 = vadd.f32 %v2903, %v2971
      %v3004 = vadd.f32 %v2904, %v2972
      %v3005 = vadd.f32 %v2905, %v2973
      %v3006 = vadd.f32 %v2906, %v2974
      %v3007 = vadd.f32 %v2907, %v2975
      %v3008 = vadd.f32 %v2908, %v2976
      %v3009 = vadd.f32 %v2909, %v2977
      %v3010 = vadd.f32 %v2910, %v2978
      %v3011 = vadd.f32 %v2911, %v2979
      %v3012 = vadd.f32 %v2912, %v2980
      %v3013 = vadd.f32 %v2913, %v2981
      %v3014 = vadd.f32 %v2914, %v2982
      %v3015 = vadd.f32 %v2915, %v2983
      %v3016 = vadd.f32 %v2916, %v2984
      %v3017 = vadd.f32 %v2917, %v2985
      %v3018 = vadd.f32 %v2918, %v2986
      %v3019 = vadd.f32 %v2919, %v2987
      %v3020 = vadd.f32 %v2920, %v2988
      %v3021 = vadd.f32 %v2921, %v2989
      %v3022 = vadd.f32 %v2922, %v2990
      %v3023 = vld [vmem:[%s597 + $0x2] sm:$0xff]
      %v3024 = vld [vmem:[%s597 + $0xa] sm:$0xff]
      %v3025 = vld [vmem:[%s597 + $0x1a] sm:$0xff]
      %v3026 = vld [vmem:[%s597 + $0x22] sm:$0xff]
      %v3027 = vld [vmem:[%s597 + $0x32] sm:$0xff]
      %v3028 = vld [vmem:[%s597 + $0x3a] sm:$0xff]
      %v3029 = vld [vmem:[%s597 + $0x4a] sm:$0xff]
      %v3030 = vld [vmem:[%s597 + $0x52] sm:$0xff]
      %v3031 = vld [vmem:[%s597 + $0x62] sm:$0xff]
      %v3032 = vld [vmem:[%s597 + $0x6a] sm:$0xff]
      %v3033 = vld [vmem:[%s597 + $0x7a] sm:$0xff]
      %v3034 = vld [vmem:[%s597 + $0x82] sm:$0xff]
      %v3035 = vld [vmem:[%s597 + $0x92] sm:$0xff]
      %v3036 = vld [vmem:[%s597 + $0x9a] sm:$0xff]
      %v3037 = vld [vmem:[%s597 + $0xaa] sm:$0xff]
      %v3038 = vld [vmem:[%s597 + $0xb2] sm:$0xff]
      %v3039 = vld [vmem:[%s597 + $0xc2] sm:$0xff]
      %v3040 = vld [vmem:[%s597 + $0xca] sm:$0xff]
      %v3041 = vld [vmem:[%s597 + $0xda] sm:$0xff]
      %v3042 = vld [vmem:[%s597 + $0xe2] sm:$0xff]
      %v3043 = vld [vmem:[%s597 + $0xf2] sm:$0xff]
      %v3044 = vld [vmem:[%s597 + $0xfa] sm:$0xff]
      %v3045 = vld [vmem:[%s597 + $0x10a] sm:$0xff]
      %v3046 = vld [vmem:[%s597 + $0x112] sm:$0xff]
      %v3047 = vld [vmem:[%s597 + $0x122] sm:$0xff]
      %v3048 = vld [vmem:[%s597 + $0x12a] sm:$0xff]
      %v3049 = vld [vmem:[%s597 + $0x13a] sm:$0xff]
      %v3050 = vld [vmem:[%s597 + $0x142] sm:$0xff]
      %v3051 = vld [vmem:[%s597 + $0x152] sm:$0xff]
      %v3052 = vld [vmem:[%s597 + $0x15a] sm:$0xff]
      %v3053 = vld [vmem:[%s597 + $0x16a] sm:$0xff]
      %v3054 = vld [vmem:[%s597 + $0x172] sm:$0xff]
      %v3055 = vlaneseq
      %v3056 = vshrl.u32 %v3055, 7
      %v3057 = vsub.s32 5, %v3056
      %v3058 = vrot.slane %v2521, %v3057
      %v3059 = vmul.f32 %v3023, %v3058
      %v3060 = vmul.f32 %v3024, %v3058
      %v3061 = vmul.f32 %v3025, %v3058
      %v3062 = vmul.f32 %v3026, %v3058
      %v3063 = vmul.f32 %v3027, %v3058
      %v3064 = vmul.f32 %v3028, %v3058
      %v3065 = vmul.f32 %v3029, %v3058
      %v3066 = vmul.f32 %v3030, %v3058
      %v3067 = vmul.f32 %v3031, %v3058
      %v3068 = vmul.f32 %v3032, %v3058
      %v3069 = vmul.f32 %v3033, %v3058
      %v3070 = vmul.f32 %v3034, %v3058
      %v3071 = vmul.f32 %v3035, %v3058
      %v3072 = vmul.f32 %v3036, %v3058
      %v3073 = vmul.f32 %v3037, %v3058
      %v3074 = vmul.f32 %v3038, %v3058
      %v3075 = vmul.f32 %v3039, %v3058
      %v3076 = vmul.f32 %v3040, %v3058
      %v3077 = vmul.f32 %v3041, %v3058
      %v3078 = vmul.f32 %v3042, %v3058
      %v3079 = vmul.f32 %v3043, %v3058
      %v3080 = vmul.f32 %v3044, %v3058
      %v3081 = vmul.f32 %v3045, %v3058
      %v3082 = vmul.f32 %v3046, %v3058
      %v3083 = vmul.f32 %v3047, %v3058
      %v3084 = vmul.f32 %v3048, %v3058
      %v3085 = vmul.f32 %v3049, %v3058
      %v3086 = vmul.f32 %v3050, %v3058
      %v3087 = vmul.f32 %v3051, %v3058
      %v3088 = vmul.f32 %v3052, %v3058
      %v3089 = vmul.f32 %v3053, %v3058
      %v3090 = vmul.f32 %v3054, %v3058
      %v3091 = vadd.f32 %v2991, %v3059
      %v3092 = vadd.f32 %v2992, %v3060
      %v3093 = vadd.f32 %v2993, %v3061
      %v3094 = vadd.f32 %v2994, %v3062
      %v3095 = vadd.f32 %v2995, %v3063
      %v3096 = vadd.f32 %v2996, %v3064
      %v3097 = vadd.f32 %v2997, %v3065
      %v3098 = vadd.f32 %v2998, %v3066
      %v3099 = vadd.f32 %v2999, %v3067
      %v3100 = vadd.f32 %v3000, %v3068
      %v3101 = vadd.f32 %v3001, %v3069
      %v3102 = vadd.f32 %v3002, %v3070
      %v3103 = vadd.f32 %v3003, %v3071
      %v3104 = vadd.f32 %v3004, %v3072
      %v3105 = vadd.f32 %v3005, %v3073
      %v3106 = vadd.f32 %v3006, %v3074
      %v3107 = vadd.f32 %v3007, %v3075
      %v3108 = vadd.f32 %v3008, %v3076
      %v3109 = vadd.f32 %v3009, %v3077
      %v3110 = vadd.f32 %v3010, %v3078
      %v3111 = vadd.f32 %v3011, %v3079
      %v3112 = vadd.f32 %v3012, %v3080
      %v3113 = vadd.f32 %v3013, %v3081
      %v3114 = vadd.f32 %v3014, %v3082
      %v3115 = vadd.f32 %v3015, %v3083
      %v3116 = vadd.f32 %v3016, %v3084
      %v3117 = vadd.f32 %v3017, %v3085
      %v3118 = vadd.f32 %v3018, %v3086
      %v3119 = vadd.f32 %v3019, %v3087
      %v3120 = vadd.f32 %v3020, %v3088
      %v3121 = vadd.f32 %v3021, %v3089
      %v3122 = vadd.f32 %v3022, %v3090
      %v3123 = vld [vmem:[%s717] sm:$0xff]
      %v3124 = vld [vmem:[%s717 + $0x8] sm:$0xff]
      %v3125 = vld [vmem:[%s717 + $0x18] sm:$0xff]
      %v3126 = vld [vmem:[%s717 + $0x20] sm:$0xff]
      %v3127 = vld [vmem:[%s717 + $0x30] sm:$0xff]
      %v3128 = vld [vmem:[%s717 + $0x38] sm:$0xff]
      %v3129 = vld [vmem:[%s717 + $0x48] sm:$0xff]
      %v3130 = vld [vmem:[%s717 + $0x50] sm:$0xff]
      %v3131 = vld [vmem:[%s717 + $0x60] sm:$0xff]
      %v3132 = vld [vmem:[%s717 + $0x68] sm:$0xff]
      %v3133 = vld [vmem:[%s717 + $0x78] sm:$0xff]
      %v3134 = vld [vmem:[%s717 + $0x80] sm:$0xff]
      %v3135 = vld [vmem:[%s717 + $0x90] sm:$0xff]
      %v3136 = vld [vmem:[%s717 + $0x98] sm:$0xff]
      %v3137 = vld [vmem:[%s717 + $0xa8] sm:$0xff]
      %v3138 = vld [vmem:[%s717 + $0xb0] sm:$0xff]
      %v3139 = vld [vmem:[%s717 + $0xc0] sm:$0xff]
      %v3140 = vld [vmem:[%s717 + $0xc8] sm:$0xff]
      %v3141 = vld [vmem:[%s717 + $0xd8] sm:$0xff]
      %v3142 = vld [vmem:[%s717 + $0xe0] sm:$0xff]
      %v3143 = vld [vmem:[%s717 + $0xf0] sm:$0xff]
      %v3144 = vld [vmem:[%s717 + $0xf8] sm:$0xff]
      %v3145 = vld [vmem:[%s717 + $0x108] sm:$0xff]
      %v3146 = vld [vmem:[%s717 + $0x110] sm:$0xff]
      %v3147 = vld [vmem:[%s717 + $0x120] sm:$0xff]
      %v3148 = vld [vmem:[%s717 + $0x128] sm:$0xff]
      %v3149 = vld [vmem:[%s717 + $0x138] sm:$0xff]
      %v3150 = vld [vmem:[%s717 + $0x140] sm:$0xff]
      %v3151 = vld [vmem:[%s717 + $0x150] sm:$0xff]
      %v3152 = vld [vmem:[%s717 + $0x158] sm:$0xff]
      %v3153 = vld [vmem:[%s717 + $0x168] sm:$0xff]
      %v3154 = vld [vmem:[%s717 + $0x170] sm:$0xff]
      %v3155 = vlaneseq
      %v3156 = vshrl.u32 %v3155, 7
      %v3157 = vsub.s32 6, %v3156
      %v3158 = vrot.slane %v2521, %v3157
      %v3159 = vmul.f32 %v3123, %v3158
      %v3160 = vmul.f32 %v3124, %v3158
      %v3161 = vmul.f32 %v3125, %v3158
      %v3162 = vmul.f32 %v3126, %v3158
      %v3163 = vmul.f32 %v3127, %v3158
      %v3164 = vmul.f32 %v3128, %v3158
      %v3165 = vmul.f32 %v3129, %v3158
      %v3166 = vmul.f32 %v3130, %v3158
      %v3167 = vmul.f32 %v3131, %v3158
      %v3168 = vmul.f32 %v3132, %v3158
      %v3169 = vmul.f32 %v3133, %v3158
      %v3170 = vmul.f32 %v3134, %v3158
      %v3171 = vmul.f32 %v3135, %v3158
      %v3172 = vmul.f32 %v3136, %v3158
      %v3173 = vmul.f32 %v3137, %v3158
      %v3174 = vmul.f32 %v3138, %v3158
      %v3175 = vmul.f32 %v3139, %v3158
      %v3176 = vmul.f32 %v3140, %v3158
      %v3177 = vmul.f32 %v3141, %v3158
      %v3178 = vmul.f32 %v3142, %v3158
      %v3179 = vmul.f32 %v3143, %v3158
      %v3180 = vmul.f32 %v3144, %v3158
      %v3181 = vmul.f32 %v3145, %v3158
      %v3182 = vmul.f32 %v3146, %v3158
      %v3183 = vmul.f32 %v3147, %v3158
      %v3184 = vmul.f32 %v3148, %v3158
      %v3185 = vmul.f32 %v3149, %v3158
      %v3186 = vmul.f32 %v3150, %v3158
      %v3187 = vmul.f32 %v3151, %v3158
      %v3188 = vmul.f32 %v3152, %v3158
      %v3189 = vmul.f32 %v3153, %v3158
      %v3190 = vmul.f32 %v3154, %v3158
      %v3191 = vadd.f32 %v3091, %v3159
      %v3192 = vadd.f32 %v3092, %v3160
      %v3193 = vadd.f32 %v3093, %v3161
      %v3194 = vadd.f32 %v3094, %v3162
      %v3195 = vadd.f32 %v3095, %v3163
      %v3196 = vadd.f32 %v3096, %v3164
      %v3197 = vadd.f32 %v3097, %v3165
      %v3198 = vadd.f32 %v3098, %v3166
      %v3199 = vadd.f32 %v3099, %v3167
      %v3200 = vadd.f32 %v3100, %v3168
      %v3201 = vadd.f32 %v3101, %v3169
      %v3202 = vadd.f32 %v3102, %v3170
      %v3203 = vadd.f32 %v3103, %v3171
      %v3204 = vadd.f32 %v3104, %v3172
      %v3205 = vadd.f32 %v3105, %v3173
      %v3206 = vadd.f32 %v3106, %v3174
      %v3207 = vadd.f32 %v3107, %v3175
      %v3208 = vadd.f32 %v3108, %v3176
      %v3209 = vadd.f32 %v3109, %v3177
      %v3210 = vadd.f32 %v3110, %v3178
      %v3211 = vadd.f32 %v3111, %v3179
      %v3212 = vadd.f32 %v3112, %v3180
      %v3213 = vadd.f32 %v3113, %v3181
      %v3214 = vadd.f32 %v3114, %v3182
      %v3215 = vadd.f32 %v3115, %v3183
      %v3216 = vadd.f32 %v3116, %v3184
      %v3217 = vadd.f32 %v3117, %v3185
      %v3218 = vadd.f32 %v3118, %v3186
      %v3219 = vadd.f32 %v3119, %v3187
      %v3220 = vadd.f32 %v3120, %v3188
      %v3221 = vadd.f32 %v3121, %v3189
      %v3222 = vadd.f32 %v3122, %v3190
      %v3223 = vld [vmem:[%s717 + $0x1] sm:$0xff]
      %v3224 = vld [vmem:[%s717 + $0x9] sm:$0xff]
      %v3225 = vld [vmem:[%s717 + $0x19] sm:$0xff]
      %v3226 = vld [vmem:[%s717 + $0x21] sm:$0xff]
      %v3227 = vld [vmem:[%s717 + $0x31] sm:$0xff]
      %v3228 = vld [vmem:[%s717 + $0x39] sm:$0xff]
      %v3229 = vld [vmem:[%s717 + $0x49] sm:$0xff]
      %v3230 = vld [vmem:[%s717 + $0x51] sm:$0xff]
      %v3231 = vld [vmem:[%s717 + $0x61] sm:$0xff]
      %v3232 = vld [vmem:[%s717 + $0x69] sm:$0xff]
      %v3233 = vld [vmem:[%s717 + $0x79] sm:$0xff]
      %v3234 = vld [vmem:[%s717 + $0x81] sm:$0xff]
      %v3235 = vld [vmem:[%s717 + $0x91] sm:$0xff]
      %v3236 = vld [vmem:[%s717 + $0x99] sm:$0xff]
      %v3237 = vld [vmem:[%s717 + $0xa9] sm:$0xff]
      %v3238 = vld [vmem:[%s717 + $0xb1] sm:$0xff]
      %v3239 = vld [vmem:[%s717 + $0xc1] sm:$0xff]
      %v3240 = vld [vmem:[%s717 + $0xc9] sm:$0xff]
      %v3241 = vld [vmem:[%s717 + $0xd9] sm:$0xff]
      %v3242 = vld [vmem:[%s717 + $0xe1] sm:$0xff]
      %v3243 = vld [vmem:[%s717 + $0xf1] sm:$0xff]
      %v3244 = vld [vmem:[%s717 + $0xf9] sm:$0xff]
      %v3245 = vld [vmem:[%s717 + $0x109] sm:$0xff]
      %v3246 = vld [vmem:[%s717 + $0x111] sm:$0xff]
      %v3247 = vld [vmem:[%s717 + $0x121] sm:$0xff]
      %v3248 = vld [vmem:[%s717 + $0x129] sm:$0xff]
      %v3249 = vld [vmem:[%s717 + $0x139] sm:$0xff]
      %v3250 = vld [vmem:[%s717 + $0x141] sm:$0xff]
      %v3251 = vld [vmem:[%s717 + $0x151] sm:$0xff]
      %v3252 = vld [vmem:[%s717 + $0x159] sm:$0xff]
      %v3253 = vld [vmem:[%s717 + $0x169] sm:$0xff]
      %v3254 = vld [vmem:[%s717 + $0x171] sm:$0xff]
      %v3255 = vlaneseq
      %v3256 = vshrl.u32 %v3255, 7
      %v3257 = vsub.s32 7, %v3256
      %v3258 = vrot.slane %v2521, %v3257
      %v3259 = vmul.f32 %v3223, %v3258
      %v3260 = vmul.f32 %v3224, %v3258
      %v3261 = vmul.f32 %v3225, %v3258
      %v3262 = vmul.f32 %v3226, %v3258
      %v3263 = vmul.f32 %v3227, %v3258
      %v3264 = vmul.f32 %v3228, %v3258
      %v3265 = vmul.f32 %v3229, %v3258
      %v3266 = vmul.f32 %v3230, %v3258
      %v3267 = vmul.f32 %v3231, %v3258
      %v3268 = vmul.f32 %v3232, %v3258
      %v3269 = vmul.f32 %v3233, %v3258
      %v3270 = vmul.f32 %v3234, %v3258
      %v3271 = vmul.f32 %v3235, %v3258
      %v3272 = vmul.f32 %v3236, %v3258
      %v3273 = vmul.f32 %v3237, %v3258
      %v3274 = vmul.f32 %v3238, %v3258
      %v3275 = vmul.f32 %v3239, %v3258
      %v3276 = vmul.f32 %v3240, %v3258
      %v3277 = vmul.f32 %v3241, %v3258
      %v3278 = vmul.f32 %v3242, %v3258
      %v3279 = vmul.f32 %v3243, %v3258
      %v3280 = vmul.f32 %v3244, %v3258
      %v3281 = vmul.f32 %v3245, %v3258
      %v3282 = vmul.f32 %v3246, %v3258
      %v3283 = vmul.f32 %v3247, %v3258
      %v3284 = vmul.f32 %v3248, %v3258
      %v3285 = vmul.f32 %v3249, %v3258
      %v3286 = vmul.f32 %v3250, %v3258
      %v3287 = vmul.f32 %v3251, %v3258
      %v3288 = vmul.f32 %v3252, %v3258
      %v3289 = vmul.f32 %v3253, %v3258
      %v3290 = vmul.f32 %v3254, %v3258
      %v3291 = vadd.f32 %v3191, %v3259
      %v3292 = vadd.f32 %v3192, %v3260
      %v3293 = vadd.f32 %v3193, %v3261
      %v3294 = vadd.f32 %v3194, %v3262
      %v3295 = vadd.f32 %v3195, %v3263
      %v3296 = vadd.f32 %v3196, %v3264
      %v3297 = vadd.f32 %v3197, %v3265
      %v3298 = vadd.f32 %v3198, %v3266
      %v3299 = vadd.f32 %v3199, %v3267
      %v3300 = vadd.f32 %v3200, %v3268
      %v3301 = vadd.f32 %v3201, %v3269
      %v3302 = vadd.f32 %v3202, %v3270
      %v3303 = vadd.f32 %v3203, %v3271
      %v3304 = vadd.f32 %v3204, %v3272
      %v3305 = vadd.f32 %v3205, %v3273
      %v3306 = vadd.f32 %v3206, %v3274
      %v3307 = vadd.f32 %v3207, %v3275
      %v3308 = vadd.f32 %v3208, %v3276
      %v3309 = vadd.f32 %v3209, %v3277
      %v3310 = vadd.f32 %v3210, %v3278
      %v3311 = vadd.f32 %v3211, %v3279
      %v3312 = vadd.f32 %v3212, %v3280
      %v3313 = vadd.f32 %v3213, %v3281
      %v3314 = vadd.f32 %v3214, %v3282
      %v3315 = vadd.f32 %v3215, %v3283
      %v3316 = vadd.f32 %v3216, %v3284
      %v3317 = vadd.f32 %v3217, %v3285
      %v3318 = vadd.f32 %v3218, %v3286
      %v3319 = vadd.f32 %v3219, %v3287
      %v3320 = vadd.f32 %v3220, %v3288
      %v3321 = vadd.f32 %v3221, %v3289
      %v3322 = vadd.f32 %v3222, %v3290
      %v3323 = vld [vmem:[%s717 + $0x2] sm:$0xff]
      %v3324 = vld [vmem:[%s717 + $0xa] sm:$0xff]
      %v3325 = vld [vmem:[%s717 + $0x1a] sm:$0xff]
      %v3326 = vld [vmem:[%s717 + $0x22] sm:$0xff]
      %v3327 = vld [vmem:[%s717 + $0x32] sm:$0xff]
      %v3328 = vld [vmem:[%s717 + $0x3a] sm:$0xff]
      %v3329 = vld [vmem:[%s717 + $0x4a] sm:$0xff]
      %v3330 = vld [vmem:[%s717 + $0x52] sm:$0xff]
      %v3331 = vld [vmem:[%s717 + $0x62] sm:$0xff]
      %v3332 = vld [vmem:[%s717 + $0x6a] sm:$0xff]
      %v3333 = vld [vmem:[%s717 + $0x7a] sm:$0xff]
      %v3334 = vld [vmem:[%s717 + $0x82] sm:$0xff]
      %v3335 = vld [vmem:[%s717 + $0x92] sm:$0xff]
      %v3336 = vld [vmem:[%s717 + $0x9a] sm:$0xff]
      %v3337 = vld [vmem:[%s717 + $0xaa] sm:$0xff]
      %v3338 = vld [vmem:[%s717 + $0xb2] sm:$0xff]
      %v3339 = vld [vmem:[%s717 + $0xc2] sm:$0xff]
      %v3340 = vld [vmem:[%s717 + $0xca] sm:$0xff]
      %v3341 = vld [vmem:[%s717 + $0xda] sm:$0xff]
      %v3342 = vld [vmem:[%s717 + $0xe2] sm:$0xff]
      %v3343 = vld [vmem:[%s717 + $0xf2] sm:$0xff]
      %v3344 = vld [vmem:[%s717 + $0xfa] sm:$0xff]
      %v3345 = vld [vmem:[%s717 + $0x10a] sm:$0xff]
      %v3346 = vld [vmem:[%s717 + $0x112] sm:$0xff]
      %v3347 = vld [vmem:[%s717 + $0x122] sm:$0xff]
      %v3348 = vld [vmem:[%s717 + $0x12a] sm:$0xff]
      %v3349 = vld [vmem:[%s717 + $0x13a] sm:$0xff]
      %v3350 = vld [vmem:[%s717 + $0x142] sm:$0xff]
      %v3351 = vld [vmem:[%s717 + $0x152] sm:$0xff]
      %v3352 = vld [vmem:[%s717 + $0x15a] sm:$0xff]
      %v3353 = vld [vmem:[%s717 + $0x16a] sm:$0xff]
      %v3354 = vld [vmem:[%s717 + $0x172] sm:$0xff]
      %v3355 = vlaneseq
      %v3356 = vshrl.u32 %v3355, 7
      %v3357 = vsub.s32 0, %v3356
      %v3358 = vrot.slane %v2522, %v3357
      %v3359 = vmul.f32 %v3323, %v3358
      %v3360 = vmul.f32 %v3324, %v3358
      %v3361 = vmul.f32 %v3325, %v3358
      %v3362 = vmul.f32 %v3326, %v3358
      %v3363 = vmul.f32 %v3327, %v3358
      %v3364 = vmul.f32 %v3328, %v3358
      %v3365 = vmul.f32 %v3329, %v3358
      %v3366 = vmul.f32 %v3330, %v3358
      %v3367 = vmul.f32 %v3331, %v3358
      %v3368 = vmul.f32 %v3332, %v3358
      %v3369 = vmul.f32 %v3333, %v3358
      %v3370 = vmul.f32 %v3334, %v3358
      %v3371 = vmul.f32 %v3335, %v3358
      %v3372 = vmul.f32 %v3336, %v3358
      %v3373 = vmul.f32 %v3337, %v3358
      %v3374 = vmul.f32 %v3338, %v3358
      %v3375 = vmul.f32 %v3339, %v3358
      %v3376 = vmul.f32 %v3340, %v3358
      %v3377 = vmul.f32 %v3341, %v3358
      %v3378 = vmul.f32 %v3342, %v3358
      %v3379 = vmul.f32 %v3343, %v3358
      %v3380 = vmul.f32 %v3344, %v3358
      %v3381 = vmul.f32 %v3345, %v3358
      %v3382 = vmul.f32 %v3346, %v3358
      %v3383 = vmul.f32 %v3347, %v3358
      %v3384 = vmul.f32 %v3348, %v3358
      %v3385 = vmul.f32 %v3349, %v3358
      %v3386 = vmul.f32 %v3350, %v3358
      %v3387 = vmul.f32 %v3351, %v3358
      %v3388 = vmul.f32 %v3352, %v3358
      %v3389 = vmul.f32 %v3353, %v3358
      %v3390 = vmul.f32 %v3354, %v3358
      %v3391 = vadd.f32 %v3291, %v3359
      %v3392 = vadd.f32 %v3292, %v3360
      %v3393 = vadd.f32 %v3293, %v3361
      %v3394 = vadd.f32 %v3294, %v3362
      %v3395 = vadd.f32 %v3295, %v3363
      %v3396 = vadd.f32 %v3296, %v3364
      %v3397 = vadd.f32 %v3297, %v3365
      %v3398 = vadd.f32 %v3298, %v3366
      %v3399 = vadd.f32 %v3299, %v3367
      %v3400 = vadd.f32 %v3300, %v3368
      %v3401 = vadd.f32 %v3301, %v3369
      %v3402 = vadd.f32 %v3302, %v3370
      %v3403 = vadd.f32 %v3303, %v3371
      %v3404 = vadd.f32 %v3304, %v3372
      %v3405 = vadd.f32 %v3305, %v3373
      %v3406 = vadd.f32 %v3306, %v3374
      %v3407 = vadd.f32 %v3307, %v3375
      %v3408 = vadd.f32 %v3308, %v3376
      %v3409 = vadd.f32 %v3309, %v3377
      %v3410 = vadd.f32 %v3310, %v3378
      %v3411 = vadd.f32 %v3311, %v3379
      %v3412 = vadd.f32 %v3312, %v3380
      %v3413 = vadd.f32 %v3313, %v3381
      %v3414 = vadd.f32 %v3314, %v3382
      %v3415 = vadd.f32 %v3315, %v3383
      %v3416 = vadd.f32 %v3316, %v3384
      %v3417 = vadd.f32 %v3317, %v3385
      %v3418 = vadd.f32 %v3318, %v3386
      %v3419 = vadd.f32 %v3319, %v3387
      %v3420 = vadd.f32 %v3320, %v3388
      %v3421 = vadd.f32 %v3321, %v3389
      %v3422 = vadd.f32 %v3322, %v3390
      %v3423 = vld [vmem:[%s5] sm:$0x1]
      %v3425 = vlaneseq
      %v3426 = vshrl.u32 %v3425, 7
      %v3427 = vsub.s32 0, %v3426
      %v3428 = vrot.slane %v3423, %v3427
      %v3430 = vmul.f32 %v3391, %v3428
      %v3431 = vmul.f32 %v3392, %v3428
      %v3432 = vmul.f32 %v3393, %v3428
      %v3433 = vmul.f32 %v3394, %v3428
      %v3434 = vmul.f32 %v3395, %v3428
      %v3435 = vmul.f32 %v3396, %v3428
      %v3436 = vmul.f32 %v3397, %v3428
      %v3437 = vmul.f32 %v3398, %v3428
      %v3438 = vmul.f32 %v3399, %v3428
      %v3439 = vmul.f32 %v3400, %v3428
      %v3440 = vmul.f32 %v3401, %v3428
      %v3441 = vmul.f32 %v3402, %v3428
      %v3442 = vmul.f32 %v3403, %v3428
      %v3443 = vmul.f32 %v3404, %v3428
      %v3444 = vmul.f32 %v3405, %v3428
      %v3445 = vmul.f32 %v3406, %v3428
      %v3446 = vmul.f32 %v3407, %v3428
      %v3447 = vmul.f32 %v3408, %v3428
      %v3448 = vmul.f32 %v3409, %v3428
      %v3449 = vmul.f32 %v3410, %v3428
      %v3450 = vmul.f32 %v3411, %v3428
      %v3451 = vmul.f32 %v3412, %v3428
      %v3452 = vmul.f32 %v3413, %v3428
      %v3453 = vmul.f32 %v3414, %v3428
      %v3454 = vmul.f32 %v3415, %v3428
      %v3455 = vmul.f32 %v3416, %v3428
      %v3456 = vmul.f32 %v3417, %v3428
      %v3457 = vmul.f32 %v3418, %v3428
      %v3458 = vmul.f32 %v3419, %v3428
      %v3459 = vmul.f32 %v3420, %v3428
      %v3460 = vmul.f32 %v3421, %v3428
      %v3461 = vmul.f32 %v3422, %v3428
      %v3462 = vld [vmem:[%s6] sm:$0x1]
      %v3464 = vlaneseq
      %v3465 = vshrl.u32 %v3464, 7
      %v3466 = vsub.s32 0, %v3465
      %v3467 = vrot.slane %v3462, %v3466
      %v3469 = vadd.f32 %v3430, %v3467
      %v3470 = vadd.f32 %v3431, %v3467
      %v3471 = vadd.f32 %v3432, %v3467
      %v3472 = vadd.f32 %v3433, %v3467
      %v3473 = vadd.f32 %v3434, %v3467
      %v3474 = vadd.f32 %v3435, %v3467
      %v3475 = vadd.f32 %v3436, %v3467
      %v3476 = vadd.f32 %v3437, %v3467
      %v3477 = vadd.f32 %v3438, %v3467
      %v3478 = vadd.f32 %v3439, %v3467
      %v3479 = vadd.f32 %v3440, %v3467
      %v3480 = vadd.f32 %v3441, %v3467
      %v3481 = vadd.f32 %v3442, %v3467
      %v3482 = vadd.f32 %v3443, %v3467
      %v3483 = vadd.f32 %v3444, %v3467
      %v3484 = vadd.f32 %v3445, %v3467
      %v3485 = vadd.f32 %v3446, %v3467
      %v3486 = vadd.f32 %v3447, %v3467
      %v3487 = vadd.f32 %v3448, %v3467
      %v3488 = vadd.f32 %v3449, %v3467
      %v3489 = vadd.f32 %v3450, %v3467
      %v3490 = vadd.f32 %v3451, %v3467
      %v3491 = vadd.f32 %v3452, %v3467
      %v3492 = vadd.f32 %v3453, %v3467
      %v3493 = vadd.f32 %v3454, %v3467
      %v3494 = vadd.f32 %v3455, %v3467
      %v3495 = vadd.f32 %v3456, %v3467
      %v3496 = vadd.f32 %v3457, %v3467
      %v3497 = vadd.f32 %v3458, %v3467
      %v3498 = vadd.f32 %v3459, %v3467
      %v3499 = vadd.f32 %v3460, %v3467
      %v3500 = vadd.f32 %v3461, %v3467
      %v3501 = vadd.f32 %v3469, 3.0
      %v3502 = vadd.f32 %v3470, 3.0
      %v3503 = vadd.f32 %v3471, 3.0
      %v3504 = vadd.f32 %v3472, 3.0
      %v3505 = vadd.f32 %v3473, 3.0
      %v3506 = vadd.f32 %v3474, 3.0
      %v3507 = vadd.f32 %v3475, 3.0
      %v3508 = vadd.f32 %v3476, 3.0
      %v3509 = vadd.f32 %v3477, 3.0
      %v3510 = vadd.f32 %v3478, 3.0
      %v3511 = vadd.f32 %v3479, 3.0
      %v3512 = vadd.f32 %v3480, 3.0
      %v3513 = vadd.f32 %v3481, 3.0
      %v3514 = vadd.f32 %v3482, 3.0
      %v3515 = vadd.f32 %v3483, 3.0
      %v3516 = vadd.f32 %v3484, 3.0
      %v3517 = vadd.f32 %v3485, 3.0
      %v3518 = vadd.f32 %v3486, 3.0
      %v3519 = vadd.f32 %v3487, 3.0
      %v3520 = vadd.f32 %v3488, 3.0
      %v3521 = vadd.f32 %v3489, 3.0
      %v3522 = vadd.f32 %v3490, 3.0
      %v3523 = vadd.f32 %v3491, 3.0
      %v3524 = vadd.f32 %v3492, 3.0
      %v3525 = vadd.f32 %v3493, 3.0
      %v3526 = vadd.f32 %v3494, 3.0
      %v3527 = vadd.f32 %v3495, 3.0
      %v3528 = vadd.f32 %v3496, 3.0
      %v3529 = vadd.f32 %v3497, 3.0
      %v3530 = vadd.f32 %v3498, 3.0
      %v3531 = vadd.f32 %v3499, 3.0
      %v3532 = vadd.f32 %v3500, 3.0
      %v3533 = vmax.f32 %v3501, 0.0
      %v3534 = vmax.f32 %v3502, 0.0
      %v3535 = vmax.f32 %v3503, 0.0
      %v3536 = vmax.f32 %v3504, 0.0
      %v3537 = vmax.f32 %v3505, 0.0
      %v3538 = vmax.f32 %v3506, 0.0
      %v3539 = vmax.f32 %v3507, 0.0
      %v3540 = vmax.f32 %v3508, 0.0
      %v3541 = vmax.f32 %v3509, 0.0
      %v3542 = vmax.f32 %v3510, 0.0
      %v3543 = vmax.f32 %v3511, 0.0
      %v3544 = vmax.f32 %v3512, 0.0
      %v3545 = vmax.f32 %v3513, 0.0
      %v3546 = vmax.f32 %v3514, 0.0
      %v3547 = vmax.f32 %v3515, 0.0
      %v3548 = vmax.f32 %v3516, 0.0
      %v3549 = vmax.f32 %v3517, 0.0
      %v3550 = vmax.f32 %v3518, 0.0
      %v3551 = vmax.f32 %v3519, 0.0
      %v3552 = vmax.f32 %v3520, 0.0
      %v3553 = vmax.f32 %v3521, 0.0
      %v3554 = vmax.f32 %v3522, 0.0
      %v3555 = vmax.f32 %v3523, 0.0
      %v3556 = vmax.f32 %v3524, 0.0
      %v3557 = vmax.f32 %v3525, 0.0
      %v3558 = vmax.f32 %v3526, 0.0
      %v3559 = vmax.f32 %v3527, 0.0
      %v3560 = vmax.f32 %v3528, 0.0
      %v3561 = vmax.f32 %v3529, 0.0
      %v3562 = vmax.f32 %v3530, 0.0
      %v3563 = vmax.f32 %v3531, 0.0
      %v3564 = vmax.f32 %v3532, 0.0
      %v3565 = vmin.f32 %v3533, 6.0
      %v3566 = vmin.f32 %v3534, 6.0
      %v3567 = vmin.f32 %v3535, 6.0
      %v3568 = vmin.f32 %v3536, 6.0
      %v3569 = vmin.f32 %v3537, 6.0
      %v3570 = vmin.f32 %v3538, 6.0
      %v3571 = vmin.f32 %v3539, 6.0
      %v3572 = vmin.f32 %v3540, 6.0
      %v3573 = vmin.f32 %v3541, 6.0
      %v3574 = vmin.f32 %v3542, 6.0
      %v3575 = vmin.f32 %v3543, 6.0
      %v3576 = vmin.f32 %v3544, 6.0
      %v3577 = vmin.f32 %v3545, 6.0
      %v3578 = vmin.f32 %v3546, 6.0
      %v3579 = vmin.f32 %v3547, 6.0
      %v3580 = vmin.f32 %v3548, 6.0
      %v3581 = vmin.f32 %v3549, 6.0
      %v3582 = vmin.f32 %v3550, 6.0
      %v3583 = vmin.f32 %v3551, 6.0
      %v3584 = vmin.f32 %v3552, 6.0
      %v3585 = vmin.f32 %v3553, 6.0
      %v3586 = vmin.f32 %v3554, 6.0
      %v3587 = vmin.f32 %v3555, 6.0
      %v3588 = vmin.f32 %v3556, 6.0
      %v3589 = vmin.f32 %v3557, 6.0
      %v3590 = vmin.f32 %v3558, 6.0
      %v3591 = vmin.f32 %v3559, 6.0
      %v3592 = vmin.f32 %v3560, 6.0
      %v3593 = vmin.f32 %v3561, 6.0
      %v3594 = vmin.f32 %v3562, 6.0
      %v3595 = vmin.f32 %v3563, 6.0
      %v3596 = vmin.f32 %v3564, 6.0
      %v3597 = vmul.f32 %v3565, 0.16666667
      %v3598 = vmul.f32 %v3566, 0.16666667
      %v3599 = vmul.f32 %v3567, 0.16666667
      %v3600 = vmul.f32 %v3568, 0.16666667
      %v3601 = vmul.f32 %v3569, 0.16666667
      %v3602 = vmul.f32 %v3570, 0.16666667
      %v3603 = vmul.f32 %v3571, 0.16666667
      %v3604 = vmul.f32 %v3572, 0.16666667
      %v3605 = vmul.f32 %v3573, 0.16666667
      %v3606 = vmul.f32 %v3574, 0.16666667
      %v3607 = vmul.f32 %v3575, 0.16666667
      %v3608 = vmul.f32 %v3576, 0.16666667
      %v3609 = vmul.f32 %v3577, 0.16666667
      %v3610 = vmul.f32 %v3578, 0.16666667
      %v3611 = vmul.f32 %v3579, 0.16666667
      %v3612 = vmul.f32 %v3580, 0.16666667
      %v3613 = vmul.f32 %v3581, 0.16666667
      %v3614 = vmul.f32 %v3582, 0.16666667
      %v3615 = vmul.f32 %v3583, 0.16666667
      %v3616 = vmul.f32 %v3584, 0.16666667
      %v3617 = vmul.f32 %v3585, 0.16666667
      %v3618 = vmul.f32 %v3586, 0.16666667
      %v3619 = vmul.f32 %v3587, 0.16666667
      %v3620 = vmul.f32 %v3588, 0.16666667
      %v3621 = vmul.f32 %v3589, 0.16666667
      %v3622 = vmul.f32 %v3590, 0.16666667
      %v3623 = vmul.f32 %v3591, 0.16666667
      %v3624 = vmul.f32 %v3592, 0.16666667
      %v3625 = vmul.f32 %v3593, 0.16666667
      %v3626 = vmul.f32 %v3594, 0.16666667
      %v3627 = vmul.f32 %v3595, 0.16666667
      %v3628 = vmul.f32 %v3596, 0.16666667
      %v3629 = vmul.f32 %v3469, %v3597
      %v3630 = vmul.f32 %v3470, %v3598
      %v3631 = vmul.f32 %v3471, %v3599
      %v3632 = vmul.f32 %v3472, %v3600
      %v3633 = vmul.f32 %v3473, %v3601
      %v3634 = vmul.f32 %v3474, %v3602
      %v3635 = vmul.f32 %v3475, %v3603
      %v3636 = vmul.f32 %v3476, %v3604
      %v3637 = vmul.f32 %v3477, %v3605
      %v3638 = vmul.f32 %v3478, %v3606
      %v3639 = vmul.f32 %v3479, %v3607
      %v3640 = vmul.f32 %v3480, %v3608
      %v3641 = vmul.f32 %v3481, %v3609
      %v3642 = vmul.f32 %v3482, %v3610
      %v3643 = vmul.f32 %v3483, %v3611
      %v3644 = vmul.f32 %v3484, %v3612
      %v3645 = vmul.f32 %v3485, %v3613
      %v3646 = vmul.f32 %v3486, %v3614
      %v3647 = vmul.f32 %v3487, %v3615
      %v3648 = vmul.f32 %v3488, %v3616
      %v3649 = vmul.f32 %v3489, %v3617
      %v3650 = vmul.f32 %v3490, %v3618
      %v3651 = vmul.f32 %v3491, %v3619
      %v3652 = vmul.f32 %v3492, %v3620
      %v3653 = vmul.f32 %v3493, %v3621
      %v3654 = vmul.f32 %v3494, %v3622
      %v3655 = vmul.f32 %v3495, %v3623
      %v3656 = vmul.f32 %v3496, %v3624
      %v3657 = vmul.f32 %v3497, %v3625
      %v3658 = vmul.f32 %v3498, %v3626
      %v3659 = vmul.f32 %v3499, %v3627
      %v3660 = vmul.f32 %v3500, %v3628
      %v3661 = vpack.c.bf16 %v3630, %v3629
      %v3662 = vpack.c.bf16 %v3632, %v3631
      %v3663 = vpack.c.bf16 %v3634, %v3633
      %v3664 = vpack.c.bf16 %v3636, %v3635
      %v3665 = vpack.c.bf16 %v3638, %v3637
      %v3666 = vpack.c.bf16 %v3640, %v3639
      %v3667 = vpack.c.bf16 %v3642, %v3641
      %v3668 = vpack.c.bf16 %v3644, %v3643
      %v3669 = vpack.c.bf16 %v3646, %v3645
      %v3670 = vpack.c.bf16 %v3648, %v3647
      %v3671 = vpack.c.bf16 %v3650, %v3649
      %v3672 = vpack.c.bf16 %v3652, %v3651
      %v3673 = vpack.c.bf16 %v3654, %v3653
      %v3674 = vpack.c.bf16 %v3656, %v3655
      %v3675 = vpack.c.bf16 %v3658, %v3657
      %v3676 = vpack.c.bf16 %v3660, %v3659
      %v3693 = vunpack.c.l.b16 %v3661
      %v3694 = vunpack.c.h.b16 %v3661
      %v3695 = vunpack.c.l.b16 %v3662
      %v3696 = vunpack.c.h.b16 %v3662
      %v3697 = vunpack.c.l.b16 %v3663
      %v3698 = vunpack.c.h.b16 %v3663
      %v3699 = vunpack.c.l.b16 %v3664
      %v3700 = vunpack.c.h.b16 %v3664
      %v3701 = vunpack.c.l.b16 %v3665
      %v3702 = vunpack.c.h.b16 %v3665
      %v3703 = vunpack.c.l.b16 %v3666
      %v3704 = vunpack.c.h.b16 %v3666
      %v3705 = vunpack.c.l.b16 %v3667
      %v3706 = vunpack.c.h.b16 %v3667
      %v3707 = vunpack.c.l.b16 %v3668
      %v3708 = vunpack.c.h.b16 %v3668
      %v3709 = vunpack.c.l.b16 %v3669
      %v3710 = vunpack.c.h.b16 %v3669
      %v3711 = vunpack.c.l.b16 %v3670
      %v3712 = vunpack.c.h.b16 %v3670
      %v3713 = vunpack.c.l.b16 %v3671
      %v3714 = vunpack.c.h.b16 %v3671
      %v3715 = vunpack.c.l.b16 %v3672
      %v3716 = vunpack.c.h.b16 %v3672
      %v3717 = vunpack.c.l.b16 %v3673
      %v3718 = vunpack.c.h.b16 %v3673
      %v3719 = vunpack.c.l.b16 %v3674
      %v3720 = vunpack.c.h.b16 %v3674
      %v3721 = vunpack.c.l.b16 %v3675
      %v3722 = vunpack.c.h.b16 %v3675
      %v3723 = vunpack.c.l.b16 %v3676
      %v3724 = vunpack.c.h.b16 %v3676
      %v3725 = vpack.c.b16 %v3693, %v3693
      %v3726 = vpack.c.b16 %v3694, %v3694
      %v3727 = vpack.c.b16 %v3695, %v3695
      %v3728 = vpack.c.b16 %v3696, %v3696
      %v3729 = vpack.c.b16 %v3697, %v3697
      %v3730 = vpack.c.b16 %v3698, %v3698
      %v3731 = vpack.c.b16 %v3699, %v3699
      %v3732 = vpack.c.b16 %v3700, %v3700
      %v3733 = vpack.c.b16 %v3701, %v3701
      %v3734 = vpack.c.b16 %v3702, %v3702
      %v3735 = vpack.c.b16 %v3703, %v3703
      %v3736 = vpack.c.b16 %v3704, %v3704
      %v3737 = vpack.c.b16 %v3705, %v3705
      %v3738 = vpack.c.b16 %v3706, %v3706
      %v3739 = vpack.c.b16 %v3707, %v3707
      %v3740 = vpack.c.b16 %v3708, %v3708
      %v3741 = vpack.c.b16 %v3709, %v3709
      %v3742 = vpack.c.b16 %v3710, %v3710
      %v3743 = vpack.c.b16 %v3711, %v3711
      %v3744 = vpack.c.b16 %v3712, %v3712
      %v3745 = vpack.c.b16 %v3713, %v3713
      %v3746 = vpack.c.b16 %v3714, %v3714
      %v3747 = vpack.c.b16 %v3715, %v3715
      %v3748 = vpack.c.b16 %v3716, %v3716
      %v3749 = vpack.c.b16 %v3717, %v3717
      %v3750 = vpack.c.b16 %v3718, %v3718
      %v3751 = vpack.c.b16 %v3719, %v3719
      %v3752 = vpack.c.b16 %v3720, %v3720
      %v3753 = vpack.c.b16 %v3721, %v3721
      %v3754 = vpack.c.b16 %v3722, %v3722
      %v3755 = vpack.c.b16 %v3723, %v3723
      %v3756 = vpack.c.b16 %v3724, %v3724
      %vm3789 = vcmask 125952
      %3790 = vst.msk [vmem:[%s335] sm:$0xf] %vm3789, %v3725
      %3791 = vst.msk [vmem:[%s335 + $0x4] sm:$0xf] %vm3789, %v3726
      %3792 = vst.msk [vmem:[%s335 + $0x8] sm:$0xf] %vm3789, %v3727
      %3793 = vst.msk [vmem:[%s335 + $0xc] sm:$0xf] %vm3789, %v3728
      %3794 = vst.msk [vmem:[%s335 + $0x10] sm:$0xf] %vm3789, %v3729
      %3795 = vst.msk [vmem:[%s335 + $0x14] sm:$0xf] %vm3789, %v3730
      %3796 = vst.msk [vmem:[%s335 + $0x18] sm:$0xf] %vm3789, %v3731
      %3797 = vst.msk [vmem:[%s335 + $0x1c] sm:$0xf] %vm3789, %v3732
      %3798 = vst.msk [vmem:[%s335 + $0x20] sm:$0xf] %vm3789, %v3733
      %3799 = vst.msk [vmem:[%s335 + $0x24] sm:$0xf] %vm3789, %v3734
      %3800 = vst.msk [vmem:[%s335 + $0x28] sm:$0xf] %vm3789, %v3735
      %3801 = vst.msk [vmem:[%s335 + $0x2c] sm:$0xf] %vm3789, %v3736
      %3802 = vst.msk [vmem:[%s335 + $0x30] sm:$0xf] %vm3789, %v3737
      %3803 = vst.msk [vmem:[%s335 + $0x34] sm:$0xf] %vm3789, %v3738
      %3804 = vst.msk [vmem:[%s335 + $0x38] sm:$0xf] %vm3789, %v3739
      %3805 = vst.msk [vmem:[%s335 + $0x3c] sm:$0xf] %vm3789, %v3740
      %3806 = vst.msk [vmem:[%s335 + $0x40] sm:$0xf] %vm3789, %v3741
      %3807 = vst.msk [vmem:[%s335 + $0x44] sm:$0xf] %vm3789, %v3742
      %3808 = vst.msk [vmem:[%s335 + $0x48] sm:$0xf] %vm3789, %v3743
      %3809 = vst.msk [vmem:[%s335 + $0x4c] sm:$0xf] %vm3789, %v3744
      %3810 = vst.msk [vmem:[%s335 + $0x50] sm:$0xf] %vm3789, %v3745
      %3811 = vst.msk [vmem:[%s335 + $0x54] sm:$0xf] %vm3789, %v3746
      %3812 = vst.msk [vmem:[%s335 + $0x58] sm:$0xf] %vm3789, %v3747
      %3813 = vst.msk [vmem:[%s335 + $0x5c] sm:$0xf] %vm3789, %v3748
      %3814 = vst.msk [vmem:[%s335 + $0x60] sm:$0xf] %vm3789, %v3749
      %3815 = vst.msk [vmem:[%s335 + $0x64] sm:$0xf] %vm3789, %v3750
      %3816 = vst.msk [vmem:[%s335 + $0x68] sm:$0xf] %vm3789, %v3751
      %3817 = vst.msk [vmem:[%s335 + $0x6c] sm:$0xf] %vm3789, %v3752
      %3818 = vst.msk [vmem:[%s335 + $0x70] sm:$0xf] %vm3789, %v3753
      %3819 = vst.msk [vmem:[%s335 + $0x74] sm:$0xf] %vm3789, %v3754
      %3820 = vst.msk [vmem:[%s335 + $0x78] sm:$0xf] %vm3789, %v3755
      %3821 = vst.msk [vmem:[%s335 + $0x7c] sm:$0xf] %vm3789, %v3756
      %v3822 = vsel %vm476, %v3629, 0.0
      %v3823 = vsel %vm476, %v3630, 0.0
      %v3824 = vadd.f32 %v3822, %v3823
      %v3825 = vsel %vm476, %v3631, 0.0
      %v3826 = vadd.f32 %v3824, %v3825
      %v3827 = vsel %vm476, %v3632, 0.0
      %v3828 = vadd.f32 %v3826, %v3827
      %v3829 = vsel %vm476, %v3633, 0.0
      %v3830 = vadd.f32 %v3828, %v3829
      %v3831 = vsel %vm476, %v3634, 0.0
      %v3832 = vadd.f32 %v3830, %v3831
      %v3833 = vsel %vm476, %v3635, 0.0
      %v3834 = vadd.f32 %v3832, %v3833
      %v3835 = vsel %vm476, %v3636, 0.0
      %v3836 = vadd.f32 %v3834, %v3835
      %v3837 = vsel %vm476, %v3637, 0.0
      %v3838 = vadd.f32 %v3836, %v3837
      %v3839 = vsel %vm476, %v3638, 0.0
      %v3840 = vadd.f32 %v3838, %v3839
      %v3841 = vsel %vm476, %v3639, 0.0
      %v3842 = vadd.f32 %v3840, %v3841
      %v3843 = vsel %vm476, %v3640, 0.0
      %v3844 = vadd.f32 %v3842, %v3843
      %v3845 = vsel %vm476, %v3641, 0.0
      %v3846 = vadd.f32 %v3844, %v3845
      %v3847 = vsel %vm476, %v3642, 0.0
      %v3848 = vadd.f32 %v3846, %v3847
      %v3849 = vsel %vm476, %v3643, 0.0
      %v3850 = vadd.f32 %v3848, %v3849
      %v3851 = vsel %vm476, %v3644, 0.0
      %v3852 = vadd.f32 %v3850, %v3851
      %v3853 = vsel %vm476, %v3645, 0.0
      %v3854 = vadd.f32 %v3852, %v3853
      %v3855 = vsel %vm476, %v3646, 0.0
      %v3856 = vadd.f32 %v3854, %v3855
      %v3857 = vsel %vm476, %v3647, 0.0
      %v3858 = vadd.f32 %v3856, %v3857
      %v3859 = vsel %vm476, %v3648, 0.0
      %v3860 = vadd.f32 %v3858, %v3859
      %v3861 = vsel %vm476, %v3649, 0.0
      %v3862 = vadd.f32 %v3860, %v3861
      %v3863 = vsel %vm476, %v3650, 0.0
      %v3864 = vadd.f32 %v3862, %v3863
      %v3865 = vsel %vm476, %v3651, 0.0
      %v3866 = vadd.f32 %v3864, %v3865
      %v3867 = vsel %vm476, %v3652, 0.0
      %v3868 = vadd.f32 %v3866, %v3867
      %v3869 = vsel %vm476, %v3653, 0.0
      %v3870 = vadd.f32 %v3868, %v3869
      %v3871 = vsel %vm476, %v3654, 0.0
      %v3872 = vadd.f32 %v3870, %v3871
      %v3873 = vsel %vm476, %v3655, 0.0
      %v3874 = vadd.f32 %v3872, %v3873
      %v3875 = vsel %vm476, %v3656, 0.0
      %v3876 = vadd.f32 %v3874, %v3875
      %v3877 = vsel %vm476, %v3657, 0.0
      %v3878 = vadd.f32 %v3876, %v3877
      %v3879 = vsel %vm476, %v3658, 0.0
      %v3880 = vadd.f32 %v3878, %v3879
      %v3881 = vsel %vm476, %v3659, 0.0
      %v3882 = vadd.f32 %v3880, %v3881
      %v3883 = vsel %vm476, %v3660, 0.0
      %v3884 = vadd.f32 %v3882, %v3883
      %v3885 = vrot.slane %v3884, 4
      %v3886 = vadd.f32 %v3884, %v3885
      %v3887 = vrot.slane %v3886, 2
      %v3888 = vadd.f32 %v3886, %v3887
      %v3889 = vrot.slane %v3888, 1
      %v3890 = vadd.f32 %v3888, %v3889
      %p3891 = scmp.eq.s32.totalorder %s25, 0
      // Predicated region
      $region49: #{inverted_residual_forward.2} parent=47 // pred_check
        %p3892 = pneg %p3891
      $region50: #{inverted_residual_forward.2} parent=47 // pred_check_branch
        %3894 = sbr.rel (%p3892) target = $region52
      $region51: #{inverted_residual_forward.2} parent=47 // pred_region
        %vm3895 = vcmask 122880
        %3896 = vst.msk [vmem:[%s339] sm:$0x1] %vm3895, %v3890
      $region52: #{inverted_residual_forward.2} parent=47 // pred_fallthru
        _
      %p3897 = scmp.gt.s32.totalorder %s25, 0
      // Predicated region
      $region53: #{inverted_residual_forward.2} parent=47 // pred_check
        %p3898 = pneg %p3897
      $region54: #{inverted_residual_forward.2} parent=47 // pred_check_branch
        %3900 = sbr.rel (%p3898) target = $region56
      $region55: #{inverted_residual_forward.2} parent=47 // pred_region
        %v3901 = vld [vmem:[%s339] sm:$0x1]
        %v3902 = vadd.f32 %v3901, %v3890
        %vm3903 = vcmask 122880
        %3904 = vst.msk [vmem:[%s339] sm:$0x1] %vm3903, %v3902
      $region56: #{inverted_residual_forward.2} parent=47 // pred_fallthru
        _
      %s3905 = smul.u32 16, %s25
      %p3906 = scmp.lt.s32.totalorder %s24, 1
      %s3907 = scalar_select %p3906, %s24, 1
      %p3908 = scmp.lt.s32.totalorder %s3905, 15
      %s3909 = scalar_select %p3908, %s3905, 15
      %s3910 = smul.addr %s3909, 2
      %s3911 = smul.addr %s3907, 32
      %s3912 = sadd.s32 %s3910, %s3911
      %s3913 = smul.addr %s3912, 4
      %s3914 = scalar_lea.vmem %s7, %s3913
      %p3915 = scmp.lt.s32.totalorder %s24, 1
      %s3916 = scalar_select %p3915, %s24, 1
      %s3917 = scalar_lea.vmem %s8, %s3916
      // Predicated region
      $region57: #{inverted_residual_forward.2} parent=47 // pred_check
        %p3918 = pneg %p204
      $region58: #{inverted_residual_forward.2} parent=47 // pred_check_branch
        %3920 = sbr.rel (%p3918) target = $region60
      $region59: #{inverted_residual_forward.2} parent=47 // pred_region
        %s3921 = smul.u32 16, %s25
      $region60: #{inverted_residual_forward.2} parent=47 // pred_fallthru
        _
      // Predicated region
      $region61: #{inverted_residual_forward.2} parent=47 // pred_check
        %p3922 = pneg %p230
      $region62: #{inverted_residual_forward.2} parent=47 // pred_check_branch
        %3924 = sbr.rel (%p3922) target = $region64
      $region63: #{inverted_residual_forward.2} parent=47 // pred_region
        _
      $region64: #{inverted_residual_forward.2} parent=47 // pred_fallthru
        _
    $region48: #{inverted_residual_forward.2} parent=5 // pred_fallthru
      _
    %p3925 = scmp.le.s32.totalorder 2, %s15
    // Predicated region
    $region65: #{inverted_residual_forward.2} parent=5 // pred_check
      %p3926 = pneg %p3925
    $region66: #{inverted_residual_forward.2} parent=5 // pred_check_branch
      %3928 = sbr.rel (%p3926) target = $region68
    $region67: #{inverted_residual_forward.2} parent=5 // pred_region
      %s3929 = ssub.s32 %s15, 2
      // Predicated region
      $region69: #{inverted_residual_forward.2} parent=67 // pred_check
        %p3930 = pneg %p210
      $region70: #{inverted_residual_forward.2} parent=67 // pred_check_branch
        %3932 = sbr.rel (%p3930) target = $region72
      $region71: #{inverted_residual_forward.2} parent=67 // pred_region
        %s3933 = smul.u32 16, %s27
        %p3934 = scmp.lt.s32.totalorder %s26, 1
        %s3935 = scalar_select %p3934, %s26, 1
        %p3936 = scmp.lt.s32.totalorder %s3933, 15
        %s3937 = scalar_select %p3936, %s3933, 15
        %s3938 = smul.addr %s3937, 2
        %s3939 = smul.addr %s3935, 32
        %s3940 = sadd.s32 %s3938, %s3939
        %s3941 = smul.addr %s3940, 4
        %s3942 = scalar_lea.vmem %s7, %s3941
      $region72: #{inverted_residual_forward.2} parent=67 // pred_fallthru
        _
      // Predicated region
      $region73: #{inverted_residual_forward.2} parent=67 // pred_check
        %p3943 = pneg %p236
      $region74: #{inverted_residual_forward.2} parent=67 // pred_check_branch
        %3945 = sbr.rel (%p3943) target = $region76
      $region75: #{inverted_residual_forward.2} parent=67 // pred_region
        %p3946 = scmp.lt.s32.totalorder %s26, 1
        %s3947 = scalar_select %p3946, %s26, 1
        %s3948 = scalar_lea.vmem %s8, %s3947
      $region76: #{inverted_residual_forward.2} parent=67 // pred_fallthru
        _
    $region68: #{inverted_residual_forward.2} parent=5 // pred_fallthru
      _
  $region6: #{inverted_residual_forward.2} parent=0 // loop_footer
    %s19 = sadd.s32 1, %s15
  $region7: #{inverted_residual_forward.2} parent=0 // loop_footer_branch
    %14 = sbr.rel target = $region3
  $region8: #{inverted_residual_forward.2} parent=0 // loop_exit
    _

</llo_original>
